<compile_context>
chip_gen: v5e
topology: v5e:2x2
jax: 0.10.0
libtpu: 0.0.40
codegen_flags: <defaults>
</compile_context>

<pallas_src>
import functools

import jax
import jax.numpy as jnp
from jax.experimental import pallas as pl
from jax.experimental.pallas import tpu as pltpu


def get_valid_group(num_channels, max_groups=8):
    for g in reversed(range(1, max_groups + 1)):
        if num_channels % g == 0:
            return g
    return 1


def _round_up(x, m):
    return (x + m - 1) // m * m


# ----------------------------------------------------------------------------
# In-kernel building blocks (values live in channel-major (C, H*W) form)
# ----------------------------------------------------------------------------
def _group_norm_silu(x, gamma, beta, G, eps):
    """GroupNorm(G) + SiLU.  x: (C, N), gamma/beta: (C, 1)."""
    C, N = x.shape
    cpg = C // G
    s1 = jnp.sum(x, axis=1, keepdims=True)          # per-channel sum
    s2 = jnp.sum(x * x, axis=1, keepdims=True)      # per-channel sum of squares
    if cpg > 1:                                     # aggregate channels -> group
        parts_s, parts_q = [], []
        for g in range(G):
            ss = jnp.sum(s1[g * cpg:(g + 1) * cpg, :], axis=0, keepdims=True)
            qq = jnp.sum(s2[g * cpg:(g + 1) * cpg, :], axis=0, keepdims=True)
            parts_s.append(jnp.broadcast_to(ss, (cpg, 1)))
            parts_q.append(jnp.broadcast_to(qq, (cpg, 1)))
        s1 = jnp.concatenate(parts_s, axis=0)
        s2 = jnp.concatenate(parts_q, axis=0)
    inv_count = 1.0 / float(cpg * N)
    mean = s1 * inv_count
    var = jnp.maximum(s2 * inv_count - mean * mean, 0.0)   # clamp before rsqrt
    inv_std = jax.lax.rsqrt(var + eps)
    y = (x - mean) * inv_std * gamma + beta
    return y * jax.nn.sigmoid(y)                    # SiLU


def _conv3x3(h, w_flat_bf16, bias, masks, patch_ref, H, W, cpad):
    """3x3 conv (padding=1) via im2col + one bf16 MXU matmul (f32 accumulate).

    h: (Cin, N) f32.  w_flat_bf16: (Cout, 9*cpad) bf16 (K zero-padded).
    bias: (Cout, 1).  masks: (9, N) precomputed edge masks.
    patch_ref: VMEM (9*cpad, N) f32 scratch; each 8-aligned slot holds one tap.
    """
    cin, N = h.shape
    if cpad > cin:
        # pad once so every tap store below is an aligned, unmasked full slot
        h = jnp.concatenate([h, jnp.zeros((cpad - cin, N), h.dtype)], axis=0)
    for t in range(9):
        dy, dx = t // 3, t % 3
        off = (dy - 1) * W + (dx - 1)
        p = h if off == 0 else pltpu.roll(h, shift=(-off) % N, axis=1)
        if t != 4:                               # centre tap needs no edge mask
            p = p * masks[t:t + 1, :]
        patch_ref[t * cpad:(t + 1) * cpad, :] = p
    out = jnp.dot(w_flat_bf16, patch_ref[...].astype(jnp.bfloat16),
                  preferred_element_type=jnp.float32)
    return out + bias


def _attention(h, qkv_w_t, qkv_b, proj_w_t, proj_b, num_heads, scale, o_ref):
    """Multi-head self-attention over spatial positions.  h: (C, N)."""
    C, N = h.shape
    d = C // num_heads
    bf16 = jnp.bfloat16

    qkv = jnp.dot(qkv_w_t, h.astype(bf16),
                  preferred_element_type=jnp.float32) + qkv_b       # (3C, N)
    qt = jnp.transpose(qkv[0:C, :])           # (N, C) -- single XLU transpose

    for hd in range(num_heads):
        q = qt[:, hd * d:(hd + 1) * d].astype(bf16)                 # (N, d)
        k = qkv[C + hd * d:C + (hd + 1) * d, :].astype(bf16)        # (d, N)
        v = qkv[2 * C + hd * d:2 * C + (hd + 1) * d, :].astype(bf16)
        s = jnp.dot(q, k, preferred_element_type=jnp.float32) * scale  # (N, N)
        s = s - jnp.max(s, axis=-1, keepdims=True)
        p = jnp.exp(s)
        p = p * pl.reciprocal(jnp.sum(p, axis=-1, keepdims=True), approx=True)
        # o[dd, n] = sum_m v[dd, m] * p[n, m]   (rhs-transposed dot pattern)
        o_ref[hd * d:(hd + 1) * d, :] = jax.lax.dot_general(
            v, p.astype(bf16), (((1,), (1,)), ((), ())),
            preferred_element_type=jnp.float32)                      # (d, N)

    # single projection matmul with K = C after the head loop
    out = jnp.dot(proj_w_t, o_ref[...].astype(bf16),
                  preferred_element_type=jnp.float32)                # (C, N)
    return out + proj_b


def _maxpool2x2(h, sel, W):
    """2x2 max pool (stride 2).  h: (C, N) -> (C, sel.shape[1]) lane-dense."""
    C, N = h.shape
    m = jnp.maximum(h, pltpu.roll(h, shift=N - 1, axis=1))   # max(p, p+1)
    m = jnp.maximum(m, pltpu.roll(m, shift=N - W, axis=1))   # + rows p+W, p+W+1
    # Exact one-hot f32 selection matmul onto a >=128-lane (unmasked) output.
    return jnp.dot(m, sel, preferred_element_type=jnp.float32)


# ----------------------------------------------------------------------------
# Fused DownBlock kernel
# ----------------------------------------------------------------------------
def _make_kernel(H, W, cin, cout, G1, G2, num_heads, scale,
                 with_res, with_attn, eps=1e-5):
    cpad1 = _round_up(cin, 8)
    cpad2 = _round_up(cout, 8)

    def kernel(*refs):
        it = list(refs)
        x_ref, b1_ref = it.pop(0), it.pop(0)
        g1g_ref, g1b_ref, w1_ref = it.pop(0), it.pop(0), it.pop(0)
        g2g_ref, g2b_ref, w2_ref, b2_ref = (it.pop(0), it.pop(0),
                                            it.pop(0), it.pop(0))
        masks_ref, sel_ref = it.pop(0), it.pop(0)
        resw_ref = it.pop(0) if with_res else None
        if with_attn:
            qkvw_ref, qkvb_ref = it.pop(0), it.pop(0)
            projw_ref, projb_ref = it.pop(0), it.pop(0)
        pooled_ref, skip_ref = it.pop(0), it.pop(0)
        p1_ref, p2_ref = it.pop(0), it.pop(0)
        o_ref = it.pop(0) if with_attn else None

        x = x_ref[0]                                         # (Cin, N) f32
        masks = masks_ref[...]

        # ---- ResBlock -------------------------------------------------------
        h = _group_norm_silu(x, g1g_ref[...], g1b_ref[...], G1, eps)
        h = _conv3x3(h, w1_ref[...], b1_ref[0], masks, p1_ref, H, W, cpad1)
        h = _group_norm_silu(h, g2g_ref[...], g2b_ref[...], G2, eps)
        h = _conv3x3(h, w2_ref[...], b2_ref[...], masks, p2_ref, H, W, cpad2)
        if with_res:
            h = h + jnp.dot(resw_ref[...], x.astype(jnp.bfloat16),
                            preferred_element_type=jnp.float32)
        else:
            h = h + x                                        # nn.Identity

        # ---- Attention (or identity) ----------------------------------------
        if with_attn:
            h = _attention(h, qkvw_ref[...], qkvb_ref[...],
                           projw_ref[...], projb_ref[...],
                           num_heads, scale, o_ref)

        # ---- Outputs: skip connection + fused 2x2 max pool -------------------
        skip_ref[0] = h
        pooled_ref[0] = _maxpool2x2(h, sel_ref[...], W)

    return kernel


def down_block_forward(params, x_nchw, t_emb, g1, g2, with_attn, num_heads=4):
    B, Cin, H, W = x_nchw.shape
    assert H % 2 == 0 and W % 2 == 0, "MaxPool2d(2) requires even H and W"
    N = H * W
    Np = N // 4
    Np_pad = max(128, _round_up(Np, 128))
    Cout = params["conv1_w"].shape[-1]
    with_res = Cin != Cout
    cpad1 = _round_up(Cin, 8)
    cpad2 = _round_up(Cout, 8)
    bf16 = jnp.bfloat16

    # NCHW input is already channel-major: only a (free) reshape is needed.
    x = x_nchw.reshape(B, Cin, N).astype(jnp.float32)

    # Tiny time-embedding Linear, folded into conv1's per-batch bias column.
    t = t_emb @ params["time_w"] + params["time_b"]                 # (B, Cout)
    bias1 = (params["conv1_b"][None, :] + t).reshape(B, Cout, 1)
    bias1 = bias1.astype(jnp.float32)

    # im2col weights: (Cout, 9*cpad), taps ordered (dy, dx, ci), K zero-padded.
    def pack_conv_w(w_hwio, cpad):
        _, _, ci, co = w_hwio.shape
        w = jnp.pad(w_hwio, ((0, 0), (0, 0), (0, cpad - ci), (0, 0)))
        return w.reshape(9 * cpad, co).T.astype(bf16)

    w1 = pack_conv_w(params["conv1_w"], cpad1)
    w2 = pack_conv_w(params["conv2_w"], cpad2)

    if with_res:
        bias2 = (params["conv2_b"] + params["res_b"]).reshape(Cout, 1)
    else:
        bias2 = params["conv2_b"].reshape(Cout, 1)
    bias2 = bias2.astype(jnp.float32)

    g1g = params["gn1_gamma"].reshape(Cin, 1)
    g1b = params["gn1_beta"].reshape(Cin, 1)
    g2g = params["gn2_gamma"].reshape(Cout, 1)
    g2b = params["gn2_beta"].reshape(Cout, 1)

    # ---- constant index machinery, built ONCE outside the kernel -------------
    pos = jnp.arange(N, dtype=jnp.int32)
    row, col = pos // W, pos % W
    mask_rows = []
    for dy in range(3):
        for dx in range(3):
            m = jnp.ones((N,), jnp.float32)
            if dy == 0:
                m = m * (row >= 1)
            elif dy == 2:
                m = m * (row <= H - 2)
            if dx == 0:
                m = m * (col >= 1)
            elif dx == 2:
                m = m * (col <= W - 2)
            mask_rows.append(m)
    conv_masks = jnp.stack(mask_rows, axis=0).astype(jnp.float32)   # (9, N)

    j = jnp.arange(Np_pad, dtype=jnp.int32)
    anchor = (j // (W // 2)) * (2 * W) + (j % (W // 2)) * 2
    valid = j < Np
    pool_sel = jnp.where((pos[:, None] == anchor[None, :]) & valid[None, :],
                         1.0, 0.0).astype(jnp.float32)              # (N, Np_pad)

    inputs = [x, bias1, g1g, g1b, w1, g2g, g2b, w2, bias2, conv_masks, pool_sel]
    if with_res:
        inputs.append(params["res_w"].T.astype(bf16))               # (Cout, Cin)
    if with_attn:
        inputs += [params["qkv_w"].T.astype(bf16),                  # (3C, C)
                   params["qkv_b"].reshape(3 * Cout, 1).astype(jnp.float32),
                   params["proj_w"].T.astype(bf16),                 # (C, C)
                   params["proj_b"].reshape(Cout, 1).astype(jnp.float32)]

    def _batched(a):
        nd = a.ndim
        return pl.BlockSpec((1,) + a.shape[1:],
                            lambda b, _nd=nd: (b,) + (0,) * (_nd - 1))

    def _shared(a):
        nd = a.ndim
        return pl.BlockSpec(a.shape, lambda b, _nd=nd: (0,) * _nd)

    in_specs = [_batched(inputs[0]), _batched(inputs[1])]
    in_specs += [_shared(a) for a in inputs[2:]]

    scale = float((Cout // num_heads) ** (-0.5))
    kernel = _make_kernel(H, W, Cin, Cout, g1, g2, num_heads, scale,
                          with_res, with_attn)

    scratch = [pltpu.VMEM((9 * cpad1, N), jnp.float32),
               pltpu.VMEM((9 * cpad2, N), jnp.float32)]
    if with_attn:
        scratch.append(pltpu.VMEM((Cout, N), jnp.float32))

    pooled_pad, skip = pl.pallas_call(
        kernel,
        out_shape=(jax.ShapeDtypeStruct((B, Cout, Np_pad), jnp.float32),
                   jax.ShapeDtypeStruct((B, Cout, N), jnp.float32)),
        grid=(B,),
        in_specs=in_specs,
        out_specs=(pl.BlockSpec((1, Cout, Np_pad), lambda b: (b, 0, 0)),
                   pl.BlockSpec((1, Cout, N), lambda b: (b, 0, 0))),
        scratch_shapes=scratch,
        compiler_params=pltpu.CompilerParams(
            dimension_semantics=("parallel",),
            vmem_limit_bytes=48 * 1024 * 1024),
    )(*inputs)

    # TODO(synk): at realistic diffusion sizes (H*W >= 1024, C >= 128) the (N,N)
    # attention scores need a flash-style KV-tiled online softmax, an H-band
    # (or head) grid axis so both v7x TensorCores stay busy when B is small,
    # and batch-stacking along the lane dim for the single-TC v5e/v6e MXU.
    pooled = pooled_pad[:, :, :Np].reshape(B, Cout, H // 2, W // 2)
    return pooled, skip.reshape(B, Cout, H, W)


# ----------------------------------------------------------------------------
# Parameter init (deterministic, synthetic)
# ----------------------------------------------------------------------------
def init_params(key, in_c, out_c, time_emb_dim, with_attn, num_heads=4):
    ks = jax.random.split(key, 12)

    def w(k, shape, scale=0.1):
        return (scale * jax.random.normal(k, shape)).astype(jnp.float32)

    p = {
        "gn1_gamma": jnp.ones((in_c,), jnp.float32),
        "gn1_beta": jnp.zeros((in_c,), jnp.float32),
        "conv1_w": w(ks[0], (3, 3, in_c, out_c)),          # HWIO
        "conv1_b": w(ks[1], (out_c,)),
        "gn2_gamma": jnp.ones((out_c,), jnp.float32),
        "gn2_beta": jnp.zeros((out_c,), jnp.float32),
        "conv2_w": w(ks[2], (3, 3, out_c, out_c)),
        "conv2_b": w(ks[3], (out_c,)),
        "time_w": w(ks[4], (time_emb_dim, out_c)),          # y = t @ W + b
        "time_b": w(ks[5], (out_c,)),
    }
    if in_c != out_c:
        p["res_w"] = w(ks[6], (in_c, out_c))                # 1x1 conv as matmul
        p["res_b"] = w(ks[7], (out_c,))
    else:                                                   # nn.Identity
        p["res_w"] = jnp.eye(in_c, dtype=jnp.float32)
        p["res_b"] = jnp.zeros((out_c,), jnp.float32)
    if with_attn:
        C = out_c
        p["qkv_w"] = w(ks[8], (C, 3 * C))
        p["qkv_b"] = w(ks[9], (3 * C,))
        p["proj_w"] = w(ks[10], (C, C))
        p["proj_b"] = w(ks[11], (C,))
    return p


# ----------------------------------------------------------------------------
# Pure-JAX reference (NCHW, mirrors the PyTorch module) for validation
# ----------------------------------------------------------------------------
def ref_forward(params, x, t_emb, g1, g2, with_attn, num_heads=4):
    eps = 1e-5

    def gn(v, gamma, beta, G):
        B, C, H, W = v.shape
        vg = v.reshape(B, G, -1)
        mean = vg.mean(axis=2, keepdims=True)
        var = vg.var(axis=2, keepdims=True)
        vn = ((vg - mean) / jnp.sqrt(var + eps)).reshape(B, C, H, W)
        return vn * gamma[None, :, None, None] + beta[None, :, None, None]

    def silu(v):
        return v * jax.nn.sigmoid(v)

    def conv3(v, w, b):
        y = jax.lax.conv_general_dilated(
            v, w, (1, 1), "SAME", dimension_numbers=("NCHW", "HWIO", "NCHW"))
        return y + b[None, :, None, None]

    h = silu(gn(x, params["gn1_gamma"], params["gn1_beta"], g1))
    h = conv3(h, params["conv1_w"], params["conv1_b"])
    t = t_emb @ params["time_w"] + params["time_b"]
    h = h + t[:, :, None, None]
    h = silu(gn(h, params["gn2_gamma"], params["gn2_beta"], g2))
    h = conv3(h, params["conv2_w"], params["conv2_b"])
    res = jnp.einsum("bihw,io->bohw", x, params["res_w"])
    h = h + res + params["res_b"][None, :, None, None]

    if with_attn:
        B, C, H, W = h.shape
        N = H * W
        xn = h.reshape(B, C, N).transpose(0, 2, 1)
        qkv = xn @ params["qkv_w"] + params["qkv_b"]
        q, k, v = qkv[..., :C], qkv[..., C:2 * C], qkv[..., 2 * C:]
        d = C // num_heads

        def heads(a):
            return a.reshape(B, N, num_heads, d).transpose(0, 2, 1, 3)

        q, k, v = heads(q), heads(k), heads(v)
        s = jnp.einsum("bhnd,bhmd->bhnm", q, k) * (d ** -0.5)
        p = jax.nn.softmax(s, axis=-1)
        o = jnp.einsum("bhnm,bhmd->bhnd", p, v)
        o = o.transpose(0, 2, 1, 3).reshape(B, N, C)
        o = o @ params["proj_w"] + params["proj_b"]
        h = o.transpose(0, 2, 1).reshape(B, C, H, W)

    B, C, H, W = h.shape
    pooled = h.reshape(B, C, H // 2, 2, W // 2, 2).max(axis=(3, 5))
    return pooled, h


if __name__ == "__main__":
    B, in_c, out_c, time_dim, H, W = 2, 4, 8, 32, 16, 16
    with_attn = True
    num_heads = 4

    key = jax.random.PRNGKey(0)
    kx, kt, kp = jax.random.split(key, 3)
    x = jax.random.normal(kx, (B, in_c, H, W), jnp.float32)   # PyTorch NCHW
    t_emb = jax.random.normal(kt, (B, time_dim), jnp.float32)
    params = init_params(kp, in_c, out_c, time_dim, with_attn, num_heads)

    g1 = get_valid_group(in_c, 8)
    g2 = get_valid_group(out_c, 8)

    fwd = jax.jit(functools.partial(down_block_forward, g1=g1, g2=g2,
                                    with_attn=with_attn, num_heads=num_heads))
    pooled, skip = fwd(params, x, t_emb)
    jax.block_until_ready((pooled, skip))

    pooled_ref, skip_ref = ref_forward(params, x, t_emb, g1, g2,
                                       with_attn, num_heads)
    err = max(float(jnp.max(jnp.abs(pooled - pooled_ref))),
              float(jnp.max(jnp.abs(skip - skip_ref))))
    assert pooled.shape == (B, out_c, H // 2, W // 2)
    assert skip.shape == (B, out_c, H, W)
    assert err < 2e-2, f"max abs err {err}"
    print("KERNEL_OK")
</pallas_src>

<mosaic_0001>
module attributes {stable_mosaic.version = 11 : i64} {
  func.func @kernel(%arg0: i32, %arg1: memref<1x4x256xf32, #tpu.memory_space<vmem>>, %arg2: memref<1x8x1xf32, #tpu.memory_space<vmem>>, %arg3: memref<4x1xf32, #tpu.memory_space<vmem>>, %arg4: memref<4x1xf32, #tpu.memory_space<vmem>>, %arg5: memref<8x72xbf16, #tpu.memory_space<vmem>>, %arg6: memref<8x1xf32, #tpu.memory_space<vmem>>, %arg7: memref<8x1xf32, #tpu.memory_space<vmem>>, %arg8: memref<8x72xbf16, #tpu.memory_space<vmem>>, %arg9: memref<8x1xf32, #tpu.memory_space<vmem>>, %arg10: memref<9x256xf32, #tpu.memory_space<vmem>>, %arg11: memref<256x128xf32, #tpu.memory_space<vmem>>, %arg12: memref<8x4xbf16, #tpu.memory_space<vmem>>, %arg13: memref<24x8xbf16, #tpu.memory_space<vmem>>, %arg14: memref<24x1xf32, #tpu.memory_space<vmem>>, %arg15: memref<8x8xbf16, #tpu.memory_space<vmem>>, %arg16: memref<8x1xf32, #tpu.memory_space<vmem>>, %arg17: memref<1x8x128xf32, #tpu.memory_space<vmem>>, %arg18: memref<1x8x256xf32, #tpu.memory_space<vmem>>, %arg19: memref<72x256xf32, #tpu.memory_space<vmem>>, %arg20: memref<72x256xf32, #tpu.memory_space<vmem>>, %arg21: memref<8x256xf32, #tpu.memory_space<vmem>>) attributes {dimension_semantics = [#tpu.dimension_semantics<parallel>], iteration_bounds = array<i64: 2>, scalar_prefetch = 0 : i64, scratch_operands = 3 : i64, tpu.core_type = #tpu.core_type<tc>, window_params = [{transform_indices = @transform_0, window_bounds = array<i64: 1, 4, 256>}, {transform_indices = @transform_1, window_bounds = array<i64: 1, 8, 1>}, {pipeline_mode = #tpu.pipeline_mode<synchronous>, transform_indices = @transform_2, window_bounds = array<i64: 4, 1>}, {pipeline_mode = #tpu.pipeline_mode<synchronous>, transform_indices = @transform_3, window_bounds = array<i64: 4, 1>}, {pipeline_mode = #tpu.pipeline_mode<synchronous>, transform_indices = @transform_4, window_bounds = array<i64: 8, 72>}, {pipeline_mode = #tpu.pipeline_mode<synchronous>, transform_indices = @transform_5, window_bounds = array<i64: 8, 1>}, {pipeline_mode = #tpu.pipeline_mode<synchronous>, transform_indices = @transform_6, window_bounds = array<i64: 8, 1>}, {pipeline_mode = #tpu.pipeline_mode<synchronous>, transform_indices = @transform_7, window_bounds = array<i64: 8, 72>}, {pipeline_mode = #tpu.pipeline_mode<synchronous>, transform_indices = @transform_8, window_bounds = array<i64: 8, 1>}, {pipeline_mode = #tpu.pipeline_mode<synchronous>, transform_indices = @transform_9, window_bounds = array<i64: 9, 256>}, {pipeline_mode = #tpu.pipeline_mode<synchronous>, transform_indices = @transform_10, window_bounds = array<i64: 256, 128>}, {pipeline_mode = #tpu.pipeline_mode<synchronous>, transform_indices = @transform_11, window_bounds = array<i64: 8, 4>}, {pipeline_mode = #tpu.pipeline_mode<synchronous>, transform_indices = @transform_12, window_bounds = array<i64: 24, 8>}, {pipeline_mode = #tpu.pipeline_mode<synchronous>, transform_indices = @transform_13, window_bounds = array<i64: 24, 1>}, {pipeline_mode = #tpu.pipeline_mode<synchronous>, transform_indices = @transform_14, window_bounds = array<i64: 8, 8>}, {pipeline_mode = #tpu.pipeline_mode<synchronous>, transform_indices = @transform_15, window_bounds = array<i64: 8, 1>}, {transform_indices = @transform_16, window_bounds = array<i64: 1, 8, 128>}, {transform_indices = @transform_17, window_bounds = array<i64: 1, 8, 256>}]} {
    %c0 = arith.constant 0 : index
    %c0_0 = arith.constant 0 : index
    %c0_1 = arith.constant 0 : index
    %0 = vector.load %arg1[%c0, %c0_0, %c0_1] : memref<1x4x256xf32, #tpu.memory_space<vmem>>, vector<1x4x256xf32>
    %1 = vector.shape_cast %0 : vector<1x4x256xf32> to vector<4x256xf32>
    %c0_2 = arith.constant 0 : index
    %c0_3 = arith.constant 0 : index
    %2 = vector.load %arg10[%c0_2, %c0_3] : memref<9x256xf32, #tpu.memory_space<vmem>>, vector<9x256xf32>
    %c0_4 = arith.constant 0 : index
    %c0_5 = arith.constant 0 : index
    %3 = vector.load %arg3[%c0_4, %c0_5] : memref<4x1xf32, #tpu.memory_space<vmem>>, vector<4x1xf32>
    %c0_6 = arith.constant 0 : index
    %c0_7 = arith.constant 0 : index
    %4 = vector.load %arg4[%c0_6, %c0_7] : memref<4x1xf32, #tpu.memory_space<vmem>>, vector<4x1xf32>
    %cst = arith.constant dense<0.000000e+00> : vector<4xf32>
    %5 = vector.multi_reduction <add>, %1, %cst [1] : vector<4x256xf32> to vector<4xf32>
    %6 = vector.shape_cast %5 : vector<4xf32> to vector<4x1xf32>
    %7 = arith.mulf %1, %1 : vector<4x256xf32>
    %cst_8 = arith.constant dense<0.000000e+00> : vector<4xf32>
    %8 = vector.multi_reduction <add>, %7, %cst_8 [1] : vector<4x256xf32> to vector<4xf32>
    %9 = vector.shape_cast %8 : vector<4xf32> to vector<4x1xf32>
    %cst_9 = arith.constant 3.906250e-03 : f32
    %10 = vector.broadcast %cst_9 : f32 to vector<4x1xf32>
    %11 = arith.mulf %6, %10 : vector<4x1xf32>
    %cst_10 = arith.constant 3.906250e-03 : f32
    %12 = vector.broadcast %cst_10 : f32 to vector<4x1xf32>
    %13 = arith.mulf %9, %12 : vector<4x1xf32>
    %14 = arith.mulf %11, %11 : vector<4x1xf32>
    %15 = arith.subf %13, %14 : vector<4x1xf32>
    %cst_11 = arith.constant 0.000000e+00 : f32
    %16 = vector.broadcast %cst_11 : f32 to vector<4x1xf32>
    %17 = arith.maximumf %15, %16 : vector<4x1xf32>
    %cst_12 = arith.constant 9.99999974E-6 : f32
    %18 = vector.broadcast %cst_12 : f32 to vector<4x1xf32>
    %19 = arith.addf %17, %18 : vector<4x1xf32>
    %20 = math.rsqrt %19 : vector<4x1xf32>
    %21 = vector.broadcast %11 : vector<4x1xf32> to vector<4x256xf32>
    %22 = arith.subf %1, %21 : vector<4x256xf32>
    %23 = vector.broadcast %20 : vector<4x1xf32> to vector<4x256xf32>
    %24 = arith.mulf %22, %23 : vector<4x256xf32>
    %25 = vector.broadcast %3 : vector<4x1xf32> to vector<4x256xf32>
    %26 = arith.mulf %24, %25 : vector<4x256xf32>
    %27 = vector.broadcast %4 : vector<4x1xf32> to vector<4x256xf32>
    %28 = arith.addf %26, %27 : vector<4x256xf32>
    %29 = arith.negf %28 : vector<4x256xf32>
    %30 = math.exp %29 : vector<4x256xf32>
    %cst_13 = arith.constant 1.000000e+00 : f32
    %31 = vector.broadcast %cst_13 : f32 to vector<4x256xf32>
    %32 = arith.addf %31, %30 : vector<4x256xf32>
    %33 = arith.divf %31, %32 : vector<4x256xf32>
    %34 = arith.mulf %28, %33 : vector<4x256xf32>
    %c0_14 = arith.constant 0 : index
    %c0_15 = arith.constant 0 : index
    %35 = vector.load %arg5[%c0_14, %c0_15] : memref<8x72xbf16, #tpu.memory_space<vmem>>, vector<8x72xbf16>
    %c0_16 = arith.constant 0 : index
    %c0_17 = arith.constant 0 : index
    %c0_18 = arith.constant 0 : index
    %36 = vector.load %arg2[%c0_16, %c0_17, %c0_18] : memref<1x8x1xf32, #tpu.memory_space<vmem>>, vector<1x8x1xf32>
    %37 = vector.shape_cast %36 : vector<1x8x1xf32> to vector<8x1xf32>
    %cst_19 = arith.constant 0.000000e+00 : f32
    %38 = vector.broadcast %cst_19 : f32 to vector<4x256xf32>
    %39 = tpu.concatenate %34, %38 in 0 : vector<4x256xf32>, vector<4x256xf32> -> vector<8x256xf32>
    %c17_i32 = arith.constant 17 : i32
    %40 = tpu.dynamic_rotate %39 by %c17_i32 dim 1 : vector<8x256xf32>, i32 -> vector<8x256xf32>
    %41 = vector.extract_strided_slice %2 {offsets = [0, 0], sizes = [1, 256], strides = [1, 1]} : vector<9x256xf32> to vector<1x256xf32>
    %42 = vector.broadcast %41 : vector<1x256xf32> to vector<8x256xf32>
    %43 = arith.mulf %40, %42 : vector<8x256xf32>
    %c0_20 = arith.constant 0 : index
    %c0_21 = arith.constant 0 : index
    %44 = vector.load %arg19[%c0_20, %c0_21] : memref<72x256xf32, #tpu.memory_space<vmem>>, vector<8x256xf32>
    tpu.vector_store %arg19[%c0_20, %c0_21], %43 {strides = array<i32>} : memref<72x256xf32, #tpu.memory_space<vmem>>, vector<8x256xf32>,
    %c16_i32 = arith.constant 16 : i32
    %45 = tpu.dynamic_rotate %39 by %c16_i32 dim 1 : vector<8x256xf32>, i32 -> vector<8x256xf32>
    %46 = vector.extract_strided_slice %2 {offsets = [1, 0], sizes = [1, 256], strides = [1, 1]} : vector<9x256xf32> to vector<1x256xf32>
    %47 = vector.broadcast %46 : vector<1x256xf32> to vector<8x256xf32>
    %48 = arith.mulf %45, %47 : vector<8x256xf32>
    %c8 = arith.constant 8 : index
    %c0_22 = arith.constant 0 : index
    %49 = vector.load %arg19[%c8, %c0_22] : memref<72x256xf32, #tpu.memory_space<vmem>>, vector<8x256xf32>
    tpu.vector_store %arg19[%c8, %c0_22], %48 {strides = array<i32>} : memref<72x256xf32, #tpu.memory_space<vmem>>, vector<8x256xf32>,
    %c15_i32 = arith.constant 15 : i32
    %50 = tpu.dynamic_rotate %39 by %c15_i32 dim 1 : vector<8x256xf32>, i32 -> vector<8x256xf32>
    %51 = vector.extract_strided_slice %2 {offsets = [2, 0], sizes = [1, 256], strides = [1, 1]} : vector<9x256xf32> to vector<1x256xf32>
    %52 = vector.broadcast %51 : vector<1x256xf32> to vector<8x256xf32>
    %53 = arith.mulf %50, %52 : vector<8x256xf32>
    %c16 = arith.constant 16 : index
    %c0_23 = arith.constant 0 : index
    %54 = vector.load %arg19[%c16, %c0_23] : memref<72x256xf32, #tpu.memory_space<vmem>>, vector<8x256xf32>
    tpu.vector_store %arg19[%c16, %c0_23], %53 {strides = array<i32>} : memref<72x256xf32, #tpu.memory_space<vmem>>, vector<8x256xf32>,
    %c1_i32 = arith.constant 1 : i32
    %55 = tpu.dynamic_rotate %39 by %c1_i32 dim 1 : vector<8x256xf32>, i32 -> vector<8x256xf32>
    %56 = vector.extract_strided_slice %2 {offsets = [3, 0], sizes = [1, 256], strides = [1, 1]} : vector<9x256xf32> to vector<1x256xf32>
    %57 = vector.broadcast %56 : vector<1x256xf32> to vector<8x256xf32>
    %58 = arith.mulf %55, %57 : vector<8x256xf32>
    %c24 = arith.constant 24 : index
    %c0_24 = arith.constant 0 : index
    %59 = vector.load %arg19[%c24, %c0_24] : memref<72x256xf32, #tpu.memory_space<vmem>>, vector<8x256xf32>
    tpu.vector_store %arg19[%c24, %c0_24], %58 {strides = array<i32>} : memref<72x256xf32, #tpu.memory_space<vmem>>, vector<8x256xf32>,
    %c32 = arith.constant 32 : index
    %c0_25 = arith.constant 0 : index
    %60 = vector.load %arg19[%c32, %c0_25] : memref<72x256xf32, #tpu.memory_space<vmem>>, vector<8x256xf32>
    tpu.vector_store %arg19[%c32, %c0_25], %39 {strides = array<i32>} : memref<72x256xf32, #tpu.memory_space<vmem>>, vector<8x256xf32>,
    %c255_i32 = arith.constant 255 : i32
    %61 = tpu.dynamic_rotate %39 by %c255_i32 dim 1 : vector<8x256xf32>, i32 -> vector<8x256xf32>
    %62 = vector.extract_strided_slice %2 {offsets = [5, 0], sizes = [1, 256], strides = [1, 1]} : vector<9x256xf32> to vector<1x256xf32>
    %63 = vector.broadcast %62 : vector<1x256xf32> to vector<8x256xf32>
    %64 = arith.mulf %61, %63 : vector<8x256xf32>
    %c40 = arith.constant 40 : index
    %c0_26 = arith.constant 0 : index
    %65 = vector.load %arg19[%c40, %c0_26] : memref<72x256xf32, #tpu.memory_space<vmem>>, vector<8x256xf32>
    tpu.vector_store %arg19[%c40, %c0_26], %64 {strides = array<i32>} : memref<72x256xf32, #tpu.memory_space<vmem>>, vector<8x256xf32>,
    %c241_i32 = arith.constant 241 : i32
    %66 = tpu.dynamic_rotate %39 by %c241_i32 dim 1 : vector<8x256xf32>, i32 -> vector<8x256xf32>
    %67 = vector.extract_strided_slice %2 {offsets = [6, 0], sizes = [1, 256], strides = [1, 1]} : vector<9x256xf32> to vector<1x256xf32>
    %68 = vector.broadcast %67 : vector<1x256xf32> to vector<8x256xf32>
    %69 = arith.mulf %66, %68 : vector<8x256xf32>
    %c48 = arith.constant 48 : index
    %c0_27 = arith.constant 0 : index
    %70 = vector.load %arg19[%c48, %c0_27] : memref<72x256xf32, #tpu.memory_space<vmem>>, vector<8x256xf32>
    tpu.vector_store %arg19[%c48, %c0_27], %69 {strides = array<i32>} : memref<72x256xf32, #tpu.memory_space<vmem>>, vector<8x256xf32>,
    %c240_i32 = arith.constant 240 : i32
    %71 = tpu.dynamic_rotate %39 by %c240_i32 dim 1 : vector<8x256xf32>, i32 -> vector<8x256xf32>
    %72 = vector.extract_strided_slice %2 {offsets = [7, 0], sizes = [1, 256], strides = [1, 1]} : vector<9x256xf32> to vector<1x256xf32>
    %73 = vector.broadcast %72 : vector<1x256xf32> to vector<8x256xf32>
    %74 = arith.mulf %71, %73 : vector<8x256xf32>
    %c56 = arith.constant 56 : index
    %c0_28 = arith.constant 0 : index
    %75 = vector.load %arg19[%c56, %c0_28] : memref<72x256xf32, #tpu.memory_space<vmem>>, vector<8x256xf32>
    tpu.vector_store %arg19[%c56, %c0_28], %74 {strides = array<i32>} : memref<72x256xf32, #tpu.memory_space<vmem>>, vector<8x256xf32>,
    %c239_i32 = arith.constant 239 : i32
    %76 = tpu.dynamic_rotate %39 by %c239_i32 dim 1 : vector<8x256xf32>, i32 -> vector<8x256xf32>
    %77 = vector.extract_strided_slice %2 {offsets = [8, 0], sizes = [1, 256], strides = [1, 1]} : vector<9x256xf32> to vector<1x256xf32>
    %78 = vector.broadcast %77 : vector<1x256xf32> to vector<8x256xf32>
    %79 = arith.mulf %76, %78 : vector<8x256xf32>
    %c64 = arith.constant 64 : index
    %c0_29 = arith.constant 0 : index
    %80 = vector.load %arg19[%c64, %c0_29] : memref<72x256xf32, #tpu.memory_space<vmem>>, vector<8x256xf32>
    tpu.vector_store %arg19[%c64, %c0_29], %79 {strides = array<i32>} : memref<72x256xf32, #tpu.memory_space<vmem>>, vector<8x256xf32>,
    %c0_30 = arith.constant 0 : index
    %c0_31 = arith.constant 0 : index
    %81 = vector.load %arg19[%c0_30, %c0_31] : memref<72x256xf32, #tpu.memory_space<vmem>>, vector<72x256xf32>
    %82 = arith.truncf %81 : vector<72x256xf32> to vector<72x256xbf16>
    %cst_32 = arith.constant dense<0.000000e+00> : vector<8x256xf32>
    %83 = tpu.matmul %35, %82, %cst_32 {dimension_numbers = #tpu.dot_dimension_numbers<[1], [0], [0], [1], [0, 0, 1, 1], [], []>} : vector<8x72xbf16>, vector<72x256xbf16>, vector<8x256xf32> -> vector<8x256xf32>
    %84 = vector.broadcast %37 : vector<8x1xf32> to vector<8x256xf32>
    %85 = arith.addf %83, %84 : vector<8x256xf32>
    %c0_33 = arith.constant 0 : index
    %c0_34 = arith.constant 0 : index
    %86 = vector.load %arg6[%c0_33, %c0_34] : memref<8x1xf32, #tpu.memory_space<vmem>>, vector<8x1xf32>
    %c0_35 = arith.constant 0 : index
    %c0_36 = arith.constant 0 : index
    %87 = vector.load %arg7[%c0_35, %c0_36] : memref<8x1xf32, #tpu.memory_space<vmem>>, vector<8x1xf32>
    %cst_37 = arith.constant dense<0.000000e+00> : vector<8xf32>
    %88 = vector.multi_reduction <add>, %85, %cst_37 [1] : vector<8x256xf32> to vector<8xf32>
    %89 = vector.shape_cast %88 : vector<8xf32> to vector<8x1xf32>
    %90 = arith.mulf %85, %85 : vector<8x256xf32>
    %cst_38 = arith.constant dense<0.000000e+00> : vector<8xf32>
    %91 = vector.multi_reduction <add>, %90, %cst_38 [1] : vector<8x256xf32> to vector<8xf32>
    %92 = vector.shape_cast %91 : vector<8xf32> to vector<8x1xf32>
    %cst_39 = arith.constant 3.906250e-03 : f32
    %93 = vector.broadcast %cst_39 : f32 to vector<8x1xf32>
    %94 = arith.mulf %89, %93 : vector<8x1xf32>
    %cst_40 = arith.constant 3.906250e-03 : f32
    %95 = vector.broadcast %cst_40 : f32 to vector<8x1xf32>
    %96 = arith.mulf %92, %95 : vector<8x1xf32>
    %97 = arith.mulf %94, %94 : vector<8x1xf32>
    %98 = arith.subf %96, %97 : vector<8x1xf32>
    %cst_41 = arith.constant 0.000000e+00 : f32
    %99 = vector.broadcast %cst_41 : f32 to vector<8x1xf32>
    %100 = arith.maximumf %98, %99 : vector<8x1xf32>
    %cst_42 = arith.constant 9.99999974E-6 : f32
    %101 = vector.broadcast %cst_42 : f32 to vector<8x1xf32>
    %102 = arith.addf %100, %101 : vector<8x1xf32>
    %103 = math.rsqrt %102 : vector<8x1xf32>
    %104 = vector.broadcast %94 : vector<8x1xf32> to vector<8x256xf32>
    %105 = arith.subf %85, %104 : vector<8x256xf32>
    %106 = vector.broadcast %103 : vector<8x1xf32> to vector<8x256xf32>
    %107 = arith.mulf %105, %106 : vector<8x256xf32>
    %108 = vector.broadcast %86 : vector<8x1xf32> to vector<8x256xf32>
    %109 = arith.mulf %107, %108 : vector<8x256xf32>
    %110 = vector.broadcast %87 : vector<8x1xf32> to vector<8x256xf32>
    %111 = arith.addf %109, %110 : vector<8x256xf32>
    %112 = arith.negf %111 : vector<8x256xf32>
    %113 = math.exp %112 : vector<8x256xf32>
    %cst_43 = arith.constant 1.000000e+00 : f32
    %114 = vector.broadcast %cst_43 : f32 to vector<8x256xf32>
    %115 = arith.addf %114, %113 : vector<8x256xf32>
    %116 = arith.divf %114, %115 : vector<8x256xf32>
    %117 = arith.mulf %111, %116 : vector<8x256xf32>
    %c0_44 = arith.constant 0 : index
    %c0_45 = arith.constant 0 : index
    %118 = vector.load %arg8[%c0_44, %c0_45] : memref<8x72xbf16, #tpu.memory_space<vmem>>, vector<8x72xbf16>
    %c0_46 = arith.constant 0 : index
    %c0_47 = arith.constant 0 : index
    %119 = vector.load %arg9[%c0_46, %c0_47] : memref<8x1xf32, #tpu.memory_space<vmem>>, vector<8x1xf32>
    %c17_i32_48 = arith.constant 17 : i32
    %120 = tpu.dynamic_rotate %117 by %c17_i32_48 dim 1 : vector<8x256xf32>, i32 -> vector<8x256xf32>
    %121 = vector.extract_strided_slice %2 {offsets = [0, 0], sizes = [1, 256], strides = [1, 1]} : vector<9x256xf32> to vector<1x256xf32>
    %122 = vector.broadcast %121 : vector<1x256xf32> to vector<8x256xf32>
    %123 = arith.mulf %120, %122 : vector<8x256xf32>
    %c0_49 = arith.constant 0 : index
    %c0_50 = arith.constant 0 : index
    %124 = vector.load %arg20[%c0_49, %c0_50] : memref<72x256xf32, #tpu.memory_space<vmem>>, vector<8x256xf32>
    tpu.vector_store %arg20[%c0_49, %c0_50], %123 {strides = array<i32>} : memref<72x256xf32, #tpu.memory_space<vmem>>, vector<8x256xf32>,
    %c16_i32_51 = arith.constant 16 : i32
    %125 = tpu.dynamic_rotate %117 by %c16_i32_51 dim 1 : vector<8x256xf32>, i32 -> vector<8x256xf32>
    %126 = vector.extract_strided_slice %2 {offsets = [1, 0], sizes = [1, 256], strides = [1, 1]} : vector<9x256xf32> to vector<1x256xf32>
    %127 = vector.broadcast %126 : vector<1x256xf32> to vector<8x256xf32>
    %128 = arith.mulf %125, %127 : vector<8x256xf32>
    %c8_52 = arith.constant 8 : index
    %c0_53 = arith.constant 0 : index
    %129 = vector.load %arg20[%c8_52, %c0_53] : memref<72x256xf32, #tpu.memory_space<vmem>>, vector<8x256xf32>
    tpu.vector_store %arg20[%c8_52, %c0_53], %128 {strides = array<i32>} : memref<72x256xf32, #tpu.memory_space<vmem>>, vector<8x256xf32>,
    %c15_i32_54 = arith.constant 15 : i32
    %130 = tpu.dynamic_rotate %117 by %c15_i32_54 dim 1 : vector<8x256xf32>, i32 -> vector<8x256xf32>
    %131 = vector.extract_strided_slice %2 {offsets = [2, 0], sizes = [1, 256], strides = [1, 1]} : vector<9x256xf32> to vector<1x256xf32>
    %132 = vector.broadcast %131 : vector<1x256xf32> to vector<8x256xf32>
    %133 = arith.mulf %130, %132 : vector<8x256xf32>
    %c16_55 = arith.constant 16 : index
    %c0_56 = arith.constant 0 : index
    %134 = vector.load %arg20[%c16_55, %c0_56] : memref<72x256xf32, #tpu.memory_space<vmem>>, vector<8x256xf32>
    tpu.vector_store %arg20[%c16_55, %c0_56], %133 {strides = array<i32>} : memref<72x256xf32, #tpu.memory_space<vmem>>, vector<8x256xf32>,
    %c1_i32_57 = arith.constant 1 : i32
    %135 = tpu.dynamic_rotate %117 by %c1_i32_57 dim 1 : vector<8x256xf32>, i32 -> vector<8x256xf32>
    %136 = vector.extract_strided_slice %2 {offsets = [3, 0], sizes = [1, 256], strides = [1, 1]} : vector<9x256xf32> to vector<1x256xf32>
    %137 = vector.broadcast %136 : vector<1x256xf32> to vector<8x256xf32>
    %138 = arith.mulf %135, %137 : vector<8x256xf32>
    %c24_58 = arith.constant 24 : index
    %c0_59 = arith.constant 0 : index
    %139 = vector.load %arg20[%c24_58, %c0_59] : memref<72x256xf32, #tpu.memory_space<vmem>>, vector<8x256xf32>
    tpu.vector_store %arg20[%c24_58, %c0_59], %138 {strides = array<i32>} : memref<72x256xf32, #tpu.memory_space<vmem>>, vector<8x256xf32>,
    %c32_60 = arith.constant 32 : index
    %c0_61 = arith.constant 0 : index
    %140 = vector.load %arg20[%c32_60, %c0_61] : memref<72x256xf32, #tpu.memory_space<vmem>>, vector<8x256xf32>
    tpu.vector_store %arg20[%c32_60, %c0_61], %117 {strides = array<i32>} : memref<72x256xf32, #tpu.memory_space<vmem>>, vector<8x256xf32>,
    %c255_i32_62 = arith.constant 255 : i32
    %141 = tpu.dynamic_rotate %117 by %c255_i32_62 dim 1 : vector<8x256xf32>, i32 -> vector<8x256xf32>
    %142 = vector.extract_strided_slice %2 {offsets = [5, 0], sizes = [1, 256], strides = [1, 1]} : vector<9x256xf32> to vector<1x256xf32>
    %143 = vector.broadcast %142 : vector<1x256xf32> to vector<8x256xf32>
    %144 = arith.mulf %141, %143 : vector<8x256xf32>
    %c40_63 = arith.constant 40 : index
    %c0_64 = arith.constant 0 : index
    %145 = vector.load %arg20[%c40_63, %c0_64] : memref<72x256xf32, #tpu.memory_space<vmem>>, vector<8x256xf32>
    tpu.vector_store %arg20[%c40_63, %c0_64], %144 {strides = array<i32>} : memref<72x256xf32, #tpu.memory_space<vmem>>, vector<8x256xf32>,
    %c241_i32_65 = arith.constant 241 : i32
    %146 = tpu.dynamic_rotate %117 by %c241_i32_65 dim 1 : vector<8x256xf32>, i32 -> vector<8x256xf32>
    %147 = vector.extract_strided_slice %2 {offsets = [6, 0], sizes = [1, 256], strides = [1, 1]} : vector<9x256xf32> to vector<1x256xf32>
    %148 = vector.broadcast %147 : vector<1x256xf32> to vector<8x256xf32>
    %149 = arith.mulf %146, %148 : vector<8x256xf32>
    %c48_66 = arith.constant 48 : index
    %c0_67 = arith.constant 0 : index
    %150 = vector.load %arg20[%c48_66, %c0_67] : memref<72x256xf32, #tpu.memory_space<vmem>>, vector<8x256xf32>
    tpu.vector_store %arg20[%c48_66, %c0_67], %149 {strides = array<i32>} : memref<72x256xf32, #tpu.memory_space<vmem>>, vector<8x256xf32>,
    %c240_i32_68 = arith.constant 240 : i32
    %151 = tpu.dynamic_rotate %117 by %c240_i32_68 dim 1 : vector<8x256xf32>, i32 -> vector<8x256xf32>
    %152 = vector.extract_strided_slice %2 {offsets = [7, 0], sizes = [1, 256], strides = [1, 1]} : vector<9x256xf32> to vector<1x256xf32>
    %153 = vector.broadcast %152 : vector<1x256xf32> to vector<8x256xf32>
    %154 = arith.mulf %151, %153 : vector<8x256xf32>
    %c56_69 = arith.constant 56 : index
    %c0_70 = arith.constant 0 : index
    %155 = vector.load %arg20[%c56_69, %c0_70] : memref<72x256xf32, #tpu.memory_space<vmem>>, vector<8x256xf32>
    tpu.vector_store %arg20[%c56_69, %c0_70], %154 {strides = array<i32>} : memref<72x256xf32, #tpu.memory_space<vmem>>, vector<8x256xf32>,
    %c239_i32_71 = arith.constant 239 : i32
    %156 = tpu.dynamic_rotate %117 by %c239_i32_71 dim 1 : vector<8x256xf32>, i32 -> vector<8x256xf32>
    %157 = vector.extract_strided_slice %2 {offsets = [8, 0], sizes = [1, 256], strides = [1, 1]} : vector<9x256xf32> to vector<1x256xf32>
    %158 = vector.broadcast %157 : vector<1x256xf32> to vector<8x256xf32>
    %159 = arith.mulf %156, %158 : vector<8x256xf32>
    %c64_72 = arith.constant 64 : index
    %c0_73 = arith.constant 0 : index
    %160 = vector.load %arg20[%c64_72, %c0_73] : memref<72x256xf32, #tpu.memory_space<vmem>>, vector<8x256xf32>
    tpu.vector_store %arg20[%c64_72, %c0_73], %159 {strides = array<i32>} : memref<72x256xf32, #tpu.memory_space<vmem>>, vector<8x256xf32>,
    %c0_74 = arith.constant 0 : index
    %c0_75 = arith.constant 0 : index
    %161 = vector.load %arg20[%c0_74, %c0_75] : memref<72x256xf32, #tpu.memory_space<vmem>>, vector<72x256xf32>
    %162 = arith.truncf %161 : vector<72x256xf32> to vector<72x256xbf16>
    %cst_76 = arith.constant dense<0.000000e+00> : vector<8x256xf32>
    %163 = tpu.matmul %118, %162, %cst_76 {dimension_numbers = #tpu.dot_dimension_numbers<[1], [0], [0], [1], [0, 0, 1, 1], [], []>} : vector<8x72xbf16>, vector<72x256xbf16>, vector<8x256xf32> -> vector<8x256xf32>
    %164 = vector.broadcast %119 : vector<8x1xf32> to vector<8x256xf32>
    %165 = arith.addf %163, %164 : vector<8x256xf32>
    %c0_77 = arith.constant 0 : index
    %c0_78 = arith.constant 0 : index
    %166 = vector.load %arg12[%c0_77, %c0_78] : memref<8x4xbf16, #tpu.memory_space<vmem>>, vector<8x4xbf16>
    %167 = arith.truncf %1 : vector<4x256xf32> to vector<4x256xbf16>
    %cst_79 = arith.constant dense<0.000000e+00> : vector<8x256xf32>
    %168 = tpu.matmul %166, %167, %cst_79 {dimension_numbers = #tpu.dot_dimension_numbers<[1], [0], [0], [1], [0, 0, 1, 1], [], []>} : vector<8x4xbf16>, vector<4x256xbf16>, vector<8x256xf32> -> vector<8x256xf32>
    %169 = arith.addf %165, %168 : vector<8x256xf32>
    %c0_80 = arith.constant 0 : index
    %c0_81 = arith.constant 0 : index
    %170 = vector.load %arg13[%c0_80, %c0_81] : memref<24x8xbf16, #tpu.memory_space<vmem>>, vector<24x8xbf16>
    %c0_82 = arith.constant 0 : index
    %c0_83 = arith.constant 0 : index
    %171 = vector.load %arg14[%c0_82, %c0_83] : memref<24x1xf32, #tpu.memory_space<vmem>>, vector<24x1xf32>
    %c0_84 = arith.constant 0 : index
    %c0_85 = arith.constant 0 : index
    %172 = vector.load %arg15[%c0_84, %c0_85] : memref<8x8xbf16, #tpu.memory_space<vmem>>, vector<8x8xbf16>
    %c0_86 = arith.constant 0 : index
    %c0_87 = arith.constant 0 : index
    %173 = vector.load %arg16[%c0_86, %c0_87] : memref<8x1xf32, #tpu.memory_space<vmem>>, vector<8x1xf32>
    %174 = arith.truncf %169 : vector<8x256xf32> to vector<8x256xbf16>
    %cst_88 = arith.constant dense<0.000000e+00> : vector<24x256xf32>
    %175 = tpu.matmul %170, %174, %cst_88 {dimension_numbers = #tpu.dot_dimension_numbers<[1], [0], [0], [1], [0, 0, 1, 1], [], []>} : vector<24x8xbf16>, vector<8x256xbf16>, vector<24x256xf32> -> vector<24x256xf32>
    %176 = vector.broadcast %171 : vector<24x1xf32> to vector<24x256xf32>
    %177 = arith.addf %175, %176 : vector<24x256xf32>
    %178 = vector.extract_strided_slice %177 {offsets = [0, 0], sizes = [8, 256], strides = [1, 1]} : vector<24x256xf32> to vector<8x256xf32>
    %179 = tpu.transpose %178, [1, 0] : vector<8x256xf32> -> vector<256x8xf32>
    %180 = vector.extract_strided_slice %179 {offsets = [0, 0], sizes = [256, 2], strides = [1, 1]} : vector<256x8xf32> to vector<256x2xf32>
    %181 = arith.truncf %180 : vector<256x2xf32> to vector<256x2xbf16>
    %182 = vector.extract_strided_slice %177 {offsets = [8, 0], sizes = [2, 256], strides = [1, 1]} : vector<24x256xf32> to vector<2x256xf32>
    %183 = arith.truncf %182 : vector<2x256xf32> to vector<2x256xbf16>
    %184 = vector.extract_strided_slice %177 {offsets = [16, 0], sizes = [2, 256], strides = [1, 1]} : vector<24x256xf32> to vector<2x256xf32>
    %185 = arith.truncf %184 : vector<2x256xf32> to vector<2x256xbf16>
    %cst_89 = arith.constant dense<0.000000e+00> : vector<256x256xf32>
    %186 = tpu.matmul %181, %183, %cst_89 {dimension_numbers = #tpu.dot_dimension_numbers<[1], [0], [0], [1], [0, 0, 1, 1], [], []>} : vector<256x2xbf16>, vector<2x256xbf16>, vector<256x256xf32> -> vector<256x256xf32>
    %cst_90 = arith.constant 0.707106769 : f32
    %187 = vector.broadcast %cst_90 : f32 to vector<256x256xf32>
    %188 = arith.mulf %186, %187 : vector<256x256xf32>
    %cst_91 = arith.constant dense<0xFF800000> : vector<256xf32>
    %189 = vector.multi_reduction <maximumf>, %188, %cst_91 [1] : vector<256x256xf32> to vector<256xf32>
    %190 = vector.shape_cast %189 : vector<256xf32> to vector<256x1xf32>
    %191 = vector.broadcast %190 : vector<256x1xf32> to vector<256x256xf32>
    %192 = arith.subf %188, %191 : vector<256x256xf32>
    %193 = math.exp %192 : vector<256x256xf32>
    %cst_92 = arith.constant dense<0.000000e+00> : vector<256xf32>
    %194 = vector.multi_reduction <add>, %193, %cst_92 [1] : vector<256x256xf32> to vector<256xf32>
    %195 = vector.shape_cast %194 : vector<256xf32> to vector<256x1xf32>
    %196 = tpu.reciprocal %195 {approx = true} : vector<256x1xf32> -> vector<256x1xf32>
    %197 = vector.broadcast %196 : vector<256x1xf32> to vector<256x256xf32>
    %198 = arith.mulf %193, %197 : vector<256x256xf32>
    %199 = arith.truncf %198 : vector<256x256xf32> to vector<256x256xbf16>
    %cst_93 = arith.constant dense<0.000000e+00> : vector<2x256xf32>
    %200 = tpu.matmul %185, %199, %cst_93 {dimension_numbers = #tpu.dot_dimension_numbers<[1], [1], [0], [0], [0, 0, 1, 0], [], []>} : vector<2x256xbf16>, vector<256x256xbf16>, vector<2x256xf32> -> vector<2x256xf32>
    %c0_94 = arith.constant 0 : index
    %c0_95 = arith.constant 0 : index
    %201 = vector.load %arg21[%c0_94, %c0_95] : memref<8x256xf32, #tpu.memory_space<vmem>>, vector<2x256xf32>
    tpu.vector_store %arg21[%c0_94, %c0_95], %200 {strides = array<i32>} : memref<8x256xf32, #tpu.memory_space<vmem>>, vector<2x256xf32>,
    %202 = vector.extract_strided_slice %179 {offsets = [0, 2], sizes = [256, 2], strides = [1, 1]} : vector<256x8xf32> to vector<256x2xf32>
    %203 = arith.truncf %202 : vector<256x2xf32> to vector<256x2xbf16>
    %204 = vector.extract_strided_slice %177 {offsets = [10, 0], sizes = [2, 256], strides = [1, 1]} : vector<24x256xf32> to vector<2x256xf32>
    %205 = arith.truncf %204 : vector<2x256xf32> to vector<2x256xbf16>
    %206 = vector.extract_strided_slice %177 {offsets = [18, 0], sizes = [2, 256], strides = [1, 1]} : vector<24x256xf32> to vector<2x256xf32>
    %207 = arith.truncf %206 : vector<2x256xf32> to vector<2x256xbf16>
    %cst_96 = arith.constant dense<0.000000e+00> : vector<256x256xf32>
    %208 = tpu.matmul %203, %205, %cst_96 {dimension_numbers = #tpu.dot_dimension_numbers<[1], [0], [0], [1], [0, 0, 1, 1], [], []>} : vector<256x2xbf16>, vector<2x256xbf16>, vector<256x256xf32> -> vector<256x256xf32>
    %cst_97 = arith.constant 0.707106769 : f32
    %209 = vector.broadcast %cst_97 : f32 to vector<256x256xf32>
    %210 = arith.mulf %208, %209 : vector<256x256xf32>
    %cst_98 = arith.constant dense<0xFF800000> : vector<256xf32>
    %211 = vector.multi_reduction <maximumf>, %210, %cst_98 [1] : vector<256x256xf32> to vector<256xf32>
    %212 = vector.shape_cast %211 : vector<256xf32> to vector<256x1xf32>
    %213 = vector.broadcast %212 : vector<256x1xf32> to vector<256x256xf32>
    %214 = arith.subf %210, %213 : vector<256x256xf32>
    %215 = math.exp %214 : vector<256x256xf32>
    %cst_99 = arith.constant dense<0.000000e+00> : vector<256xf32>
    %216 = vector.multi_reduction <add>, %215, %cst_99 [1] : vector<256x256xf32> to vector<256xf32>
    %217 = vector.shape_cast %216 : vector<256xf32> to vector<256x1xf32>
    %218 = tpu.reciprocal %217 {approx = true} : vector<256x1xf32> -> vector<256x1xf32>
    %219 = vector.broadcast %218 : vector<256x1xf32> to vector<256x256xf32>
    %220 = arith.mulf %215, %219 : vector<256x256xf32>
    %221 = arith.truncf %220 : vector<256x256xf32> to vector<256x256xbf16>
    %cst_100 = arith.constant dense<0.000000e+00> : vector<2x256xf32>
    %222 = tpu.matmul %207, %221, %cst_100 {dimension_numbers = #tpu.dot_dimension_numbers<[1], [1], [0], [0], [0, 0, 1, 0], [], []>} : vector<2x256xbf16>, vector<256x256xbf16>, vector<2x256xf32> -> vector<2x256xf32>
    %c2 = arith.constant 2 : index
    %c0_101 = arith.constant 0 : index
    %223 = vector.load %arg21[%c2, %c0_101] : memref<8x256xf32, #tpu.memory_space<vmem>>, vector<2x256xf32>
    tpu.vector_store %arg21[%c2, %c0_101], %222 {strides = array<i32>} : memref<8x256xf32, #tpu.memory_space<vmem>>, vector<2x256xf32>,
    %224 = vector.extract_strided_slice %179 {offsets = [0, 4], sizes = [256, 2], strides = [1, 1]} : vector<256x8xf32> to vector<256x2xf32>
    %225 = arith.truncf %224 : vector<256x2xf32> to vector<256x2xbf16>
    %226 = vector.extract_strided_slice %177 {offsets = [12, 0], sizes = [2, 256], strides = [1, 1]} : vector<24x256xf32> to vector<2x256xf32>
    %227 = arith.truncf %226 : vector<2x256xf32> to vector<2x256xbf16>
    %228 = vector.extract_strided_slice %177 {offsets = [20, 0], sizes = [2, 256], strides = [1, 1]} : vector<24x256xf32> to vector<2x256xf32>
    %229 = arith.truncf %228 : vector<2x256xf32> to vector<2x256xbf16>
    %cst_102 = arith.constant dense<0.000000e+00> : vector<256x256xf32>
    %230 = tpu.matmul %225, %227, %cst_102 {dimension_numbers = #tpu.dot_dimension_numbers<[1], [0], [0], [1], [0, 0, 1, 1], [], []>} : vector<256x2xbf16>, vector<2x256xbf16>, vector<256x256xf32> -> vector<256x256xf32>
    %cst_103 = arith.constant 0.707106769 : f32
    %231 = vector.broadcast %cst_103 : f32 to vector<256x256xf32>
    %232 = arith.mulf %230, %231 : vector<256x256xf32>
    %cst_104 = arith.constant dense<0xFF800000> : vector<256xf32>
    %233 = vector.multi_reduction <maximumf>, %232, %cst_104 [1] : vector<256x256xf32> to vector<256xf32>
    %234 = vector.shape_cast %233 : vector<256xf32> to vector<256x1xf32>
    %235 = vector.broadcast %234 : vector<256x1xf32> to vector<256x256xf32>
    %236 = arith.subf %232, %235 : vector<256x256xf32>
    %237 = math.exp %236 : vector<256x256xf32>
    %cst_105 = arith.constant dense<0.000000e+00> : vector<256xf32>
    %238 = vector.multi_reduction <add>, %237, %cst_105 [1] : vector<256x256xf32> to vector<256xf32>
    %239 = vector.shape_cast %238 : vector<256xf32> to vector<256x1xf32>
    %240 = tpu.reciprocal %239 {approx = true} : vector<256x1xf32> -> vector<256x1xf32>
    %241 = vector.broadcast %240 : vector<256x1xf32> to vector<256x256xf32>
    %242 = arith.mulf %237, %241 : vector<256x256xf32>
    %243 = arith.truncf %242 : vector<256x256xf32> to vector<256x256xbf16>
    %cst_106 = arith.constant dense<0.000000e+00> : vector<2x256xf32>
    %244 = tpu.matmul %229, %243, %cst_106 {dimension_numbers = #tpu.dot_dimension_numbers<[1], [1], [0], [0], [0, 0, 1, 0], [], []>} : vector<2x256xbf16>, vector<256x256xbf16>, vector<2x256xf32> -> vector<2x256xf32>
    %c4 = arith.constant 4 : index
    %c0_107 = arith.constant 0 : index
    %245 = vector.load %arg21[%c4, %c0_107] : memref<8x256xf32, #tpu.memory_space<vmem>>, vector<2x256xf32>
    tpu.vector_store %arg21[%c4, %c0_107], %244 {strides = array<i32>} : memref<8x256xf32, #tpu.memory_space<vmem>>, vector<2x256xf32>,
    %246 = vector.extract_strided_slice %179 {offsets = [0, 6], sizes = [256, 2], strides = [1, 1]} : vector<256x8xf32> to vector<256x2xf32>
    %247 = arith.truncf %246 : vector<256x2xf32> to vector<256x2xbf16>
    %248 = vector.extract_strided_slice %177 {offsets = [14, 0], sizes = [2, 256], strides = [1, 1]} : vector<24x256xf32> to vector<2x256xf32>
    %249 = arith.truncf %248 : vector<2x256xf32> to vector<2x256xbf16>
    %250 = vector.extract_strided_slice %177 {offsets = [22, 0], sizes = [2, 256], strides = [1, 1]} : vector<24x256xf32> to vector<2x256xf32>
    %251 = arith.truncf %250 : vector<2x256xf32> to vector<2x256xbf16>
    %cst_108 = arith.constant dense<0.000000e+00> : vector<256x256xf32>
    %252 = tpu.matmul %247, %249, %cst_108 {dimension_numbers = #tpu.dot_dimension_numbers<[1], [0], [0], [1], [0, 0, 1, 1], [], []>} : vector<256x2xbf16>, vector<2x256xbf16>, vector<256x256xf32> -> vector<256x256xf32>
    %cst_109 = arith.constant 0.707106769 : f32
    %253 = vector.broadcast %cst_109 : f32 to vector<256x256xf32>
    %254 = arith.mulf %252, %253 : vector<256x256xf32>
    %cst_110 = arith.constant dense<0xFF800000> : vector<256xf32>
    %255 = vector.multi_reduction <maximumf>, %254, %cst_110 [1] : vector<256x256xf32> to vector<256xf32>
    %256 = vector.shape_cast %255 : vector<256xf32> to vector<256x1xf32>
    %257 = vector.broadcast %256 : vector<256x1xf32> to vector<256x256xf32>
    %258 = arith.subf %254, %257 : vector<256x256xf32>
    %259 = math.exp %258 : vector<256x256xf32>
    %cst_111 = arith.constant dense<0.000000e+00> : vector<256xf32>
    %260 = vector.multi_reduction <add>, %259, %cst_111 [1] : vector<256x256xf32> to vector<256xf32>
    %261 = vector.shape_cast %260 : vector<256xf32> to vector<256x1xf32>
    %262 = tpu.reciprocal %261 {approx = true} : vector<256x1xf32> -> vector<256x1xf32>
    %263 = vector.broadcast %262 : vector<256x1xf32> to vector<256x256xf32>
    %264 = arith.mulf %259, %263 : vector<256x256xf32>
    %265 = arith.truncf %264 : vector<256x256xf32> to vector<256x256xbf16>
    %cst_112 = arith.constant dense<0.000000e+00> : vector<2x256xf32>
    %266 = tpu.matmul %251, %265, %cst_112 {dimension_numbers = #tpu.dot_dimension_numbers<[1], [1], [0], [0], [0, 0, 1, 0], [], []>} : vector<2x256xbf16>, vector<256x256xbf16>, vector<2x256xf32> -> vector<2x256xf32>
    %c6 = arith.constant 6 : index
    %c0_113 = arith.constant 0 : index
    %267 = vector.load %arg21[%c6, %c0_113] : memref<8x256xf32, #tpu.memory_space<vmem>>, vector<2x256xf32>
    tpu.vector_store %arg21[%c6, %c0_113], %266 {strides = array<i32>} : memref<8x256xf32, #tpu.memory_space<vmem>>, vector<2x256xf32>,
    %c0_114 = arith.constant 0 : index
    %c0_115 = arith.constant 0 : index
    %268 = vector.load %arg21[%c0_114, %c0_115] : memref<8x256xf32, #tpu.memory_space<vmem>>, vector<8x256xf32>
    %269 = arith.truncf %268 : vector<8x256xf32> to vector<8x256xbf16>
    %cst_116 = arith.constant dense<0.000000e+00> : vector<8x256xf32>
    %270 = tpu.matmul %172, %269, %cst_116 {dimension_numbers = #tpu.dot_dimension_numbers<[1], [0], [0], [1], [0, 0, 1, 1], [], []>} : vector<8x8xbf16>, vector<8x256xbf16>, vector<8x256xf32> -> vector<8x256xf32>
    %271 = vector.broadcast %173 : vector<8x1xf32> to vector<8x256xf32>
    %272 = arith.addf %270, %271 : vector<8x256xf32>
    %c0_117 = arith.constant 0 : index
    %c0_118 = arith.constant 0 : index
    %c0_119 = arith.constant 0 : index
    %273 = vector.load %arg18[%c0_117, %c0_118, %c0_119] : memref<1x8x256xf32, #tpu.memory_space<vmem>>, vector<1x8x256xf32>
    %274 = vector.shape_cast %273 : vector<1x8x256xf32> to vector<8x256xf32>
    %275 = vector.shape_cast %272 : vector<8x256xf32> to vector<1x8x256xf32>
    tpu.vector_store %arg18[%c0_117, %c0_118, %c0_119], %275 {strides = array<i32>} : memref<1x8x256xf32, #tpu.memory_space<vmem>>, vector<1x8x256xf32>,
    %c0_120 = arith.constant 0 : index
    %c0_121 = arith.constant 0 : index
    %276 = vector.load %arg11[%c0_120, %c0_121] : memref<256x128xf32, #tpu.memory_space<vmem>>, vector<256x128xf32>
    %c255_i32_122 = arith.constant 255 : i32
    %277 = tpu.dynamic_rotate %272 by %c255_i32_122 dim 1 : vector<8x256xf32>, i32 -> vector<8x256xf32>
    %278 = arith.maximumf %272, %277 : vector<8x256xf32>
    %c240_i32_123 = arith.constant 240 : i32
    %279 = tpu.dynamic_rotate %278 by %c240_i32_123 dim 1 : vector<8x256xf32>, i32 -> vector<8x256xf32>
    %280 = arith.maximumf %278, %279 : vector<8x256xf32>
    %cst_124 = arith.constant dense<0.000000e+00> : vector<8x128xf32>
    %281 = tpu.matmul %280, %276, %cst_124 {dimension_numbers = #tpu.dot_dimension_numbers<[1], [0], [0], [1], [0, 0, 1, 1], [], []>} : vector<8x256xf32>, vector<256x128xf32>, vector<8x128xf32> -> vector<8x128xf32>
    %c0_125 = arith.constant 0 : index
    %c0_126 = arith.constant 0 : index
    %c0_127 = arith.constant 0 : index
    %282 = vector.load %arg17[%c0_125, %c0_126, %c0_127] : memref<1x8x128xf32, #tpu.memory_space<vmem>>, vector<1x8x128xf32>
    %283 = vector.shape_cast %282 : vector<1x8x128xf32> to vector<8x128xf32>
    %284 = vector.shape_cast %281 : vector<8x128xf32> to vector<1x8x128xf32>
    tpu.vector_store %arg17[%c0_125, %c0_126, %c0_127], %284 {strides = array<i32>} : memref<1x8x128xf32, #tpu.memory_space<vmem>>, vector<1x8x128xf32>,
    return
  }
  func.func @transform_0(%arg0: i32) -> (i32, i32, i32) {
    %c0_i32 = arith.constant 0 : i32
    %c0_i32_0 = arith.constant 0 : i32
    %c0_i32_1 = arith.constant 0 : i32
    return %arg0, %c0_i32, %c0_i32_0 : i32, i32, i32
  }
  func.func @transform_1(%arg0: i32) -> (i32, i32, i32) {
    %c0_i32 = arith.constant 0 : i32
    %c0_i32_0 = arith.constant 0 : i32
    %c0_i32_1 = arith.constant 0 : i32
    return %arg0, %c0_i32, %c0_i32_0 : i32, i32, i32
  }
  func.func @transform_2(%arg0: i32) -> (i32, i32) {
    %c0_i32 = arith.constant 0 : i32
    %c0_i32_0 = arith.constant 0 : i32
    %c0_i32_1 = arith.constant 0 : i32
    return %c0_i32, %c0_i32_0 : i32, i32
  }
  func.func @transform_3(%arg0: i32) -> (i32, i32) {
    %c0_i32 = arith.constant 0 : i32
    %c0_i32_0 = arith.constant 0 : i32
    %c0_i32_1 = arith.constant 0 : i32
    return %c0_i32, %c0_i32_0 : i32, i32
  }
  func.func @transform_4(%arg0: i32) -> (i32, i32) {
    %c0_i32 = arith.constant 0 : i32
    %c0_i32_0 = arith.constant 0 : i32
    %c0_i32_1 = arith.constant 0 : i32
    return %c0_i32, %c0_i32_0 : i32, i32
  }
  func.func @transform_5(%arg0: i32) -> (i32, i32) {
    %c0_i32 = arith.constant 0 : i32
    %c0_i32_0 = arith.constant 0 : i32
    %c0_i32_1 = arith.constant 0 : i32
    return %c0_i32, %c0_i32_0 : i32, i32
  }
  func.func @transform_6(%arg0: i32) -> (i32, i32) {
    %c0_i32 = arith.constant 0 : i32
    %c0_i32_0 = arith.constant 0 : i32
    %c0_i32_1 = arith.constant 0 : i32
    return %c0_i32, %c0_i32_0 : i32, i32
  }
  func.func @transform_7(%arg0: i32) -> (i32, i32) {
    %c0_i32 = arith.constant 0 : i32
    %c0_i32_0 = arith.constant 0 : i32
    %c0_i32_1 = arith.constant 0 : i32
    return %c0_i32, %c0_i32_0 : i32, i32
  }
  func.func @transform_8(%arg0: i32) -> (i32, i32) {
    %c0_i32 = arith.constant 0 : i32
    %c0_i32_0 = arith.constant 0 : i32
    %c0_i32_1 = arith.constant 0 : i32
    return %c0_i32, %c0_i32_0 : i32, i32
  }
  func.func @transform_9(%arg0: i32) -> (i32, i32) {
    %c0_i32 = arith.constant 0 : i32
    %c0_i32_0 = arith.constant 0 : i32
    %c0_i32_1 = arith.constant 0 : i32
    return %c0_i32, %c0_i32_0 : i32, i32
  }
  func.func @transform_10(%arg0: i32) -> (i32, i32) {
    %c0_i32 = arith.constant 0 : i32
    %c0_i32_0 = arith.constant 0 : i32
    %c0_i32_1 = arith.constant 0 : i32
    return %c0_i32, %c0_i32_0 : i32, i32
  }
  func.func @transform_11(%arg0: i32) -> (i32, i32) {
    %c0_i32 = arith.constant 0 : i32
    %c0_i32_0 = arith.constant 0 : i32
    %c0_i32_1 = arith.constant 0 : i32
    return %c0_i32, %c0_i32_0 : i32, i32
  }
  func.func @transform_12(%arg0: i32) -> (i32, i32) {
    %c0_i32 = arith.constant 0 : i32
    %c0_i32_0 = arith.constant 0 : i32
    %c0_i32_1 = arith.constant 0 : i32
    return %c0_i32, %c0_i32_0 : i32, i32
  }
  func.func @transform_13(%arg0: i32) -> (i32, i32) {
    %c0_i32 = arith.constant 0 : i32
    %c0_i32_0 = arith.constant 0 : i32
    %c0_i32_1 = arith.constant 0 : i32
    return %c0_i32, %c0_i32_0 : i32, i32
  }
  func.func @transform_14(%arg0: i32) -> (i32, i32) {
    %c0_i32 = arith.constant 0 : i32
    %c0_i32_0 = arith.constant 0 : i32
    %c0_i32_1 = arith.constant 0 : i32
    return %c0_i32, %c0_i32_0 : i32, i32
  }
  func.func @transform_15(%arg0: i32) -> (i32, i32) {
    %c0_i32 = arith.constant 0 : i32
    %c0_i32_0 = arith.constant 0 : i32
    %c0_i32_1 = arith.constant 0 : i32
    return %c0_i32, %c0_i32_0 : i32, i32
  }
  func.func @transform_16(%arg0: i32) -> (i32, i32, i32) {
    %c0_i32 = arith.constant 0 : i32
    %c0_i32_0 = arith.constant 0 : i32
    %c0_i32_1 = arith.constant 0 : i32
    return %arg0, %c0_i32, %c0_i32_0 : i32, i32, i32
  }
  func.func @transform_17(%arg0: i32) -> (i32, i32, i32) {
    %c0_i32 = arith.constant 0 : i32
    %c0_i32_0 = arith.constant 0 : i32
    %c0_i32_1 = arith.constant 0 : i32
    return %arg0, %c0_i32, %c0_i32_0 : i32, i32, i32
  }
}

</mosaic_0001>

<llo_original>
// kernel: down_block_forward.1
$region0: #{down_block_forward.1}
  #allocation0 [shape = 'u32[]', space=smem, size = 0x4, offset = 0x4, fixed_abs, tag = 'smem constant byte address 0x4 - core index']
  #allocation1 [shape = 'u32[72,128]{1,0:T(1,128)}', space=vmem, size = 0x9000, scoped, tag = 'internal scratch']
  #allocation2 [shape = 'f32[72,256]{1,0:T(8,128)}', space=vmem, size = 0x12000, scoped, tag = 'scratch operand']
  #allocation3 [shape = 'f32[72,256]{1,0:T(8,128)}', space=vmem, size = 0x12000, scoped, tag = 'scratch operand']
  #allocation4 [shape = 'f32[8,256]{1,0:T(8,128)}', space=vmem, size = 0x2000, scoped, tag = 'scratch operand']
  %s0 = inlined_call_operand.vmem [shape: f32[2,4,256], index: 0, kind: input, shape index: {}]
  %s1 = inlined_call_operand.vmem [shape: f32[2,8,1], index: 1, kind: input, shape index: {}]
  %s2 = inlined_call_operand.vmem [shape: f32[4,1], index: 2, kind: input, shape index: {}]
  %s3 = inlined_call_operand.vmem [shape: f32[4,1], index: 3, kind: input, shape index: {}]
  %s4 = inlined_call_operand.vmem [shape: bf16[8,72], index: 4, kind: input, shape index: {}]
  %s5 = inlined_call_operand.vmem [shape: f32[8,1], index: 5, kind: input, shape index: {}]
  %s6 = inlined_call_operand.vmem [shape: f32[8,1], index: 6, kind: input, shape index: {}]
  %s7 = inlined_call_operand.vmem [shape: bf16[8,72], index: 7, kind: input, shape index: {}]
  %s8 = inlined_call_operand.vmem [shape: f32[8,1], index: 8, kind: input, shape index: {}]
  %s9 = inlined_call_operand.vmem [shape: f32[9,256], index: 9, kind: input, shape index: {}]
  %s10 = inlined_call_operand.vmem [shape: f32[256,128], index: 10, kind: input, shape index: {}]
  %s11 = inlined_call_operand.vmem [shape: bf16[8,4], index: 11, kind: input, shape index: {}]
  %s12 = inlined_call_operand.vmem [shape: bf16[24,8], index: 12, kind: input, shape index: {}]
  %s13 = inlined_call_operand.vmem [shape: f32[24,1], index: 13, kind: input, shape index: {}]
  %s14 = inlined_call_operand.vmem [shape: bf16[8,8], index: 14, kind: input, shape index: {}]
  %s15 = inlined_call_operand.vmem [shape: f32[8,1], index: 15, kind: input, shape index: {}]
  %s16 = inlined_call_operand.vmem [shape: f32[2,8,128], index: 16, kind: output, shape index: {0}]
  %s17 = inlined_call_operand.vmem [shape: f32[2,8,256], index: 17, kind: output, shape index: {1}]
  %18 = xla_tuple %s16, %s17
  %s19 = sld [smem:[#allocation0]]
  $region105: #{down_block_forward.1} parent=0
    _
  %s21 = ssub.s32 1, %s19
  %s22 = scalar_select 0, %s21, %s19
  loop: start=0, step=1, limit=4
  $region2: #{down_block_forward.1} parent=0 // loop_pre_header
    _
  $region3: #{down_block_forward.1} parent=0 // loop_header
    %s24 = sphi 0, %s28
    %p25 = scmp.ge.s32.totalorder %s24, 4
    %s34 = sphi 0, %s36
    %s37 = sphi 0, %s34
    %s38 = sphi 0, %s37
    %s54 = sphi 0, %s38
    %s60 = sphi 0, %s62
    %s63 = sphi 0, %s60
    %s64 = sphi 0, %s63
    %s80 = sphi 0, %s64
    %s84 = sphi 0, %s84
    %s86 = sphi 0, %s84
    %s87 = sphi 0, %s86
    %s101 = sphi 0, %s87
    %s105 = sphi 0, %s105
    %s107 = sphi 0, %s105
    %s108 = sphi 0, %s107
    %s122 = sphi 0, %s108
    %s126 = sphi 0, %s126
    %s128 = sphi 0, %s126
    %s129 = sphi 0, %s128
    %s143 = sphi 0, %s129
    %s147 = sphi 0, %s147
    %s149 = sphi 0, %s147
    %s150 = sphi 0, %s149
    %s164 = sphi 0, %s150
    %s168 = sphi 0, %s168
    %s170 = sphi 0, %s168
    %s171 = sphi 0, %s170
    %s185 = sphi 0, %s171
    %s189 = sphi 0, %s189
    %s191 = sphi 0, %s189
    %s192 = sphi 0, %s191
    %s206 = sphi 0, %s192
    %s210 = sphi 0, %s210
    %s212 = sphi 0, %s210
    %s213 = sphi 0, %s212
    %s227 = sphi 0, %s213
    %s231 = sphi 0, %s231
    %s233 = sphi 0, %s231
    %s234 = sphi 0, %s233
    %s248 = sphi 0, %s234
    %s252 = sphi 0, %s252
    %s254 = sphi 0, %s252
    %s255 = sphi 0, %s254
    %s269 = sphi 0, %s255
    %s273 = sphi 0, %s273
    %s275 = sphi 0, %s273
    %s276 = sphi 0, %s275
    %s290 = sphi 0, %s276
    %s294 = sphi 0, %s294
    %s296 = sphi 0, %s294
    %s297 = sphi 0, %s296
    %s311 = sphi 0, %s297
    %s315 = sphi 0, %s315
    %s317 = sphi 0, %s315
    %s318 = sphi 0, %s317
    %s332 = sphi 0, %s318
    %s336 = sphi 0, %s336
    %s338 = sphi 0, %s336
    %s339 = sphi 0, %s338
    %s353 = sphi 0, %s339
    %s357 = sphi 0, %s357
    %s359 = sphi 0, %s357
    %s360 = sphi 0, %s359
    %s374 = sphi 0, %s360
    %s380 = sphi 0, %s382
    %s383 = sphi 0, %s380
    %s384 = sphi 0, %s383
    %s400 = sphi 0, %s384
    %s406 = sphi 0, %s408
    %s409 = sphi 0, %s406
    %s410 = sphi 0, %s409
    %s426 = sphi 0, %s410
  $region4: #{down_block_forward.1} parent=0 // loop_header_branch
    %27 = sbr.rel (%p25) target = $region8
  $region5: #{down_block_forward.1} parent=0 // loop_body
    %s29 = ssub.s32 %s24, 1
    %s30 = ssub.s32 %s24, 2
    %s31 = sadd.s32 %s24, 1
    %s32 = ssub.s32 %s24, %s31
    %p33 = scmp.eq.s32.totalorder %s32, 0
    %s35 = sadd.s32 %s34, 1
    %s36 = scalar_select %p33, %s34, %s35
    %p39 = pneg %p33
    %p40 = scmp.eq.s32.totalorder %s24, 1
    %p41 = por %p39, %p40
    %p42 = scmp.ne.s32.totalorder %s34, %s37
    %p43 = scmp.eq.s32.totalorder %s24, 0
    %p44 = por %p42, %p43
    %p45 = scmp.ne.s32.totalorder %s34, %s37
    %p46 = scmp.eq.s32.totalorder %s29, 1
    %p47 = por %p45, %p46
    %p48 = scmp.ne.s32.totalorder %s37, %s38
    %p49 = scmp.eq.s32.totalorder %s29, 0
    %p50 = por %p48, %p49
    %p51 = scmp.ne.s32.totalorder %s37, %s38
    %p52 = scmp.eq.s32.totalorder %s30, 1
    %p53 = por %p51, %p52
    %p55 = scmp.ne.s32.totalorder %s38, %s54
    %p56 = scmp.eq.s32.totalorder %s30, 0
    %p57 = por %p55, %p56
    %s58 = ssub.s32 %s24, %s31
    %p59 = scmp.eq.s32.totalorder %s58, 0
    %s61 = sadd.s32 %s60, 1
    %s62 = scalar_select %p59, %s60, %s61
    %p65 = pneg %p59
    %p66 = scmp.eq.s32.totalorder %s24, 1
    %p67 = por %p65, %p66
    %p68 = scmp.ne.s32.totalorder %s60, %s63
    %p69 = scmp.eq.s32.totalorder %s24, 0
    %p70 = por %p68, %p69
    %p71 = scmp.ne.s32.totalorder %s60, %s63
    %p72 = scmp.eq.s32.totalorder %s29, 1
    %p73 = por %p71, %p72
    %p74 = scmp.ne.s32.totalorder %s63, %s64
    %p75 = scmp.eq.s32.totalorder %s29, 0
    %p76 = por %p74, %p75
    %p77 = scmp.ne.s32.totalorder %s63, %s64
    %p78 = scmp.eq.s32.totalorder %s30, 1
    %p79 = por %p77, %p78
    %p81 = scmp.ne.s32.totalorder %s64, %s80
    %p82 = scmp.eq.s32.totalorder %s30, 0
    %p83 = por %p81, %p82
    %s85 = sadd.s32 %s84, 1
    %p88 = scmp.eq.s32.totalorder %s24, 1
    %p89 = scmp.ne.s32.totalorder %s84, %s86
    %p90 = scmp.eq.s32.totalorder %s24, 0
    %p91 = por %p89, %p90
    %p92 = scmp.ne.s32.totalorder %s84, %s86
    %p93 = scmp.eq.s32.totalorder %s29, 1
    %p94 = por %p92, %p93
    %p95 = scmp.ne.s32.totalorder %s86, %s87
    %p96 = scmp.eq.s32.totalorder %s29, 0
    %p97 = por %p95, %p96
    %p98 = scmp.ne.s32.totalorder %s86, %s87
    %p99 = scmp.eq.s32.totalorder %s30, 1
    %p100 = por %p98, %p99
    %p102 = scmp.ne.s32.totalorder %s87, %s101
    %p103 = scmp.eq.s32.totalorder %s30, 0
    %p104 = por %p102, %p103
    %s106 = sadd.s32 %s105, 1
    %p109 = scmp.eq.s32.totalorder %s24, 1
    %p110 = scmp.ne.s32.totalorder %s105, %s107
    %p111 = scmp.eq.s32.totalorder %s24, 0
    %p112 = por %p110, %p111
    %p113 = scmp.ne.s32.totalorder %s105, %s107
    %p114 = scmp.eq.s32.totalorder %s29, 1
    %p115 = por %p113, %p114
    %p116 = scmp.ne.s32.totalorder %s107, %s108
    %p117 = scmp.eq.s32.totalorder %s29, 0
    %p118 = por %p116, %p117
    %p119 = scmp.ne.s32.totalorder %s107, %s108
    %p120 = scmp.eq.s32.totalorder %s30, 1
    %p121 = por %p119, %p120
    %p123 = scmp.ne.s32.totalorder %s108, %s122
    %p124 = scmp.eq.s32.totalorder %s30, 0
    %p125 = por %p123, %p124
    %s127 = sadd.s32 %s126, 1
    %p130 = scmp.eq.s32.totalorder %s24, 1
    %p131 = scmp.ne.s32.totalorder %s126, %s128
    %p132 = scmp.eq.s32.totalorder %s24, 0
    %p133 = por %p131, %p132
    %p134 = scmp.ne.s32.totalorder %s126, %s128
    %p135 = scmp.eq.s32.totalorder %s29, 1
    %p136 = por %p134, %p135
    %p137 = scmp.ne.s32.totalorder %s128, %s129
    %p138 = scmp.eq.s32.totalorder %s29, 0
    %p139 = por %p137, %p138
    %p140 = scmp.ne.s32.totalorder %s128, %s129
    %p141 = scmp.eq.s32.totalorder %s30, 1
    %p142 = por %p140, %p141
    %p144 = scmp.ne.s32.totalorder %s129, %s143
    %p145 = scmp.eq.s32.totalorder %s30, 0
    %p146 = por %p144, %p145
    %s148 = sadd.s32 %s147, 1
    %p151 = scmp.eq.s32.totalorder %s24, 1
    %p152 = scmp.ne.s32.totalorder %s147, %s149
    %p153 = scmp.eq.s32.totalorder %s24, 0
    %p154 = por %p152, %p153
    %p155 = scmp.ne.s32.totalorder %s147, %s149
    %p156 = scmp.eq.s32.totalorder %s29, 1
    %p157 = por %p155, %p156
    %p158 = scmp.ne.s32.totalorder %s149, %s150
    %p159 = scmp.eq.s32.totalorder %s29, 0
    %p160 = por %p158, %p159
    %p161 = scmp.ne.s32.totalorder %s149, %s150
    %p162 = scmp.eq.s32.totalorder %s30, 1
    %p163 = por %p161, %p162
    %p165 = scmp.ne.s32.totalorder %s150, %s164
    %p166 = scmp.eq.s32.totalorder %s30, 0
    %p167 = por %p165, %p166
    %s169 = sadd.s32 %s168, 1
    %p172 = scmp.eq.s32.totalorder %s24, 1
    %p173 = scmp.ne.s32.totalorder %s168, %s170
    %p174 = scmp.eq.s32.totalorder %s24, 0
    %p175 = por %p173, %p174
    %p176 = scmp.ne.s32.totalorder %s168, %s170
    %p177 = scmp.eq.s32.totalorder %s29, 1
    %p178 = por %p176, %p177
    %p179 = scmp.ne.s32.totalorder %s170, %s171
    %p180 = scmp.eq.s32.totalorder %s29, 0
    %p181 = por %p179, %p180
    %p182 = scmp.ne.s32.totalorder %s170, %s171
    %p183 = scmp.eq.s32.totalorder %s30, 1
    %p184 = por %p182, %p183
    %p186 = scmp.ne.s32.totalorder %s171, %s185
    %p187 = scmp.eq.s32.totalorder %s30, 0
    %p188 = por %p186, %p187
    %s190 = sadd.s32 %s189, 1
    %p193 = scmp.eq.s32.totalorder %s24, 1
    %p194 = scmp.ne.s32.totalorder %s189, %s191
    %p195 = scmp.eq.s32.totalorder %s24, 0
    %p196 = por %p194, %p195
    %p197 = scmp.ne.s32.totalorder %s189, %s191
    %p198 = scmp.eq.s32.totalorder %s29, 1
    %p199 = por %p197, %p198
    %p200 = scmp.ne.s32.totalorder %s191, %s192
    %p201 = scmp.eq.s32.totalorder %s29, 0
    %p202 = por %p200, %p201
    %p203 = scmp.ne.s32.totalorder %s191, %s192
    %p204 = scmp.eq.s32.totalorder %s30, 1
    %p205 = por %p203, %p204
    %p207 = scmp.ne.s32.totalorder %s192, %s206
    %p208 = scmp.eq.s32.totalorder %s30, 0
    %p209 = por %p207, %p208
    %s211 = sadd.s32 %s210, 1
    %p214 = scmp.eq.s32.totalorder %s24, 1
    %p215 = scmp.ne.s32.totalorder %s210, %s212
    %p216 = scmp.eq.s32.totalorder %s24, 0
    %p217 = por %p215, %p216
    %p218 = scmp.ne.s32.totalorder %s210, %s212
    %p219 = scmp.eq.s32.totalorder %s29, 1
    %p220 = por %p218, %p219
    %p221 = scmp.ne.s32.totalorder %s212, %s213
    %p222 = scmp.eq.s32.totalorder %s29, 0
    %p223 = por %p221, %p222
    %p224 = scmp.ne.s32.totalorder %s212, %s213
    %p225 = scmp.eq.s32.totalorder %s30, 1
    %p226 = por %p224, %p225
    %p228 = scmp.ne.s32.totalorder %s213, %s227
    %p229 = scmp.eq.s32.totalorder %s30, 0
    %p230 = por %p228, %p229
    %s232 = sadd.s32 %s231, 1
    %p235 = scmp.eq.s32.totalorder %s24, 1
    %p236 = scmp.ne.s32.totalorder %s231, %s233
    %p237 = scmp.eq.s32.totalorder %s24, 0
    %p238 = por %p236, %p237
    %p239 = scmp.ne.s32.totalorder %s231, %s233
    %p240 = scmp.eq.s32.totalorder %s29, 1
    %p241 = por %p239, %p240
    %p242 = scmp.ne.s32.totalorder %s233, %s234
    %p243 = scmp.eq.s32.totalorder %s29, 0
    %p244 = por %p242, %p243
    %p245 = scmp.ne.s32.totalorder %s233, %s234
    %p246 = scmp.eq.s32.totalorder %s30, 1
    %p247 = por %p245, %p246
    %p249 = scmp.ne.s32.totalorder %s234, %s248
    %p250 = scmp.eq.s32.totalorder %s30, 0
    %p251 = por %p249, %p250
    %s253 = sadd.s32 %s252, 1
    %p256 = scmp.eq.s32.totalorder %s24, 1
    %p257 = scmp.ne.s32.totalorder %s252, %s254
    %p258 = scmp.eq.s32.totalorder %s24, 0
    %p259 = por %p257, %p258
    %p260 = scmp.ne.s32.totalorder %s252, %s254
    %p261 = scmp.eq.s32.totalorder %s29, 1
    %p262 = por %p260, %p261
    %p263 = scmp.ne.s32.totalorder %s254, %s255
    %p264 = scmp.eq.s32.totalorder %s29, 0
    %p265 = por %p263, %p264
    %p266 = scmp.ne.s32.totalorder %s254, %s255
    %p267 = scmp.eq.s32.totalorder %s30, 1
    %p268 = por %p266, %p267
    %p270 = scmp.ne.s32.totalorder %s255, %s269
    %p271 = scmp.eq.s32.totalorder %s30, 0
    %p272 = por %p270, %p271
    %s274 = sadd.s32 %s273, 1
    %p277 = scmp.eq.s32.totalorder %s24, 1
    %p278 = scmp.ne.s32.totalorder %s273, %s275
    %p279 = scmp.eq.s32.totalorder %s24, 0
    %p280 = por %p278, %p279
    %p281 = scmp.ne.s32.totalorder %s273, %s275
    %p282 = scmp.eq.s32.totalorder %s29, 1
    %p283 = por %p281, %p282
    %p284 = scmp.ne.s32.totalorder %s275, %s276
    %p285 = scmp.eq.s32.totalorder %s29, 0
    %p286 = por %p284, %p285
    %p287 = scmp.ne.s32.totalorder %s275, %s276
    %p288 = scmp.eq.s32.totalorder %s30, 1
    %p289 = por %p287, %p288
    %p291 = scmp.ne.s32.totalorder %s276, %s290
    %p292 = scmp.eq.s32.totalorder %s30, 0
    %p293 = por %p291, %p292
    %s295 = sadd.s32 %s294, 1
    %p298 = scmp.eq.s32.totalorder %s24, 1
    %p299 = scmp.ne.s32.totalorder %s294, %s296
    %p300 = scmp.eq.s32.totalorder %s24, 0
    %p301 = por %p299, %p300
    %p302 = scmp.ne.s32.totalorder %s294, %s296
    %p303 = scmp.eq.s32.totalorder %s29, 1
    %p304 = por %p302, %p303
    %p305 = scmp.ne.s32.totalorder %s296, %s297
    %p306 = scmp.eq.s32.totalorder %s29, 0
    %p307 = por %p305, %p306
    %p308 = scmp.ne.s32.totalorder %s296, %s297
    %p309 = scmp.eq.s32.totalorder %s30, 1
    %p310 = por %p308, %p309
    %p312 = scmp.ne.s32.totalorder %s297, %s311
    %p313 = scmp.eq.s32.totalorder %s30, 0
    %p314 = por %p312, %p313
    %s316 = sadd.s32 %s315, 1
    %p319 = scmp.eq.s32.totalorder %s24, 1
    %p320 = scmp.ne.s32.totalorder %s315, %s317
    %p321 = scmp.eq.s32.totalorder %s24, 0
    %p322 = por %p320, %p321
    %p323 = scmp.ne.s32.totalorder %s315, %s317
    %p324 = scmp.eq.s32.totalorder %s29, 1
    %p325 = por %p323, %p324
    %p326 = scmp.ne.s32.totalorder %s317, %s318
    %p327 = scmp.eq.s32.totalorder %s29, 0
    %p328 = por %p326, %p327
    %p329 = scmp.ne.s32.totalorder %s317, %s318
    %p330 = scmp.eq.s32.totalorder %s30, 1
    %p331 = por %p329, %p330
    %p333 = scmp.ne.s32.totalorder %s318, %s332
    %p334 = scmp.eq.s32.totalorder %s30, 0
    %p335 = por %p333, %p334
    %s337 = sadd.s32 %s336, 1
    %p340 = scmp.eq.s32.totalorder %s24, 1
    %p341 = scmp.ne.s32.totalorder %s336, %s338
    %p342 = scmp.eq.s32.totalorder %s24, 0
    %p343 = por %p341, %p342
    %p344 = scmp.ne.s32.totalorder %s336, %s338
    %p345 = scmp.eq.s32.totalorder %s29, 1
    %p346 = por %p344, %p345
    %p347 = scmp.ne.s32.totalorder %s338, %s339
    %p348 = scmp.eq.s32.totalorder %s29, 0
    %p349 = por %p347, %p348
    %p350 = scmp.ne.s32.totalorder %s338, %s339
    %p351 = scmp.eq.s32.totalorder %s30, 1
    %p352 = por %p350, %p351
    %p354 = scmp.ne.s32.totalorder %s339, %s353
    %p355 = scmp.eq.s32.totalorder %s30, 0
    %p356 = por %p354, %p355
    %s358 = sadd.s32 %s357, 1
    %p361 = scmp.eq.s32.totalorder %s24, 1
    %p362 = scmp.ne.s32.totalorder %s357, %s359
    %p363 = scmp.eq.s32.totalorder %s24, 0
    %p364 = por %p362, %p363
    %p365 = scmp.ne.s32.totalorder %s357, %s359
    %p366 = scmp.eq.s32.totalorder %s29, 1
    %p367 = por %p365, %p366
    %p368 = scmp.ne.s32.totalorder %s359, %s360
    %p369 = scmp.eq.s32.totalorder %s29, 0
    %p370 = por %p368, %p369
    %p371 = scmp.ne.s32.totalorder %s359, %s360
    %p372 = scmp.eq.s32.totalorder %s30, 1
    %p373 = por %p371, %p372
    %p375 = scmp.ne.s32.totalorder %s360, %s374
    %p376 = scmp.eq.s32.totalorder %s30, 0
    %p377 = por %p375, %p376
    %s378 = ssub.s32 %s24, %s31
    %p379 = scmp.eq.s32.totalorder %s378, 0
    %s381 = sadd.s32 %s380, 1
    %s382 = scalar_select %p379, %s380, %s381
    %p385 = pneg %p379
    %p386 = scmp.eq.s32.totalorder %s24, 1
    %p387 = por %p385, %p386
    %p388 = scmp.ne.s32.totalorder %s380, %s383
    %p389 = scmp.eq.s32.totalorder %s24, 0
    %p390 = por %p388, %p389
    %p391 = scmp.ne.s32.totalorder %s380, %s383
    %p392 = scmp.eq.s32.totalorder %s29, 1
    %p393 = por %p391, %p392
    %p394 = scmp.ne.s32.totalorder %s383, %s384
    %p395 = scmp.eq.s32.totalorder %s29, 0
    %p396 = por %p394, %p395
    %p397 = scmp.ne.s32.totalorder %s383, %s384
    %p398 = scmp.eq.s32.totalorder %s30, 1
    %p399 = por %p397, %p398
    %p401 = scmp.ne.s32.totalorder %s384, %s400
    %p402 = scmp.eq.s32.totalorder %s30, 0
    %p403 = por %p401, %p402
    %s404 = ssub.s32 %s24, %s31
    %p405 = scmp.eq.s32.totalorder %s404, 0
    %s407 = sadd.s32 %s406, 1
    %s408 = scalar_select %p405, %s406, %s407
    %p411 = pneg %p405
    %p412 = scmp.eq.s32.totalorder %s24, 1
    %p413 = por %p411, %p412
    %p414 = scmp.ne.s32.totalorder %s406, %s409
    %p415 = scmp.eq.s32.totalorder %s24, 0
    %p416 = por %p414, %p415
    %p417 = scmp.ne.s32.totalorder %s406, %s409
    %p418 = scmp.eq.s32.totalorder %s29, 1
    %p419 = por %p417, %p418
    %p420 = scmp.ne.s32.totalorder %s409, %s410
    %p421 = scmp.eq.s32.totalorder %s29, 0
    %p422 = por %p420, %p421
    %p423 = scmp.ne.s32.totalorder %s409, %s410
    %p424 = scmp.eq.s32.totalorder %s30, 1
    %p425 = por %p423, %p424
    %p427 = scmp.ne.s32.totalorder %s410, %s426
    %p428 = scmp.eq.s32.totalorder %s30, 0
    %p429 = por %p427, %p428
    %p430 = scmp.le.s32.totalorder 1, %s24
    %p431 = scmp.lt.s32.totalorder %s24, 3
    %p432 = pnand %p430, %p431
    %p433 = pneg %p432
    // Predicated region
    $region9: #{down_block_forward.1} parent=5 // pred_check
      _
    $region10: #{down_block_forward.1} parent=5 // pred_check_branch
      %435 = sbr.rel (%p432) target = $region12
    $region11: #{down_block_forward.1} parent=5 // pred_region
      %s436 = ssub.s32 %s24, 1
      // Predicated region
      $region13: #{down_block_forward.1} parent=11 // pred_check
        %p437 = pneg %p97
      $region14: #{down_block_forward.1} parent=11 // pred_check_branch
        %439 = sbr.rel (%p437) target = $region16
      $region15: #{down_block_forward.1} parent=11 // pred_region
        _
      $region16: #{down_block_forward.1} parent=11 // pred_fallthru
        _
      // Predicated region
      $region17: #{down_block_forward.1} parent=11 // pred_check
        %p440 = pneg %p118
      $region18: #{down_block_forward.1} parent=11 // pred_check_branch
        %442 = sbr.rel (%p440) target = $region20
      $region19: #{down_block_forward.1} parent=11 // pred_region
        _
      $region20: #{down_block_forward.1} parent=11 // pred_fallthru
        _
      // Predicated region
      $region21: #{down_block_forward.1} parent=11 // pred_check
        %p443 = pneg %p139
      $region22: #{down_block_forward.1} parent=11 // pred_check_branch
        %445 = sbr.rel (%p443) target = $region24
      $region23: #{down_block_forward.1} parent=11 // pred_region
        _
      $region24: #{down_block_forward.1} parent=11 // pred_fallthru
        _
      // Predicated region
      $region25: #{down_block_forward.1} parent=11 // pred_check
        %p446 = pneg %p160
      $region26: #{down_block_forward.1} parent=11 // pred_check_branch
        %448 = sbr.rel (%p446) target = $region28
      $region27: #{down_block_forward.1} parent=11 // pred_region
        _
      $region28: #{down_block_forward.1} parent=11 // pred_fallthru
        _
      // Predicated region
      $region29: #{down_block_forward.1} parent=11 // pred_check
        %p449 = pneg %p181
      $region30: #{down_block_forward.1} parent=11 // pred_check_branch
        %451 = sbr.rel (%p449) target = $region32
      $region31: #{down_block_forward.1} parent=11 // pred_region
        _
      $region32: #{down_block_forward.1} parent=11 // pred_fallthru
        _
      // Predicated region
      $region33: #{down_block_forward.1} parent=11 // pred_check
        %p452 = pneg %p202
      $region34: #{down_block_forward.1} parent=11 // pred_check_branch
        %454 = sbr.rel (%p452) target = $region36
      $region35: #{down_block_forward.1} parent=11 // pred_region
        _
      $region36: #{down_block_forward.1} parent=11 // pred_fallthru
        _
      // Predicated region
      $region37: #{down_block_forward.1} parent=11 // pred_check
        %p455 = pneg %p223
      $region38: #{down_block_forward.1} parent=11 // pred_check_branch
        %457 = sbr.rel (%p455) target = $region40
      $region39: #{down_block_forward.1} parent=11 // pred_region
        _
      $region40: #{down_block_forward.1} parent=11 // pred_fallthru
        _
      // Predicated region
      $region41: #{down_block_forward.1} parent=11 // pred_check
        %p458 = pneg %p244
      $region42: #{down_block_forward.1} parent=11 // pred_check_branch
        %460 = sbr.rel (%p458) target = $region44
      $region43: #{down_block_forward.1} parent=11 // pred_region
        _
      $region44: #{down_block_forward.1} parent=11 // pred_fallthru
        _
      // Predicated region
      $region45: #{down_block_forward.1} parent=11 // pred_check
        %p461 = pneg %p265
      $region46: #{down_block_forward.1} parent=11 // pred_check_branch
        %463 = sbr.rel (%p461) target = $region48
      $region47: #{down_block_forward.1} parent=11 // pred_region
        _
      $region48: #{down_block_forward.1} parent=11 // pred_fallthru
        _
      // Predicated region
      $region49: #{down_block_forward.1} parent=11 // pred_check
        %p464 = pneg %p286
      $region50: #{down_block_forward.1} parent=11 // pred_check_branch
        %466 = sbr.rel (%p464) target = $region52
      $region51: #{down_block_forward.1} parent=11 // pred_region
        _
      $region52: #{down_block_forward.1} parent=11 // pred_fallthru
        _
      // Predicated region
      $region53: #{down_block_forward.1} parent=11 // pred_check
        %p467 = pneg %p307
      $region54: #{down_block_forward.1} parent=11 // pred_check_branch
        %469 = sbr.rel (%p467) target = $region56
      $region55: #{down_block_forward.1} parent=11 // pred_region
        _
      $region56: #{down_block_forward.1} parent=11 // pred_fallthru
        _
      // Predicated region
      $region57: #{down_block_forward.1} parent=11 // pred_check
        %p470 = pneg %p328
      $region58: #{down_block_forward.1} parent=11 // pred_check_branch
        %472 = sbr.rel (%p470) target = $region60
      $region59: #{down_block_forward.1} parent=11 // pred_region
        _
      $region60: #{down_block_forward.1} parent=11 // pred_fallthru
        _
      // Predicated region
      $region61: #{down_block_forward.1} parent=11 // pred_check
        %p473 = pneg %p349
      $region62: #{down_block_forward.1} parent=11 // pred_check_branch
        %475 = sbr.rel (%p473) target = $region64
      $region63: #{down_block_forward.1} parent=11 // pred_region
        _
      $region64: #{down_block_forward.1} parent=11 // pred_fallthru
        _
      // Predicated region
      $region65: #{down_block_forward.1} parent=11 // pred_check
        %p476 = pneg %p370
      $region66: #{down_block_forward.1} parent=11 // pred_check_branch
        %478 = sbr.rel (%p476) target = $region68
      $region67: #{down_block_forward.1} parent=11 // pred_region
        _
      $region68: #{down_block_forward.1} parent=11 // pred_fallthru
        _
    $region12: #{down_block_forward.1} parent=5 // pred_fallthru
      _
    %p479 = scmp.lt.s32.totalorder %s24, 2
    // Predicated region
    $region69: #{down_block_forward.1} parent=5 // pred_check
      %p480 = pneg %p479
    $region70: #{down_block_forward.1} parent=5 // pred_check_branch
      %482 = sbr.rel (%p480) target = $region72
    $region71: #{down_block_forward.1} parent=5 // pred_region
      // Predicated region
      $region73: #{down_block_forward.1} parent=71 // pred_check
        %p483 = pneg %p44
      $region74: #{down_block_forward.1} parent=71 // pred_check_branch
        %485 = sbr.rel (%p483) target = $region76
      $region75: #{down_block_forward.1} parent=71 // pred_region
        %p486 = scmp.lt.s32.totalorder %s24, 1
        %s487 = scalar_select %p486, %s24, 1
        %s488 = smul.addr %s487, 2
        %s489 = smul.addr %s488, 4
        %s490 = scalar_lea.vmem %s0, %s489
      $region76: #{down_block_forward.1} parent=71 // pred_fallthru
        _
      // Predicated region
      $region77: #{down_block_forward.1} parent=71 // pred_check
        %p491 = pneg %p70
      $region78: #{down_block_forward.1} parent=71 // pred_check_branch
        %493 = sbr.rel (%p491) target = $region80
      $region79: #{down_block_forward.1} parent=71 // pred_region
        %p494 = scmp.lt.s32.totalorder %s24, 1
        %s495 = scalar_select %p494, %s24, 1
        %s496 = smul.addr %s495, 8
        %s497 = scalar_lea.vmem %s1, %s496
      $region80: #{down_block_forward.1} parent=71 // pred_fallthru
        _
    $region72: #{down_block_forward.1} parent=5 // pred_fallthru
      _
    %p498 = scmp.le.s32.totalorder 1, %s24
    %p499 = scmp.lt.s32.totalorder %s24, 3
    %p500 = pnand %p498, %p499
    %p501 = pneg %p500
    // Predicated region
    $region81: #{down_block_forward.1} parent=5 // pred_check
      _
    $region82: #{down_block_forward.1} parent=5 // pred_check_branch
      %503 = sbr.rel (%p500) target = $region84
    $region83: #{down_block_forward.1} parent=5 // pred_region
      %s504 = ssub.s32 %s24, 1
      %p505 = scmp.lt.s32.totalorder %s29, 1
      %s506 = scalar_select %p505, %s29, 1
      %s507 = smul.addr %s506, 2
      %s508 = smul.addr %s507, 4
      %s509 = scalar_lea.vmem %s0, %s508
      %p510 = pneg %p50
      %p511 = pneg %p47
      %p512 = scmp.lt.s32.totalorder %s29, 1
      %s513 = scalar_select %p512, %s29, 1
      %s514 = smul.addr %s513, 8
      %s515 = scalar_lea.vmem %s1, %s514
      %p516 = pneg %p76
      %p517 = pneg %p73
      %p518 = pneg %p97
      %p519 = pneg %p94
      %p520 = pneg %p118
      %p521 = pneg %p115
      %p522 = pneg %p139
      %p523 = pneg %p136
      %p524 = pneg %p160
      %p525 = pneg %p157
      %p526 = pneg %p181
      %p527 = pneg %p178
      %p528 = pneg %p202
      %p529 = pneg %p199
      %p530 = pneg %p223
      %p531 = pneg %p220
      %p532 = pneg %p244
      %p533 = pneg %p241
      %p534 = pneg %p265
      %p535 = pneg %p262
      %p536 = pneg %p286
      %p537 = pneg %p283
      %p538 = pneg %p307
      %p539 = pneg %p304
      %p540 = pneg %p328
      %p541 = pneg %p325
      %p542 = pneg %p349
      %p543 = pneg %p346
      %p544 = pneg %p370
      %p545 = pneg %p367
      %p546 = pneg %p396
      %p547 = pneg %p393
      %p548 = scmp.lt.s32.totalorder %s29, 1
      %s549 = scalar_select %p548, %s29, 1
      %s550 = smul.addr %s549, 8
      %s551 = scalar_lea.vmem %s16, %s550
      %p552 = pneg %p422
      %p553 = pneg %p419
      %p554 = scmp.lt.s32.totalorder %s29, 1
      %s555 = scalar_select %p554, %s29, 1
      %s556 = smul.addr %s555, 2
      %s557 = smul.addr %s556, 8
      %s558 = scalar_lea.vmem %s17, %s557
      %p559 = scmp.lt.s32.totalorder %s29, 1
      %s560 = scalar_select %p559, %s29, 1
      %s561 = smul.addr %s560, 2
      %s562 = smul.addr %s561, 4
      %s563 = scalar_lea.vmem %s0, %s562
      %p564 = scmp.lt.s32.totalorder %s29, 1
      %s565 = scalar_select %p564, %s29, 1
      %s566 = smul.addr %s565, 8
      %s567 = scalar_lea.vmem %s1, %s566
      %p568 = scmp.lt.s32.totalorder %s29, 1
      %s569 = scalar_select %p568, %s29, 1
      %s570 = smul.addr %s569, 8
      %s571 = scalar_lea.vmem %s16, %s570
      %p572 = scmp.lt.s32.totalorder %s29, 1
      %s573 = scalar_select %p572, %s29, 1
      %s574 = smul.addr %s573, 2
      %s575 = smul.addr %s574, 8
      %s576 = scalar_lea.vmem %s17, %s575
      %v578 = vld [vmem:[%s563] sm:$0xff]
      %v579 = vld [vmem:[%s9] sm:$0xff]
      %v580 = vld [vmem:[%s9 + $0x8] sm:$0xff]
      %v581 = vld [vmem:[%s9 + $0x10] sm:$0x1]
      %v582 = vld [vmem:[%s9 + $0x18] sm:$0x1]
      %v583 = vld [vmem:[%s2] sm:$0xf]
      %v584 = vld [vmem:[%s3] sm:$0xf]
      %586 = vst [vmem:[#allocation1] ss:$2 sm:$0xff] %v578
      %v587 = vld.sshfl [vmem:[#allocation1] sm:$0xff pattern:$0x75316420]
      %v588 = vld.sshfl [vmem:[#allocation1 + $0x8] sm:$0xff pattern:$0x75316420]
      %vm591 = vcmask 1043456
      %v592 = vsel %vm591, %v587, 0.0
      %v593 = vsel %vm591, %v588, 0.0
      %v594 = vadd.f32 %v592, %v593
      %595 = vadd.xlane.f32.xlu0 %v594
      %v596 = vpop.xlane.xlu0 %595
      %v597 = vmul.f32 %v578, %v578
      %599 = vst [vmem:[#allocation1] ss:$2 sm:$0xff] %v597
      %v600 = vld.sshfl [vmem:[#allocation1] sm:$0xff pattern:$0x75316420]
      %v601 = vld.sshfl [vmem:[#allocation1 + $0x8] sm:$0xff pattern:$0x75316420]
      %v604 = vsel %vm591, %v600, 0.0
      %v605 = vsel %vm591, %v601, 0.0
      %v606 = vadd.f32 %v604, %v605
      %607 = vadd.xlane.f32.xlu0 %v606
      %v608 = vpop.xlane.xlu0 %607
      %v609 = vmul.f32 %v596, 0.00390625
      %v610 = vmul.f32 %v608, 0.00390625
      %v611 = vmul.f32 %v609, %v609
      %v612 = vsub.f32 %v610, %v611
      %v613 = vmax.f32 %v612, 0.0
      %v614 = vadd.f32 %v613, 1e-05
      %v615 = vrsqrt.pop %v614
      %v616 = vmul.f32 %v615, %v614
      %v617 = vmul.f32 %v616, %v615
      %v618 = vmul.f32 0.5, %v617
      %v619 = vsub.f32 1.5, %v618
      %v620 = vmul.f32 %v615, %v619
      %vm621 = vweird.f32 %v614
      %vm622 = vweird.f32 %v615
      %vm623 = vmor %vm621, %vm622
      %v624 = vsel %vm623, %v615, %v620
      %v627 = vunpack.c.l.s4 839922192
      %v628 = vunpack.c.0.s8 %v627
      %v629 = vperm.slane %v609, %v628
      %v631 = vsub.f32 %v578, %v629
      %v634 = vunpack.c.l.s4 839922192
      %v635 = vunpack.c.0.s8 %v634
      %v636 = vperm.slane %v624, %v635
      %v638 = vmul.f32 %v631, %v636
      %640 = vset.pattern.permute.xlu0 0
      %641 = vperm.xlu0 %640, %v583
      %v642 = vpop.permute.xlu0 %641
      %v644 = vunpack.c.l.s4 839922192
      %v645 = vunpack.c.0.s8 %v644
      %v646 = vperm.slane %v642, %v645
      %v648 = vmul.f32 %v638, %v646
      %650 = vset.pattern.permute.xlu0 0
      %651 = vperm.xlu0 %650, %v584
      %v652 = vpop.permute.xlu0 %651
      %v654 = vunpack.c.l.s4 839922192
      %v655 = vunpack.c.0.s8 %v654
      %v656 = vperm.slane %v652, %v655
      %v658 = vadd.f32 %v648, %v656
      %v659 = vxor.u32 %v658, 2147483648
      %v660 = vmul.f32 %v659, 1.442695
      %v661 = vpow.pop %v660
      %v662 = vadd.f32 %v661, 1.0
      %v663 = vrcp.pop %v662
      %v664 = vmul.f32 %v662, %v663
      %v665 = vsub.f32 1.0, %v664
      %v666 = vmul.f32 %v663, %v665
      %v667 = vadd.f32 %v663, %v666
      %vm668 = vweird.f32 %v662
      %vm669 = vweird.f32 %v663
      %vm670 = vmor %vm668, %vm669
      %v671 = vsel %vm670, %v663, %v667
      %v672 = vand.u32 2147483647, %v662
      %vm673 = vcmp.eq.f32.partialorder %v672, 8.507059e+37
      %v674 = vand.u32 %v662, 2147483648
      %v675 = vor.u32 1.1754944e-38, %v674
      %v676 = vsel %vm673, %v675, %v671
      %v677 = vmul.f32 1.0, %v676
      %v678 = vmul.f32 %v658, %v677
      %v679 = vld [vmem:[%s4] sm:$0xf]
      %v680 = vld [vmem:[%s567] sm:$0xff]
      %682 = vst [vmem:[#allocation1] ss:$2 sm:$0xff] %v678
      %v683 = vld.sshfl [vmem:[#allocation1] sm:$0xff pattern:$0x75316420]
      %v684 = vld.sshfl [vmem:[#allocation1 + $0x8] sm:$0xff pattern:$0x75316420]
      %v687 = vsel %vm591, %v683, 0.0
      %v688 = vsel %vm591, %v684, 0.0
      %689 = vrot.lane.b32.xlu0 %v687, 17
      %v690 = vpop.permute.xlu0 %689
      %691 = vrot.lane.b32.xlu0 %v688, 17
      %v692 = vpop.permute.xlu0 %691
      %v693 = vlaneseq
      %v694 = vand.u32 %v693, 127
      %vm695 = vcmp.lt.s32.totalorder %v694, 17
      %v696 = vsel %vm695, %v690, %v692
      %v697 = vsel %vm695, %v692, %v690
      %v698 = vperm.slane %v579, 0
      %v699 = vperm.slane %v580, 0
      %v700 = vmul.f32 %v697, %v698
      %v701 = vmul.f32 %v696, %v699
      %702 = vst [vmem:[#allocation2] sm:$0xff] %v700
      %703 = vst [vmem:[#allocation2 + $0x8] sm:$0xff] %v701
      %704 = vrot.lane.b32.xlu0 %v687, 16
      %v705 = vpop.permute.xlu0 %704
      %706 = vrot.lane.b32.xlu0 %v688, 16
      %v707 = vpop.permute.xlu0 %706
      %vm708 = vcmp.lt.s32.totalorder %v694, 16
      %v709 = vsel %vm708, %v705, %v707
      %v710 = vsel %vm708, %v707, %v705
      %v711 = vperm.slane %v579, 1
      %v712 = vperm.slane %v580, 1
      %v713 = vmul.f32 %v710, %v711
      %v714 = vmul.f32 %v709, %v712
      %715 = vst [vmem:[#allocation2 + $0x10] sm:$0xff] %v713
      %716 = vst [vmem:[#allocation2 + $0x18] sm:$0xff] %v714
      %717 = vrot.lane.b32.xlu0 %v687, 15
      %v718 = vpop.permute.xlu0 %717
      %719 = vrot.lane.b32.xlu0 %v688, 15
      %v720 = vpop.permute.xlu0 %719
      %vm721 = vcmp.lt.s32.totalorder %v694, 15
      %v722 = vsel %vm721, %v718, %v720
      %v723 = vsel %vm721, %v720, %v718
      %v724 = vperm.slane %v579, 2
      %v725 = vperm.slane %v580, 2
      %v726 = vmul.f32 %v723, %v724
      %v727 = vmul.f32 %v722, %v725
      %728 = vst [vmem:[#allocation2 + $0x20] sm:$0xff] %v726
      %729 = vst [vmem:[#allocation2 + $0x28] sm:$0xff] %v727
      %730 = vrot.lane.b32.xlu0 %v687, 1
      %v731 = vpop.permute.xlu0 %730
      %732 = vrot.lane.b32.xlu0 %v688, 1
      %v733 = vpop.permute.xlu0 %732
      %vm734 = vcmp.lt.s32.totalorder %v694, 1
      %v735 = vsel %vm734, %v731, %v733
      %v736 = vsel %vm734, %v733, %v731
      %v737 = vperm.slane %v579, 3
      %v738 = vperm.slane %v580, 3
      %v739 = vmul.f32 %v736, %v737
      %v740 = vmul.f32 %v735, %v738
      %741 = vst [vmem:[#allocation2 + $0x30] sm:$0xff] %v739
      %742 = vst [vmem:[#allocation2 + $0x38] sm:$0xff] %v740
      %743 = vst [vmem:[#allocation2 + $0x40] sm:$0xff] %v687
      %744 = vst [vmem:[#allocation2 + $0x48] sm:$0xff] %v688
      %745 = vrot.lane.b32.xlu0 %v687, 127
      %v746 = vpop.permute.xlu0 %745
      %747 = vrot.lane.b32.xlu0 %v688, 127
      %v748 = vpop.permute.xlu0 %747
      %vm749 = vcmp.lt.s32.totalorder %v694, 127
      %v750 = vsel %vm749, %v746, %v748
      %v751 = vsel %vm749, %v748, %v746
      %v752 = vperm.slane %v579, 5
      %v753 = vperm.slane %v580, 5
      %v754 = vmul.f32 %v750, %v752
      %v755 = vmul.f32 %v751, %v753
      %756 = vst [vmem:[#allocation2 + $0x50] sm:$0xff] %v754
      %757 = vst [vmem:[#allocation2 + $0x58] sm:$0xff] %v755
      %758 = vrot.lane.b32.xlu0 %v687, 113
      %v759 = vpop.permute.xlu0 %758
      %760 = vrot.lane.b32.xlu0 %v688, 113
      %v761 = vpop.permute.xlu0 %760
      %vm762 = vcmp.lt.s32.totalorder %v694, 113
      %v763 = vsel %vm762, %v759, %v761
      %v764 = vsel %vm762, %v761, %v759
      %v765 = vperm.slane %v579, 6
      %v766 = vperm.slane %v580, 6
      %v767 = vmul.f32 %v763, %v765
      %v768 = vmul.f32 %v764, %v766
      %769 = vst [vmem:[#allocation2 + $0x60] sm:$0xff] %v767
      %770 = vst [vmem:[#allocation2 + $0x68] sm:$0xff] %v768
      %771 = vrot.lane.b32.xlu0 %v687, 112
      %v772 = vpop.permute.xlu0 %771
      %773 = vrot.lane.b32.xlu0 %v688, 112
      %v774 = vpop.permute.xlu0 %773
      %vm775 = vcmp.lt.s32.totalorder %v694, 112
      %v776 = vsel %vm775, %v772, %v774
      %v777 = vsel %vm775, %v774, %v772
      %v778 = vperm.slane %v579, 7
      %v779 = vperm.slane %v580, 7
      %v780 = vmul.f32 %v776, %v778
      %v781 = vmul.f32 %v777, %v779
      %782 = vst [vmem:[#allocation2 + $0x70] sm:$0xff] %v780
      %783 = vst [vmem:[#allocation2 + $0x78] sm:$0xff] %v781
      %784 = vrot.lane.b32.xlu0 %v687, 111
      %v785 = vpop.permute.xlu0 %784
      %786 = vrot.lane.b32.xlu0 %v688, 111
      %v787 = vpop.permute.xlu0 %786
      %vm788 = vcmp.lt.s32.totalorder %v694, 111
      %v789 = vsel %vm788, %v785, %v787
      %v790 = vsel %vm788, %v787, %v785
      %v791 = vperm.slane %v581, 0
      %v792 = vperm.slane %v582, 0
      %v793 = vmul.f32 %v789, %v791
      %v794 = vmul.f32 %v790, %v792
      %795 = vst [vmem:[#allocation2 + $0x80] sm:$0xff] %v793
      %796 = vst [vmem:[#allocation2 + $0x88] sm:$0xff] %v794
      %v797 = vld [vmem:[#allocation2] sm:$0xff]
      %v798 = vld [vmem:[#allocation2 + $0x8] sm:$0xff]
      %v799 = vld [vmem:[#allocation2 + $0x10] sm:$0xff]
      %v800 = vld [vmem:[#allocation2 + $0x18] sm:$0xff]
      %v801 = vld [vmem:[#allocation2 + $0x20] sm:$0xff]
      %v802 = vld [vmem:[#allocation2 + $0x28] sm:$0xff]
      %v803 = vld [vmem:[#allocation2 + $0x30] sm:$0xff]
      %v804 = vld [vmem:[#allocation2 + $0x38] sm:$0xff]
      %v805 = vld [vmem:[#allocation2 + $0x40] sm:$0xff]
      %v806 = vld [vmem:[#allocation2 + $0x48] sm:$0xff]
      %v807 = vld [vmem:[#allocation2 + $0x50] sm:$0xff]
      %v808 = vld [vmem:[#allocation2 + $0x58] sm:$0xff]
      %v809 = vld [vmem:[#allocation2 + $0x60] sm:$0xff]
      %v810 = vld [vmem:[#allocation2 + $0x68] sm:$0xff]
      %v811 = vld [vmem:[#allocation2 + $0x70] sm:$0xff]
      %v812 = vld [vmem:[#allocation2 + $0x78] sm:$0xff]
      %v813 = vld [vmem:[#allocation2 + $0x80] sm:$0xff]
      %v814 = vld [vmem:[#allocation2 + $0x88] sm:$0xff]
      %v815 = vpack.c.bf16 %v799, %v797
      %v816 = vpack.c.bf16 %v800, %v798
      %v817 = vpack.c.bf16 %v803, %v801
      %v818 = vpack.c.bf16 %v804, %v802
      %v819 = vpack.c.bf16 %v807, %v805
      %v820 = vpack.c.bf16 %v808, %v806
      %v821 = vpack.c.bf16 %v811, %v809
      %v822 = vpack.c.bf16 %v812, %v810
      %v823 = vpack.c.bf16 %v813, %v813
      %v824 = vpack.c.bf16 %v814, %v814
      %826 = vset.pattern.permute.xlu0 0
      %827 = vperm.xlu0 %826, %v680
      %v828 = vpop.permute.xlu0 %827
      %vm830 = vcmask 588800
      %v832 = vsel %vm830, %v679, 0
      %v835 = vsel %vm591, %v823, 0
      %v838 = vsel %vm591, %v824, 0
      %840 = vmatpush.bf16.msra.mxu0 0
      %841 = vmatpush.bf16.msra.mxu0 0
      %842 = vmatpush.bf16.msra.mxu0 0
      %843 = vmatpush.bf16.msra.mxu0 %v835
      %844 = vmatpush.bf16.msra.mxu0 %v821
      %845 = vmatpush.bf16.msra.mxu0 %v819
      %846 = vmatpush.bf16.msra.mxu0 %v817
      %847 = vmatpush.bf16.msra.mxu0 %v815
      %848 = vmatmul.bf16.gmra.mxu0 %v832
      %v849 = vpop.f32.mrf.mxu0
      %v850 = vadd.f32 %v828, %v849
      %v851 = vpop.f32.mrf.mxu0
      %852 = vdwg.mxu0
      %853 = vmatpush.bf16.msra.mxu0 0
      %854 = vmatpush.bf16.msra.mxu0 0
      %855 = vmatpush.bf16.msra.mxu0 0
      %856 = vmatpush.bf16.msra.mxu0 %v838
      %857 = vmatpush.bf16.msra.mxu0 %v822
      %858 = vmatpush.bf16.msra.mxu0 %v820
      %859 = vmatpush.bf16.msra.mxu0 %v818
      %860 = vmatpush.bf16.msra.mxu0 %v816
      %861 = vmatmul.bf16.gmra.mxu0 %v832
      %v862 = vpop.f32.mrf.mxu0
      %v863 = vadd.f32 %v828, %v862
      %v864 = vpop.f32.mrf.mxu0
      %865 = vdwg.mxu0
      %v866 = vld [vmem:[%s5] sm:$0xff]
      %v867 = vld [vmem:[%s6] sm:$0xff]
      %v868 = vadd.f32 %v850, %v863
      %869 = vadd.xlane.f32.xlu0 %v868
      %v870 = vpop.xlane.xlu0 %869
      %v871 = vmul.f32 %v850, %v850
      %v872 = vmul.f32 %v863, %v863
      %v873 = vadd.f32 %v871, %v872
      %874 = vadd.xlane.f32.xlu0 %v873
      %v875 = vpop.xlane.xlu0 %874
      %v876 = vmul.f32 %v870, 0.00390625
      %v877 = vmul.f32 %v875, 0.00390625
      %v878 = vmul.f32 %v876, %v876
      %v879 = vsub.f32 %v877, %v878
      %v880 = vmax.f32 %v879, 0.0
      %v881 = vadd.f32 %v880, 1e-05
      %v882 = vrsqrt.pop %v881
      %v883 = vmul.f32 %v882, %v881
      %v884 = vmul.f32 %v883, %v882
      %v885 = vmul.f32 0.5, %v884
      %v886 = vsub.f32 1.5, %v885
      %v887 = vmul.f32 %v882, %v886
      %vm888 = vweird.f32 %v881
      %vm889 = vweird.f32 %v882
      %vm890 = vmor %vm888, %vm889
      %v891 = vsel %vm890, %v882, %v887
      %v892 = vsub.f32 %v850, %v876
      %v893 = vsub.f32 %v863, %v876
      %v894 = vmul.f32 %v892, %v891
      %v895 = vmul.f32 %v893, %v891
      %897 = vset.pattern.permute.xlu0 0
      %898 = vperm.xlu0 %897, %v866
      %v899 = vpop.permute.xlu0 %898
      %v901 = vmul.f32 %v894, %v899
      %v902 = vmul.f32 %v895, %v899
      %904 = vset.pattern.permute.xlu0 0
      %905 = vperm.xlu0 %904, %v867
      %v906 = vpop.permute.xlu0 %905
      %v908 = vadd.f32 %v901, %v906
      %v909 = vadd.f32 %v902, %v906
      %v910 = vxor.u32 %v908, 2147483648
      %v911 = vxor.u32 %v909, 2147483648
      %v912 = vmul.f32 %v910, 1.442695
      %v913 = vpow.pop %v912
      %v914 = vmul.f32 %v911, 1.442695
      %v915 = vpow.pop %v914
      %v916 = vadd.f32 %v913, 1.0
      %v917 = vadd.f32 %v915, 1.0
      %v918 = vrcp.pop %v916
      %v919 = vmul.f32 %v916, %v918
      %v920 = vsub.f32 1.0, %v919
      %v921 = vmul.f32 %v918, %v920
      %v922 = vadd.f32 %v918, %v921
      %vm923 = vweird.f32 %v916
      %vm924 = vweird.f32 %v918
      %vm925 = vmor %vm923, %vm924
      %v926 = vsel %vm925, %v918, %v922
      %v927 = vand.u32 2147483647, %v916
      %vm928 = vcmp.eq.f32.partialorder %v927, 8.507059e+37
      %v929 = vand.u32 %v916, 2147483648
      %v930 = vor.u32 1.1754944e-38, %v929
      %v931 = vsel %vm928, %v930, %v926
      %v932 = vmul.f32 1.0, %v931
      %v933 = vrcp.pop %v917
      %v934 = vmul.f32 %v917, %v933
      %v935 = vsub.f32 1.0, %v934
      %v936 = vmul.f32 %v933, %v935
      %v937 = vadd.f32 %v933, %v936
      %vm938 = vweird.f32 %v917
      %vm939 = vweird.f32 %v933
      %vm940 = vmor %vm938, %vm939
      %v941 = vsel %vm940, %v933, %v937
      %v942 = vand.u32 2147483647, %v917
      %vm943 = vcmp.eq.f32.partialorder %v942, 8.507059e+37
      %v944 = vand.u32 %v917, 2147483648
      %v945 = vor.u32 1.1754944e-38, %v944
      %v946 = vsel %vm943, %v945, %v941
      %v947 = vmul.f32 1.0, %v946
      %v948 = vmul.f32 %v908, %v932
      %v949 = vmul.f32 %v909, %v947
      %v950 = vld [vmem:[%s7] sm:$0xf]
      %v951 = vld [vmem:[%s8] sm:$0xff]
      %952 = vrot.lane.b32.xlu0 %v948, 17
      %v953 = vpop.permute.xlu0 %952
      %954 = vrot.lane.b32.xlu0 %v949, 17
      %v955 = vpop.permute.xlu0 %954
      %v956 = vsel %vm695, %v953, %v955
      %v957 = vsel %vm695, %v955, %v953
      %v958 = vmul.f32 %v957, %v698
      %v959 = vmul.f32 %v956, %v699
      %960 = vst [vmem:[#allocation3] sm:$0xff] %v958
      %961 = vst [vmem:[#allocation3 + $0x8] sm:$0xff] %v959
      %962 = vrot.lane.b32.xlu0 %v948, 16
      %v963 = vpop.permute.xlu0 %962
      %964 = vrot.lane.b32.xlu0 %v949, 16
      %v965 = vpop.permute.xlu0 %964
      %v966 = vsel %vm708, %v963, %v965
      %v967 = vsel %vm708, %v965, %v963
      %v968 = vmul.f32 %v967, %v711
      %v969 = vmul.f32 %v966, %v712
      %970 = vst [vmem:[#allocation3 + $0x10] sm:$0xff] %v968
      %971 = vst [vmem:[#allocation3 + $0x18] sm:$0xff] %v969
      %972 = vrot.lane.b32.xlu0 %v948, 15
      %v973 = vpop.permute.xlu0 %972
      %974 = vrot.lane.b32.xlu0 %v949, 15
      %v975 = vpop.permute.xlu0 %974
      %v976 = vsel %vm721, %v973, %v975
      %v977 = vsel %vm721, %v975, %v973
      %v978 = vmul.f32 %v977, %v724
      %v979 = vmul.f32 %v976, %v725
      %980 = vst [vmem:[#allocation3 + $0x20] sm:$0xff] %v978
      %981 = vst [vmem:[#allocation3 + $0x28] sm:$0xff] %v979
      %982 = vrot.lane.b32.xlu0 %v948, 1
      %v983 = vpop.permute.xlu0 %982
      %984 = vrot.lane.b32.xlu0 %v949, 1
      %v985 = vpop.permute.xlu0 %984
      %v986 = vsel %vm734, %v983, %v985
      %v987 = vsel %vm734, %v985, %v983
      %v988 = vmul.f32 %v987, %v737
      %v989 = vmul.f32 %v986, %v738
      %990 = vst [vmem:[#allocation3 + $0x30] sm:$0xff] %v988
      %991 = vst [vmem:[#allocation3 + $0x38] sm:$0xff] %v989
      %992 = vst [vmem:[#allocation3 + $0x40] sm:$0xff] %v948
      %993 = vst [vmem:[#allocation3 + $0x48] sm:$0xff] %v949
      %994 = vrot.lane.b32.xlu0 %v948, 127
      %v995 = vpop.permute.xlu0 %994
      %996 = vrot.lane.b32.xlu0 %v949, 127
      %v997 = vpop.permute.xlu0 %996
      %v998 = vsel %vm749, %v995, %v997
      %v999 = vsel %vm749, %v997, %v995
      %v1000 = vmul.f32 %v998, %v752
      %v1001 = vmul.f32 %v999, %v753
      %1002 = vst [vmem:[#allocation3 + $0x50] sm:$0xff] %v1000
      %1003 = vst [vmem:[#allocation3 + $0x58] sm:$0xff] %v1001
      %1004 = vrot.lane.b32.xlu0 %v948, 113
      %v1005 = vpop.permute.xlu0 %1004
      %1006 = vrot.lane.b32.xlu0 %v949, 113
      %v1007 = vpop.permute.xlu0 %1006
      %v1008 = vsel %vm762, %v1005, %v1007
      %v1009 = vsel %vm762, %v1007, %v1005
      %v1010 = vmul.f32 %v1008, %v765
      %v1011 = vmul.f32 %v1009, %v766
      %1012 = vst [vmem:[#allocation3 + $0x60] sm:$0xff] %v1010
      %1013 = vst [vmem:[#allocation3 + $0x68] sm:$0xff] %v1011
      %1014 = vrot.lane.b32.xlu0 %v948, 112
      %v1015 = vpop.permute.xlu0 %1014
      %1016 = vrot.lane.b32.xlu0 %v949, 112
      %v1017 = vpop.permute.xlu0 %1016
      %v1018 = vsel %vm775, %v1015, %v1017
      %v1019 = vsel %vm775, %v1017, %v1015
      %v1020 = vmul.f32 %v1018, %v778
      %v1021 = vmul.f32 %v1019, %v779
      %1022 = vst [vmem:[#allocation3 + $0x70] sm:$0xff] %v1020
      %1023 = vst [vmem:[#allocation3 + $0x78] sm:$0xff] %v1021
      %1024 = vrot.lane.b32.xlu0 %v948, 111
      %v1025 = vpop.permute.xlu0 %1024
      %1026 = vrot.lane.b32.xlu0 %v949, 111
      %v1027 = vpop.permute.xlu0 %1026
      %v1028 = vsel %vm788, %v1025, %v1027
      %v1029 = vsel %vm788, %v1027, %v1025
      %v1030 = vmul.f32 %v1028, %v791
      %v1031 = vmul.f32 %v1029, %v792
      %1032 = vst [vmem:[#allocation3 + $0x80] sm:$0xff] %v1030
      %1033 = vst [vmem:[#allocation3 + $0x88] sm:$0xff] %v1031
      %v1034 = vld [vmem:[#allocation3] sm:$0xff]
      %v1035 = vld [vmem:[#allocation3 + $0x8] sm:$0xff]
      %v1036 = vld [vmem:[#allocation3 + $0x10] sm:$0xff]
      %v1037 = vld [vmem:[#allocation3 + $0x18] sm:$0xff]
      %v1038 = vld [vmem:[#allocation3 + $0x20] sm:$0xff]
      %v1039 = vld [vmem:[#allocation3 + $0x28] sm:$0xff]
      %v1040 = vld [vmem:[#allocation3 + $0x30] sm:$0xff]
      %v1041 = vld [vmem:[#allocation3 + $0x38] sm:$0xff]
      %v1042 = vld [vmem:[#allocation3 + $0x40] sm:$0xff]
      %v1043 = vld [vmem:[#allocation3 + $0x48] sm:$0xff]
      %v1044 = vld [vmem:[#allocation3 + $0x50] sm:$0xff]
      %v1045 = vld [vmem:[#allocation3 + $0x58] sm:$0xff]
      %v1046 = vld [vmem:[#allocation3 + $0x60] sm:$0xff]
      %v1047 = vld [vmem:[#allocation3 + $0x68] sm:$0xff]
      %v1048 = vld [vmem:[#allocation3 + $0x70] sm:$0xff]
      %v1049 = vld [vmem:[#allocation3 + $0x78] sm:$0xff]
      %v1050 = vld [vmem:[#allocation3 + $0x80] sm:$0xff]
      %v1051 = vld [vmem:[#allocation3 + $0x88] sm:$0xff]
      %v1052 = vpack.c.bf16 %v1036, %v1034
      %v1053 = vpack.c.bf16 %v1037, %v1035
      %v1054 = vpack.c.bf16 %v1040, %v1038
      %v1055 = vpack.c.bf16 %v1041, %v1039
      %v1056 = vpack.c.bf16 %v1044, %v1042
      %v1057 = vpack.c.bf16 %v1045, %v1043
      %v1058 = vpack.c.bf16 %v1048, %v1046
      %v1059 = vpack.c.bf16 %v1049, %v1047
      %v1060 = vpack.c.bf16 %v1050, %v1050
      %v1061 = vpack.c.bf16 %v1051, %v1051
      %1063 = vset.pattern.permute.xlu0 0
      %1064 = vperm.xlu0 %1063, %v951
      %v1065 = vpop.permute.xlu0 %1064
      %v1068 = vsel %vm830, %v950, 0
      %v1071 = vsel %vm591, %v1060, 0
      %v1074 = vsel %vm591, %v1061, 0
      %1076 = vmatpush.bf16.msra.mxu0 0
      %1077 = vmatpush.bf16.msra.mxu0 0
      %1078 = vmatpush.bf16.msra.mxu0 0
      %1079 = vmatpush.bf16.msra.mxu0 %v1071
      %1080 = vmatpush.bf16.msra.mxu0 %v1058
      %1081 = vmatpush.bf16.msra.mxu0 %v1056
      %1082 = vmatpush.bf16.msra.mxu0 %v1054
      %1083 = vmatpush.bf16.msra.mxu0 %v1052
      %1084 = vmatmul.bf16.gmra.mxu0 %v1068
      %v1085 = vpop.f32.mrf.mxu0
      %v1086 = vadd.f32 %v1065, %v1085
      %v1087 = vpop.f32.mrf.mxu0
      %1088 = vdwg.mxu0
      %1089 = vmatpush.bf16.msra.mxu0 0
      %1090 = vmatpush.bf16.msra.mxu0 0
      %1091 = vmatpush.bf16.msra.mxu0 0
      %1092 = vmatpush.bf16.msra.mxu0 %v1074
      %1093 = vmatpush.bf16.msra.mxu0 %v1059
      %1094 = vmatpush.bf16.msra.mxu0 %v1057
      %1095 = vmatpush.bf16.msra.mxu0 %v1055
      %1096 = vmatpush.bf16.msra.mxu0 %v1053
      %1097 = vmatmul.bf16.gmra.mxu0 %v1068
      %v1098 = vpop.f32.mrf.mxu0
      %v1099 = vadd.f32 %v1065, %v1098
      %v1100 = vpop.f32.mrf.mxu0
      %1101 = vdwg.mxu0
      %v1102 = vld [vmem:[%s11] sm:$0xf]
      %1103 = vst [vmem:[#allocation1] ss:$2 sm:$0xff] %v578
      %v1104 = vld.sshfl [vmem:[#allocation1] sm:$0xff pattern:$0x75316420]
      %v1105 = vld.sshfl [vmem:[#allocation1 + $0x8] sm:$0xff pattern:$0x75316420]
      %v1108 = vpack.c.bf16 %v1104, %v1104
      %v1109 = vpack.c.bf16 %v1105, %v1105
      %vm1110 = vcmask 31744
      %v1112 = vsel %vm1110, %v1102, 0
      %vm1114 = vcmask 1041408
      %v1116 = vsel %vm1114, %v1108, 0
      %v1119 = vsel %vm1114, %v1109, 0
      %1121 = vmatpush.bf16.msra.mxu0 0
      %1122 = vmatpush.bf16.msra.mxu0 0
      %1123 = vmatpush.bf16.msra.mxu0 0
      %1124 = vmatpush.bf16.msra.mxu0 0
      %1125 = vmatpush.bf16.msra.mxu0 0
      %1126 = vmatpush.bf16.msra.mxu0 0
      %1127 = vmatpush.bf16.msra.mxu0 0
      %1128 = vmatpush.bf16.msra.mxu0 %v1116
      %1129 = vmatmul.bf16.gmra.mxu0 %v1112
      %v1130 = vpop.f32.mrf.mxu0
      %v1131 = vadd.f32 0.0, %v1130
      %v1132 = vpop.f32.mrf.mxu0
      %1133 = vdwg.mxu0
      %1134 = vmatpush.bf16.msra.mxu0 0
      %1135 = vmatpush.bf16.msra.mxu0 0
      %1136 = vmatpush.bf16.msra.mxu0 0
      %1137 = vmatpush.bf16.msra.mxu0 0
      %1138 = vmatpush.bf16.msra.mxu0 0
      %1139 = vmatpush.bf16.msra.mxu0 0
      %1140 = vmatpush.bf16.msra.mxu0 0
      %1141 = vmatpush.bf16.msra.mxu0 %v1119
      %1142 = vmatmul.bf16.gmra.mxu0 %v1112
      %v1143 = vpop.f32.mrf.mxu0
      %v1144 = vadd.f32 0.0, %v1143
      %v1145 = vpop.f32.mrf.mxu0
      %1146 = vdwg.mxu0
      %v1147 = vadd.f32 %v1086, %v1131
      %v1148 = vadd.f32 %v1099, %v1144
      %v1149 = vld [vmem:[%s12] sm:$0xf]
      %v1150 = vld [vmem:[%s12 + $0x4] sm:$0xf]
      %v1151 = vld [vmem:[%s12 + $0x8] sm:$0xf]
      %v1152 = vld [vmem:[%s13] sm:$0xff]
      %v1153 = vld [vmem:[%s13 + $0x8] sm:$0xff]
      %v1154 = vld [vmem:[%s13 + $0x10] sm:$0xff]
      %v1155 = vld [vmem:[%s14] sm:$0xf]
      %v1156 = vld [vmem:[%s15] sm:$0xff]
      %v1157 = vpack.c.bf16 %v1147, %v1147
      %v1158 = vpack.c.bf16 %v1148, %v1148
      %1160 = vset.pattern.permute.xlu0 0
      %1161 = vperm.xlu0 %1160, %v1152
      %v1162 = vpop.permute.xlu0 %1161
      %1165 = vset.pattern.permute.xlu0 0
      %1166 = vperm.xlu0 %1165, %v1153
      %v1167 = vpop.permute.xlu0 %1166
      %1170 = vset.pattern.permute.xlu0 0
      %1171 = vperm.xlu0 %1170, %v1154
      %v1172 = vpop.permute.xlu0 %1171
      %v1177 = vunpack.c.l.b16 %v1149
      %v1178 = vunpack.c.l.b16 %v1150
      %v1179 = vunpack.c.l.b16 %v1151
      %v1180 = vpack.c.b16 %v1178, %v1177
      %v1181 = vpack.c.b16 %v1179, %v1179
      %vm1182 = vcmask 64512
      %v1184 = vsel %vm1182, %v1180, 0
      %v1187 = vsel %vm1182, %v1181, 0
      %v1190 = vsel %vm591, %v1157, 0
      %v1193 = vsel %vm591, %v1158, 0
      %1195 = vmatpush.bf16.msra.mxu0 0
      %1196 = vmatpush.bf16.msra.mxu0 0
      %1197 = vmatpush.bf16.msra.mxu0 0
      %1198 = vmatpush.bf16.msra.mxu0 0
      %1199 = vmatpush.bf16.msra.mxu0 0
      %1200 = vmatpush.bf16.msra.mxu0 0
      %1201 = vmatpush.bf16.msra.mxu0 0
      %1202 = vmatpush.bf16.msra.mxu0 %v1190
      %1203 = vmatmul.bf16.gmra.mxu0 %v1184
      %v1204 = vpop.f32.mrf.mxu0
      %v1205 = vadd.f32 %v1162, %v1204
      %v1206 = vpop.f32.mrf.mxu0
      %v1207 = vadd.f32 %v1167, %v1206
      %1208 = vmatmul.bf16.gmra.mxu0 %v1187
      %v1209 = vpop.f32.mrf.mxu0
      %v1210 = vadd.f32 %v1172, %v1209
      %v1211 = vpop.f32.mrf.mxu0
      %1212 = vdwg.mxu0
      %1213 = vmatpush.bf16.msra.mxu0 0
      %1214 = vmatpush.bf16.msra.mxu0 0
      %1215 = vmatpush.bf16.msra.mxu0 0
      %1216 = vmatpush.bf16.msra.mxu0 0
      %1217 = vmatpush.bf16.msra.mxu0 0
      %1218 = vmatpush.bf16.msra.mxu0 0
      %1219 = vmatpush.bf16.msra.mxu0 0
      %1220 = vmatpush.bf16.msra.mxu0 %v1193
      %1221 = vmatmul.bf16.gmra.mxu0 %v1184
      %v1222 = vpop.f32.mrf.mxu0
      %v1223 = vadd.f32 %v1162, %v1222
      %v1224 = vpop.f32.mrf.mxu0
      %v1225 = vadd.f32 %v1167, %v1224
      %1226 = vmatmul.bf16.gmra.mxu0 %v1187
      %v1227 = vpop.f32.mrf.mxu0
      %v1228 = vadd.f32 %v1172, %v1227
      %v1229 = vpop.f32.mrf.mxu0
      %1230 = vdwg.mxu0
      %1231 = vxpose.xlu0.b32.start [1/16] %v1205, 128
      %1232 = vxpose.xlu0.b32.cont [2/16] 0.0, 128
      %1233 = vxpose.xlu0.b32.cont [3/16] 0.0, 128
      %1234 = vxpose.xlu0.b32.cont [4/16] 0.0, 128
      %1235 = vxpose.xlu0.b32.cont [5/16] 0.0, 128
      %1236 = vxpose.xlu0.b32.cont [6/16] 0.0, 128
      %1237 = vxpose.xlu0.b32.cont [7/16] 0.0, 128
      %1238 = vxpose.xlu0.b32.cont [8/16] 0.0, 128
      %1239 = vxpose.xlu0.b32.cont [9/16] 0.0, 128
      %1240 = vxpose.xlu0.b32.cont [10/16] 0.0, 128
      %1241 = vxpose.xlu0.b32.cont [11/16] 0.0, 128
      %1242 = vxpose.xlu0.b32.cont [12/16] 0.0, 128
      %1243 = vxpose.xlu0.b32.cont [13/16] 0.0, 128
      %1244 = vxpose.xlu0.b32.cont [14/16] 0.0, 128
      %1245 = vxpose.xlu0.b32.cont [15/16] 0.0, 128
      %1246 = vxpose.xlu0.b32.end [16/16] 0.0, 128
      %v1247 = vpop.trf.xlu0
      %v1248 = vpop.trf.xlu0
      %v1249 = vpop.trf.xlu0
      %v1250 = vpop.trf.xlu0
      %v1251 = vpop.trf.xlu0
      %v1252 = vpop.trf.xlu0
      %v1253 = vpop.trf.xlu0
      %v1254 = vpop.trf.xlu0
      %v1255 = vpop.trf.xlu0
      %v1256 = vpop.trf.xlu0
      %v1257 = vpop.trf.xlu0
      %v1258 = vpop.trf.xlu0
      %v1259 = vpop.trf.xlu0
      %v1260 = vpop.trf.xlu0
      %v1261 = vpop.trf.xlu0
      %v1262 = vpop.trf.xlu0
      %1263 = vxpose.xlu0.b32.start [1/16] %v1223, 128
      %1264 = vxpose.xlu0.b32.cont [2/16] 0.0, 128
      %1265 = vxpose.xlu0.b32.cont [3/16] 0.0, 128
      %1266 = vxpose.xlu0.b32.cont [4/16] 0.0, 128
      %1267 = vxpose.xlu0.b32.cont [5/16] 0.0, 128
      %1268 = vxpose.xlu0.b32.cont [6/16] 0.0, 128
      %1269 = vxpose.xlu0.b32.cont [7/16] 0.0, 128
      %1270 = vxpose.xlu0.b32.cont [8/16] 0.0, 128
      %1271 = vxpose.xlu0.b32.cont [9/16] 0.0, 128
      %1272 = vxpose.xlu0.b32.cont [10/16] 0.0, 128
      %1273 = vxpose.xlu0.b32.cont [11/16] 0.0, 128
      %1274 = vxpose.xlu0.b32.cont [12/16] 0.0, 128
      %1275 = vxpose.xlu0.b32.cont [13/16] 0.0, 128
      %1276 = vxpose.xlu0.b32.cont [14/16] 0.0, 128
      %1277 = vxpose.xlu0.b32.cont [15/16] 0.0, 128
      %1278 = vxpose.xlu0.b32.end [16/16] 0.0, 128
      %v1279 = vpop.trf.xlu0
      %v1280 = vpop.trf.xlu0
      %v1281 = vpop.trf.xlu0
      %v1282 = vpop.trf.xlu0
      %v1283 = vpop.trf.xlu0
      %v1284 = vpop.trf.xlu0
      %v1285 = vpop.trf.xlu0
      %v1286 = vpop.trf.xlu0
      %v1287 = vpop.trf.xlu0
      %v1288 = vpop.trf.xlu0
      %v1289 = vpop.trf.xlu0
      %v1290 = vpop.trf.xlu0
      %v1291 = vpop.trf.xlu0
      %v1292 = vpop.trf.xlu0
      %v1293 = vpop.trf.xlu0
      %v1294 = vpop.trf.xlu0
      %v1295 = vpack.c.bf16 %v1248, %v1247
      %v1296 = vpack.c.bf16 %v1250, %v1249
      %v1297 = vpack.c.bf16 %v1252, %v1251
      %v1298 = vpack.c.bf16 %v1254, %v1253
      %v1299 = vpack.c.bf16 %v1256, %v1255
      %v1300 = vpack.c.bf16 %v1258, %v1257
      %v1301 = vpack.c.bf16 %v1260, %v1259
      %v1302 = vpack.c.bf16 %v1262, %v1261
      %v1303 = vpack.c.bf16 %v1280, %v1279
      %v1304 = vpack.c.bf16 %v1282, %v1281
      %v1305 = vpack.c.bf16 %v1284, %v1283
      %v1306 = vpack.c.bf16 %v1286, %v1285
      %v1307 = vpack.c.bf16 %v1288, %v1287
      %v1308 = vpack.c.bf16 %v1290, %v1289
      %v1309 = vpack.c.bf16 %v1292, %v1291
      %v1310 = vpack.c.bf16 %v1294, %v1293
      %v1311 = vpack.c.bf16 %v1207, %v1207
      %v1312 = vpack.c.bf16 %v1225, %v1225
      %v1313 = vpack.c.bf16 %v1210, %v1210
      %v1314 = vpack.c.bf16 %v1228, %v1228
      %vm1315 = vcmask 15360
      %v1317 = vsel %vm1315, %v1295, 0
      %v1320 = vsel %vm1315, %v1296, 0
      %v1323 = vsel %vm1315, %v1297, 0
      %v1326 = vsel %vm1315, %v1298, 0
      %v1329 = vsel %vm1315, %v1299, 0
      %v1332 = vsel %vm1315, %v1300, 0
      %v1335 = vsel %vm1315, %v1301, 0
      %v1338 = vsel %vm1315, %v1302, 0
      %v1341 = vsel %vm1315, %v1303, 0
      %v1344 = vsel %vm1315, %v1304, 0
      %v1347 = vsel %vm1315, %v1305, 0
      %v1350 = vsel %vm1315, %v1306, 0
      %v1353 = vsel %vm1315, %v1307, 0
      %v1356 = vsel %vm1315, %v1308, 0
      %v1359 = vsel %vm1315, %v1309, 0
      %v1362 = vsel %vm1315, %v1310, 0
      %vm1364 = vcmask 1040384
      %v1366 = vsel %vm1364, %v1311, 0
      %v1369 = vsel %vm1364, %v1312, 0
      %1371 = vmatpush.bf16.msra.mxu0 0
      %1372 = vmatpush.bf16.msra.mxu0 0
      %1373 = vmatpush.bf16.msra.mxu0 0
      %1374 = vmatpush.bf16.msra.mxu0 0
      %1375 = vmatpush.bf16.msra.mxu0 0
      %1376 = vmatpush.bf16.msra.mxu0 0
      %1377 = vmatpush.bf16.msra.mxu0 0
      %1378 = vmatpush.bf16.msra.mxu0 %v1366
      %1379 = vmatmul.bf16.gmra.mxu0 %v1317
      %v1380 = vpop.f32.mrf.mxu0
      %v1381 = vadd.f32 0.0, %v1380
      %v1382 = vpop.f32.mrf.mxu0
      %v1383 = vadd.f32 0.0, %v1382
      %1384 = vmatmul.bf16.gmra.mxu0 %v1320
      %v1385 = vpop.f32.mrf.mxu0
      %v1386 = vadd.f32 0.0, %v1385
      %v1387 = vpop.f32.mrf.mxu0
      %v1388 = vadd.f32 0.0, %v1387
      %1389 = vmatmul.bf16.gmra.mxu0 %v1323
      %v1390 = vpop.f32.mrf.mxu0
      %v1391 = vadd.f32 0.0, %v1390
      %v1392 = vpop.f32.mrf.mxu0
      %v1393 = vadd.f32 0.0, %v1392
      %1394 = vmatmul.bf16.gmra.mxu0 %v1326
      %v1395 = vpop.f32.mrf.mxu0
      %v1396 = vadd.f32 0.0, %v1395
      %v1397 = vpop.f32.mrf.mxu0
      %v1398 = vadd.f32 0.0, %v1397
      %1399 = vmatmul.bf16.gmra.mxu0 %v1329
      %v1400 = vpop.f32.mrf.mxu0
      %v1401 = vadd.f32 0.0, %v1400
      %v1402 = vpop.f32.mrf.mxu0
      %v1403 = vadd.f32 0.0, %v1402
      %1404 = vmatmul.bf16.gmra.mxu0 %v1332
      %v1405 = vpop.f32.mrf.mxu0
      %v1406 = vadd.f32 0.0, %v1405
      %v1407 = vpop.f32.mrf.mxu0
      %v1408 = vadd.f32 0.0, %v1407
      %1409 = vmatmul.bf16.gmra.mxu0 %v1335
      %v1410 = vpop.f32.mrf.mxu0
      %v1411 = vadd.f32 0.0, %v1410
      %v1412 = vpop.f32.mrf.mxu0
      %v1413 = vadd.f32 0.0, %v1412
      %1414 = vmatmul.bf16.gmra.mxu0 %v1338
      %v1415 = vpop.f32.mrf.mxu0
      %v1416 = vadd.f32 0.0, %v1415
      %v1417 = vpop.f32.mrf.mxu0
      %v1418 = vadd.f32 0.0, %v1417
      %1419 = vmatmul.bf16.gmra.mxu0 %v1341
      %v1420 = vpop.f32.mrf.mxu0
      %v1421 = vadd.f32 0.0, %v1420
      %v1422 = vpop.f32.mrf.mxu0
      %v1423 = vadd.f32 0.0, %v1422
      %1424 = vmatmul.bf16.gmra.mxu0 %v1344
      %v1425 = vpop.f32.mrf.mxu0
      %v1426 = vadd.f32 0.0, %v1425
      %v1427 = vpop.f32.mrf.mxu0
      %v1428 = vadd.f32 0.0, %v1427
      %1429 = vmatmul.bf16.gmra.mxu0 %v1347
      %v1430 = vpop.f32.mrf.mxu0
      %v1431 = vadd.f32 0.0, %v1430
      %v1432 = vpop.f32.mrf.mxu0
      %v1433 = vadd.f32 0.0, %v1432
      %1434 = vmatmul.bf16.gmra.mxu0 %v1350
      %v1435 = vpop.f32.mrf.mxu0
      %v1436 = vadd.f32 0.0, %v1435
      %v1437 = vpop.f32.mrf.mxu0
      %v1438 = vadd.f32 0.0, %v1437
      %1439 = vmatmul.bf16.gmra.mxu0 %v1353
      %v1440 = vpop.f32.mrf.mxu0
      %v1441 = vadd.f32 0.0, %v1440
      %v1442 = vpop.f32.mrf.mxu0
      %v1443 = vadd.f32 0.0, %v1442
      %1444 = vmatmul.bf16.gmra.mxu0 %v1356
      %v1445 = vpop.f32.mrf.mxu0
      %v1446 = vadd.f32 0.0, %v1445
      %v1447 = vpop.f32.mrf.mxu0
      %v1448 = vadd.f32 0.0, %v1447
      %1449 = vmatmul.bf16.gmra.mxu0 %v1359
      %v1450 = vpop.f32.mrf.mxu0
      %v1451 = vadd.f32 0.0, %v1450
      %v1452 = vpop.f32.mrf.mxu0
      %v1453 = vadd.f32 0.0, %v1452
      %1454 = vmatmul.bf16.gmra.mxu0 %v1362
      %v1455 = vpop.f32.mrf.mxu0
      %v1456 = vadd.f32 0.0, %v1455
      %v1457 = vpop.f32.mrf.mxu0
      %v1458 = vadd.f32 0.0, %v1457
      %1459 = vdwg.mxu0
      %1460 = vmatpush.bf16.msra.mxu0 0
      %1461 = vmatpush.bf16.msra.mxu0 0
      %1462 = vmatpush.bf16.msra.mxu0 0
      %1463 = vmatpush.bf16.msra.mxu0 0
      %1464 = vmatpush.bf16.msra.mxu0 0
      %1465 = vmatpush.bf16.msra.mxu0 0
      %1466 = vmatpush.bf16.msra.mxu0 0
      %1467 = vmatpush.bf16.msra.mxu0 %v1369
      %1468 = vmatmul.bf16.gmra.mxu0 %v1317
      %v1469 = vpop.f32.mrf.mxu0
      %v1470 = vadd.f32 0.0, %v1469
      %v1471 = vpop.f32.mrf.mxu0
      %v1472 = vadd.f32 0.0, %v1471
      %1473 = vmatmul.bf16.gmra.mxu0 %v1320
      %v1474 = vpop.f32.mrf.mxu0
      %v1475 = vadd.f32 0.0, %v1474
      %v1476 = vpop.f32.mrf.mxu0
      %v1477 = vadd.f32 0.0, %v1476
      %1478 = vmatmul.bf16.gmra.mxu0 %v1323
      %v1479 = vpop.f32.mrf.mxu0
      %v1480 = vadd.f32 0.0, %v1479
      %v1481 = vpop.f32.mrf.mxu0
      %v1482 = vadd.f32 0.0, %v1481
      %1483 = vmatmul.bf16.gmra.mxu0 %v1326
      %v1484 = vpop.f32.mrf.mxu0
      %v1485 = vadd.f32 0.0, %v1484
      %v1486 = vpop.f32.mrf.mxu0
      %v1487 = vadd.f32 0.0, %v1486
      %1488 = vmatmul.bf16.gmra.mxu0 %v1329
      %v1489 = vpop.f32.mrf.mxu0
      %v1490 = vadd.f32 0.0, %v1489
      %v1491 = vpop.f32.mrf.mxu0
      %v1492 = vadd.f32 0.0, %v1491
      %1493 = vmatmul.bf16.gmra.mxu0 %v1332
      %v1494 = vpop.f32.mrf.mxu0
      %v1495 = vadd.f32 0.0, %v1494
      %v1496 = vpop.f32.mrf.mxu0
      %v1497 = vadd.f32 0.0, %v1496
      %1498 = vmatmul.bf16.gmra.mxu0 %v1335
      %v1499 = vpop.f32.mrf.mxu0
      %v1500 = vadd.f32 0.0, %v1499
      %v1501 = vpop.f32.mrf.mxu0
      %v1502 = vadd.f32 0.0, %v1501
      %1503 = vmatmul.bf16.gmra.mxu0 %v1338
      %v1504 = vpop.f32.mrf.mxu0
      %v1505 = vadd.f32 0.0, %v1504
      %v1506 = vpop.f32.mrf.mxu0
      %v1507 = vadd.f32 0.0, %v1506
      %1508 = vmatmul.bf16.gmra.mxu0 %v1341
      %v1509 = vpop.f32.mrf.mxu0
      %v1510 = vadd.f32 0.0, %v1509
      %v1511 = vpop.f32.mrf.mxu0
      %v1512 = vadd.f32 0.0, %v1511
      %1513 = vmatmul.bf16.gmra.mxu0 %v1344
      %v1514 = vpop.f32.mrf.mxu0
      %v1515 = vadd.f32 0.0, %v1514
      %v1516 = vpop.f32.mrf.mxu0
      %v1517 = vadd.f32 0.0, %v1516
      %1518 = vmatmul.bf16.gmra.mxu0 %v1347
      %v1519 = vpop.f32.mrf.mxu0
      %v1520 = vadd.f32 0.0, %v1519
      %v1521 = vpop.f32.mrf.mxu0
      %v1522 = vadd.f32 0.0, %v1521
      %1523 = vmatmul.bf16.gmra.mxu0 %v1350
      %v1524 = vpop.f32.mrf.mxu0
      %v1525 = vadd.f32 0.0, %v1524
      %v1526 = vpop.f32.mrf.mxu0
      %v1527 = vadd.f32 0.0, %v1526
      %1528 = vmatmul.bf16.gmra.mxu0 %v1353
      %v1529 = vpop.f32.mrf.mxu0
      %v1530 = vadd.f32 0.0, %v1529
      %v1531 = vpop.f32.mrf.mxu0
      %v1532 = vadd.f32 0.0, %v1531
      %1533 = vmatmul.bf16.gmra.mxu0 %v1356
      %v1534 = vpop.f32.mrf.mxu0
      %v1535 = vadd.f32 0.0, %v1534
      %v1536 = vpop.f32.mrf.mxu0
      %v1537 = vadd.f32 0.0, %v1536
      %1538 = vmatmul.bf16.gmra.mxu0 %v1359
      %v1539 = vpop.f32.mrf.mxu0
      %v1540 = vadd.f32 0.0, %v1539
      %v1541 = vpop.f32.mrf.mxu0
      %v1542 = vadd.f32 0.0, %v1541
      %1543 = vmatmul.bf16.gmra.mxu0 %v1362
      %v1544 = vpop.f32.mrf.mxu0
      %v1545 = vadd.f32 0.0, %v1544
      %v1546 = vpop.f32.mrf.mxu0
      %v1547 = vadd.f32 0.0, %v1546
      %1548 = vdwg.mxu0
      %v1549 = vmul.f32 %v1381, 0.70710677
      %v1550 = vmul.f32 %v1470, 0.70710677
      %v1551 = vmul.f32 %v1383, 0.70710677
      %v1552 = vmul.f32 %v1472, 0.70710677
      %v1553 = vmul.f32 %v1386, 0.70710677
      %v1554 = vmul.f32 %v1475, 0.70710677
      %v1555 = vmul.f32 %v1388, 0.70710677
      %v1556 = vmul.f32 %v1477, 0.70710677
      %v1557 = vmul.f32 %v1391, 0.70710677
      %v1558 = vmul.f32 %v1480, 0.70710677
      %v1559 = vmul.f32 %v1393, 0.70710677
      %v1560 = vmul.f32 %v1482, 0.70710677
      %v1561 = vmul.f32 %v1396, 0.70710677
      %v1562 = vmul.f32 %v1485, 0.70710677
      %v1563 = vmul.f32 %v1398, 0.70710677
      %v1564 = vmul.f32 %v1487, 0.70710677
      %v1565 = vmul.f32 %v1401, 0.70710677
      %v1566 = vmul.f32 %v1490, 0.70710677
      %v1567 = vmul.f32 %v1403, 0.70710677
      %v1568 = vmul.f32 %v1492, 0.70710677
      %v1569 = vmul.f32 %v1406, 0.70710677
      %v1570 = vmul.f32 %v1495, 0.70710677
      %v1571 = vmul.f32 %v1408, 0.70710677
      %v1572 = vmul.f32 %v1497, 0.70710677
      %v1573 = vmul.f32 %v1411, 0.70710677
      %v1574 = vmul.f32 %v1500, 0.70710677
      %v1575 = vmul.f32 %v1413, 0.70710677
      %v1576 = vmul.f32 %v1502, 0.70710677
      %v1577 = vmul.f32 %v1416, 0.70710677
      %v1578 = vmul.f32 %v1505, 0.70710677
      %v1579 = vmul.f32 %v1418, 0.70710677
      %v1580 = vmul.f32 %v1507, 0.70710677
      %v1581 = vmul.f32 %v1421, 0.70710677
      %v1582 = vmul.f32 %v1510, 0.70710677
      %v1583 = vmul.f32 %v1423, 0.70710677
      %v1584 = vmul.f32 %v1512, 0.70710677
      %v1585 = vmul.f32 %v1426, 0.70710677
      %v1586 = vmul.f32 %v1515, 0.70710677
      %v1587 = vmul.f32 %v1428, 0.70710677
      %v1588 = vmul.f32 %v1517, 0.70710677
      %v1589 = vmul.f32 %v1431, 0.70710677
      %v1590 = vmul.f32 %v1520, 0.70710677
      %v1591 = vmul.f32 %v1433, 0.70710677
      %v1592 = vmul.f32 %v1522, 0.70710677
      %v1593 = vmul.f32 %v1436, 0.70710677
      %v1594 = vmul.f32 %v1525, 0.70710677
      %v1595 = vmul.f32 %v1438, 0.70710677
      %v1596 = vmul.f32 %v1527, 0.70710677
      %v1597 = vmul.f32 %v1441, 0.70710677
      %v1598 = vmul.f32 %v1530, 0.70710677
      %v1599 = vmul.f32 %v1443, 0.70710677
      %v1600 = vmul.f32 %v1532, 0.70710677
      %v1601 = vmul.f32 %v1446, 0.70710677
      %v1602 = vmul.f32 %v1535, 0.70710677
      %v1603 = vmul.f32 %v1448, 0.70710677
      %v1604 = vmul.f32 %v1537, 0.70710677
      %v1605 = vmul.f32 %v1451, 0.70710677
      %v1606 = vmul.f32 %v1540, 0.70710677
      %v1607 = vmul.f32 %v1453, 0.70710677
      %v1608 = vmul.f32 %v1542, 0.70710677
      %v1609 = vmul.f32 %v1456, 0.70710677
      %v1610 = vmul.f32 %v1545, 0.70710677
      %v1611 = vmul.f32 %v1458, 0.70710677
      %v1612 = vmul.f32 %v1547, 0.70710677
      %v1613 = vmax.f32 %v1549, %v1550
      %1614 = vmax.xlane.f32.xlu0 %v1613
      %v1615 = vpop.xlane.xlu0 %1614
      %v1616 = vmax.f32 %v1551, %v1552
      %1617 = vmax.xlane.f32.xlu0 %v1616
      %v1618 = vpop.xlane.xlu0 %1617
      %v1619 = vmax.f32 %v1553, %v1554
      %1620 = vmax.xlane.f32.xlu0 %v1619
      %v1621 = vpop.xlane.xlu0 %1620
      %v1622 = vmax.f32 %v1555, %v1556
      %1623 = vmax.xlane.f32.xlu0 %v1622
      %v1624 = vpop.xlane.xlu0 %1623
      %v1625 = vmax.f32 %v1557, %v1558
      %1626 = vmax.xlane.f32.xlu0 %v1625
      %v1627 = vpop.xlane.xlu0 %1626
      %v1628 = vmax.f32 %v1559, %v1560
      %1629 = vmax.xlane.f32.xlu0 %v1628
      %v1630 = vpop.xlane.xlu0 %1629
      %v1631 = vmax.f32 %v1561, %v1562
      %1632 = vmax.xlane.f32.xlu0 %v1631
      %v1633 = vpop.xlane.xlu0 %1632
      %v1634 = vmax.f32 %v1563, %v1564
      %1635 = vmax.xlane.f32.xlu0 %v1634
      %v1636 = vpop.xlane.xlu0 %1635
      %v1637 = vmax.f32 %v1565, %v1566
      %1638 = vmax.xlane.f32.xlu0 %v1637
      %v1639 = vpop.xlane.xlu0 %1638
      %v1640 = vmax.f32 %v1567, %v1568
      %1641 = vmax.xlane.f32.xlu0 %v1640
      %v1642 = vpop.xlane.xlu0 %1641
      %v1643 = vmax.f32 %v1569, %v1570
      %1644 = vmax.xlane.f32.xlu0 %v1643
      %v1645 = vpop.xlane.xlu0 %1644
      %v1646 = vmax.f32 %v1571, %v1572
      %1647 = vmax.xlane.f32.xlu0 %v1646
      %v1648 = vpop.xlane.xlu0 %1647
      %v1649 = vmax.f32 %v1573, %v1574
      %1650 = vmax.xlane.f32.xlu0 %v1649
      %v1651 = vpop.xlane.xlu0 %1650
      %v1652 = vmax.f32 %v1575, %v1576
      %1653 = vmax.xlane.f32.xlu0 %v1652
      %v1654 = vpop.xlane.xlu0 %1653
      %v1655 = vmax.f32 %v1577, %v1578
      %1656 = vmax.xlane.f32.xlu0 %v1655
      %v1657 = vpop.xlane.xlu0 %1656
      %v1658 = vmax.f32 %v1579, %v1580
      %1659 = vmax.xlane.f32.xlu0 %v1658
      %v1660 = vpop.xlane.xlu0 %1659
      %v1661 = vmax.f32 %v1581, %v1582
      %1662 = vmax.xlane.f32.xlu0 %v1661
      %v1663 = vpop.xlane.xlu0 %1662
      %v1664 = vmax.f32 %v1583, %v1584
      %1665 = vmax.xlane.f32.xlu0 %v1664
      %v1666 = vpop.xlane.xlu0 %1665
      %v1667 = vmax.f32 %v1585, %v1586
      %1668 = vmax.xlane.f32.xlu0 %v1667
      %v1669 = vpop.xlane.xlu0 %1668
      %v1670 = vmax.f32 %v1587, %v1588
      %1671 = vmax.xlane.f32.xlu0 %v1670
      %v1672 = vpop.xlane.xlu0 %1671
      %v1673 = vmax.f32 %v1589, %v1590
      %1674 = vmax.xlane.f32.xlu0 %v1673
      %v1675 = vpop.xlane.xlu0 %1674
      %v1676 = vmax.f32 %v1591, %v1592
      %1677 = vmax.xlane.f32.xlu0 %v1676
      %v1678 = vpop.xlane.xlu0 %1677
      %v1679 = vmax.f32 %v1593, %v1594
      %1680 = vmax.xlane.f32.xlu0 %v1679
      %v1681 = vpop.xlane.xlu0 %1680
      %v1682 = vmax.f32 %v1595, %v1596
      %1683 = vmax.xlane.f32.xlu0 %v1682
      %v1684 = vpop.xlane.xlu0 %1683
      %v1685 = vmax.f32 %v1597, %v1598
      %1686 = vmax.xlane.f32.xlu0 %v1685
      %v1687 = vpop.xlane.xlu0 %1686
      %v1688 = vmax.f32 %v1599, %v1600
      %1689 = vmax.xlane.f32.xlu0 %v1688
      %v1690 = vpop.xlane.xlu0 %1689
      %v1691 = vmax.f32 %v1601, %v1602
      %1692 = vmax.xlane.f32.xlu0 %v1691
      %v1693 = vpop.xlane.xlu0 %1692
      %v1694 = vmax.f32 %v1603, %v1604
      %1695 = vmax.xlane.f32.xlu0 %v1694
      %v1696 = vpop.xlane.xlu0 %1695
      %v1697 = vmax.f32 %v1605, %v1606
      %1698 = vmax.xlane.f32.xlu0 %v1697
      %v1699 = vpop.xlane.xlu0 %1698
      %v1700 = vmax.f32 %v1607, %v1608
      %1701 = vmax.xlane.f32.xlu0 %v1700
      %v1702 = vpop.xlane.xlu0 %1701
      %v1703 = vmax.f32 %v1609, %v1610
      %1704 = vmax.xlane.f32.xlu0 %v1703
      %v1705 = vpop.xlane.xlu0 %1704
      %v1706 = vmax.f32 %v1611, %v1612
      %1707 = vmax.xlane.f32.xlu0 %v1706
      %v1708 = vpop.xlane.xlu0 %1707
      %v1709 = vsub.f32 %v1549, %v1615
      %v1710 = vsub.f32 %v1550, %v1615
      %v1711 = vsub.f32 %v1551, %v1618
      %v1712 = vsub.f32 %v1552, %v1618
      %v1713 = vsub.f32 %v1553, %v1621
      %v1714 = vsub.f32 %v1554, %v1621
      %v1715 = vsub.f32 %v1555, %v1624
      %v1716 = vsub.f32 %v1556, %v1624
      %v1717 = vsub.f32 %v1557, %v1627
      %v1718 = vsub.f32 %v1558, %v1627
      %v1719 = vsub.f32 %v1559, %v1630
      %v1720 = vsub.f32 %v1560, %v1630
      %v1721 = vsub.f32 %v1561, %v1633
      %v1722 = vsub.f32 %v1562, %v1633
      %v1723 = vsub.f32 %v1563, %v1636
      %v1724 = vsub.f32 %v1564, %v1636
      %v1725 = vsub.f32 %v1565, %v1639
      %v1726 = vsub.f32 %v1566, %v1639
      %v1727 = vsub.f32 %v1567, %v1642
      %v1728 = vsub.f32 %v1568, %v1642
      %v1729 = vsub.f32 %v1569, %v1645
      %v1730 = vsub.f32 %v1570, %v1645
      %v1731 = vsub.f32 %v1571, %v1648
      %v1732 = vsub.f32 %v1572, %v1648
      %v1733 = vsub.f32 %v1573, %v1651
      %v1734 = vsub.f32 %v1574, %v1651
      %v1735 = vsub.f32 %v1575, %v1654
      %v1736 = vsub.f32 %v1576, %v1654
      %v1737 = vsub.f32 %v1577, %v1657
      %v1738 = vsub.f32 %v1578, %v1657
      %v1739 = vsub.f32 %v1579, %v1660
      %v1740 = vsub.f32 %v1580, %v1660
      %v1741 = vsub.f32 %v1581, %v1663
      %v1742 = vsub.f32 %v1582, %v1663
      %v1743 = vsub.f32 %v1583, %v1666
      %v1744 = vsub.f32 %v1584, %v1666
      %v1745 = vsub.f32 %v1585, %v1669
      %v1746 = vsub.f32 %v1586, %v1669
      %v1747 = vsub.f32 %v1587, %v1672
      %v1748 = vsub.f32 %v1588, %v1672
      %v1749 = vsub.f32 %v1589, %v1675
      %v1750 = vsub.f32 %v1590, %v1675
      %v1751 = vsub.f32 %v1591, %v1678
      %v1752 = vsub.f32 %v1592, %v1678
      %v1753 = vsub.f32 %v1593, %v1681
      %v1754 = vsub.f32 %v1594, %v1681
      %v1755 = vsub.f32 %v1595, %v1684
      %v1756 = vsub.f32 %v1596, %v1684
      %v1757 = vsub.f32 %v1597, %v1687
      %v1758 = vsub.f32 %v1598, %v1687
      %v1759 = vsub.f32 %v1599, %v1690
      %v1760 = vsub.f32 %v1600, %v1690
      %v1761 = vsub.f32 %v1601, %v1693
      %v1762 = vsub.f32 %v1602, %v1693
      %v1763 = vsub.f32 %v1603, %v1696
      %v1764 = vsub.f32 %v1604, %v1696
      %v1765 = vsub.f32 %v1605, %v1699
      %v1766 = vsub.f32 %v1606, %v1699
      %v1767 = vsub.f32 %v1607, %v1702
      %v1768 = vsub.f32 %v1608, %v1702
      %v1769 = vsub.f32 %v1609, %v1705
      %v1770 = vsub.f32 %v1610, %v1705
      %v1771 = vsub.f32 %v1611, %v1708
      %v1772 = vsub.f32 %v1612, %v1708
      %v1773 = vmul.f32 %v1709, 1.442695
      %v1774 = vpow.pop %v1773
      %v1775 = vmul.f32 %v1710, 1.442695
      %v1776 = vpow.pop %v1775
      %v1777 = vmul.f32 %v1711, 1.442695
      %v1778 = vpow.pop %v1777
      %v1779 = vmul.f32 %v1712, 1.442695
      %v1780 = vpow.pop %v1779
      %v1781 = vmul.f32 %v1713, 1.442695
      %v1782 = vpow.pop %v1781
      %v1783 = vmul.f32 %v1714, 1.442695
      %v1784 = vpow.pop %v1783
      %v1785 = vmul.f32 %v1715, 1.442695
      %v1786 = vpow.pop %v1785
      %v1787 = vmul.f32 %v1716, 1.442695
      %v1788 = vpow.pop %v1787
      %v1789 = vmul.f32 %v1717, 1.442695
      %v1790 = vpow.pop %v1789
      %v1791 = vmul.f32 %v1718, 1.442695
      %v1792 = vpow.pop %v1791
      %v1793 = vmul.f32 %v1719, 1.442695
      %v1794 = vpow.pop %v1793
      %v1795 = vmul.f32 %v1720, 1.442695
      %v1796 = vpow.pop %v1795
      %v1797 = vmul.f32 %v1721, 1.442695
      %v1798 = vpow.pop %v1797
      %v1799 = vmul.f32 %v1722, 1.442695
      %v1800 = vpow.pop %v1799
      %v1801 = vmul.f32 %v1723, 1.442695
      %v1802 = vpow.pop %v1801
      %v1803 = vmul.f32 %v1724, 1.442695
      %v1804 = vpow.pop %v1803
      %v1805 = vmul.f32 %v1725, 1.442695
      %v1806 = vpow.pop %v1805
      %v1807 = vmul.f32 %v1726, 1.442695
      %v1808 = vpow.pop %v1807
      %v1809 = vmul.f32 %v1727, 1.442695
      %v1810 = vpow.pop %v1809
      %v1811 = vmul.f32 %v1728, 1.442695
      %v1812 = vpow.pop %v1811
      %v1813 = vmul.f32 %v1729, 1.442695
      %v1814 = vpow.pop %v1813
      %v1815 = vmul.f32 %v1730, 1.442695
      %v1816 = vpow.pop %v1815
      %v1817 = vmul.f32 %v1731, 1.442695
      %v1818 = vpow.pop %v1817
      %v1819 = vmul.f32 %v1732, 1.442695
      %v1820 = vpow.pop %v1819
      %v1821 = vmul.f32 %v1733, 1.442695
      %v1822 = vpow.pop %v1821
      %v1823 = vmul.f32 %v1734, 1.442695
      %v1824 = vpow.pop %v1823
      %v1825 = vmul.f32 %v1735, 1.442695
      %v1826 = vpow.pop %v1825
      %v1827 = vmul.f32 %v1736, 1.442695
      %v1828 = vpow.pop %v1827
      %v1829 = vmul.f32 %v1737, 1.442695
      %v1830 = vpow.pop %v1829
      %v1831 = vmul.f32 %v1738, 1.442695
      %v1832 = vpow.pop %v1831
      %v1833 = vmul.f32 %v1739, 1.442695
      %v1834 = vpow.pop %v1833
      %v1835 = vmul.f32 %v1740, 1.442695
      %v1836 = vpow.pop %v1835
      %v1837 = vmul.f32 %v1741, 1.442695
      %v1838 = vpow.pop %v1837
      %v1839 = vmul.f32 %v1742, 1.442695
      %v1840 = vpow.pop %v1839
      %v1841 = vmul.f32 %v1743, 1.442695
      %v1842 = vpow.pop %v1841
      %v1843 = vmul.f32 %v1744, 1.442695
      %v1844 = vpow.pop %v1843
      %v1845 = vmul.f32 %v1745, 1.442695
      %v1846 = vpow.pop %v1845
      %v1847 = vmul.f32 %v1746, 1.442695
      %v1848 = vpow.pop %v1847
      %v1849 = vmul.f32 %v1747, 1.442695
      %v1850 = vpow.pop %v1849
      %v1851 = vmul.f32 %v1748, 1.442695
      %v1852 = vpow.pop %v1851
      %v1853 = vmul.f32 %v1749, 1.442695
      %v1854 = vpow.pop %v1853
      %v1855 = vmul.f32 %v1750, 1.442695
      %v1856 = vpow.pop %v1855
      %v1857 = vmul.f32 %v1751, 1.442695
      %v1858 = vpow.pop %v1857
      %v1859 = vmul.f32 %v1752, 1.442695
      %v1860 = vpow.pop %v1859
      %v1861 = vmul.f32 %v1753, 1.442695
      %v1862 = vpow.pop %v1861
      %v1863 = vmul.f32 %v1754, 1.442695
      %v1864 = vpow.pop %v1863
      %v1865 = vmul.f32 %v1755, 1.442695
      %v1866 = vpow.pop %v1865
      %v1867 = vmul.f32 %v1756, 1.442695
      %v1868 = vpow.pop %v1867
      %v1869 = vmul.f32 %v1757, 1.442695
      %v1870 = vpow.pop %v1869
      %v1871 = vmul.f32 %v1758, 1.442695
      %v1872 = vpow.pop %v1871
      %v1873 = vmul.f32 %v1759, 1.442695
      %v1874 = vpow.pop %v1873
      %v1875 = vmul.f32 %v1760, 1.442695
      %v1876 = vpow.pop %v1875
      %v1877 = vmul.f32 %v1761, 1.442695
      %v1878 = vpow.pop %v1877
      %v1879 = vmul.f32 %v1762, 1.442695
      %v1880 = vpow.pop %v1879
      %v1881 = vmul.f32 %v1763, 1.442695
      %v1882 = vpow.pop %v1881
      %v1883 = vmul.f32 %v1764, 1.442695
      %v1884 = vpow.pop %v1883
      %v1885 = vmul.f32 %v1765, 1.442695
      %v1886 = vpow.pop %v1885
      %v1887 = vmul.f32 %v1766, 1.442695
      %v1888 = vpow.pop %v1887
      %v1889 = vmul.f32 %v1767, 1.442695
      %v1890 = vpow.pop %v1889
      %v1891 = vmul.f32 %v1768, 1.442695
      %v1892 = vpow.pop %v1891
      %v1893 = vmul.f32 %v1769, 1.442695
      %v1894 = vpow.pop %v1893
      %v1895 = vmul.f32 %v1770, 1.442695
      %v1896 = vpow.pop %v1895
      %v1897 = vmul.f32 %v1771, 1.442695
      %v1898 = vpow.pop %v1897
      %v1899 = vmul.f32 %v1772, 1.442695
      %v1900 = vpow.pop %v1899
      %v1901 = vadd.f32 %v1774, %v1776
      %1902 = vadd.xlane.f32.xlu0 %v1901
      %v1903 = vpop.xlane.xlu0 %1902
      %v1904 = vadd.f32 %v1778, %v1780
      %1905 = vadd.xlane.f32.xlu0 %v1904
      %v1906 = vpop.xlane.xlu0 %1905
      %v1907 = vadd.f32 %v1782, %v1784
      %1908 = vadd.xlane.f32.xlu0 %v1907
      %v1909 = vpop.xlane.xlu0 %1908
      %v1910 = vadd.f32 %v1786, %v1788
      %1911 = vadd.xlane.f32.xlu0 %v1910
      %v1912 = vpop.xlane.xlu0 %1911
      %v1913 = vadd.f32 %v1790, %v1792
      %1914 = vadd.xlane.f32.xlu0 %v1913
      %v1915 = vpop.xlane.xlu0 %1914
      %v1916 = vadd.f32 %v1794, %v1796
      %1917 = vadd.xlane.f32.xlu0 %v1916
      %v1918 = vpop.xlane.xlu0 %1917
      %v1919 = vadd.f32 %v1798, %v1800
      %1920 = vadd.xlane.f32.xlu0 %v1919
      %v1921 = vpop.xlane.xlu0 %1920
      %v1922 = vadd.f32 %v1802, %v1804
      %1923 = vadd.xlane.f32.xlu0 %v1922
      %v1924 = vpop.xlane.xlu0 %1923
      %v1925 = vadd.f32 %v1806, %v1808
      %1926 = vadd.xlane.f32.xlu0 %v1925
      %v1927 = vpop.xlane.xlu0 %1926
      %v1928 = vadd.f32 %v1810, %v1812
      %1929 = vadd.xlane.f32.xlu0 %v1928
      %v1930 = vpop.xlane.xlu0 %1929
      %v1931 = vadd.f32 %v1814, %v1816
      %1932 = vadd.xlane.f32.xlu0 %v1931
      %v1933 = vpop.xlane.xlu0 %1932
      %v1934 = vadd.f32 %v1818, %v1820
      %1935 = vadd.xlane.f32.xlu0 %v1934
      %v1936 = vpop.xlane.xlu0 %1935
      %v1937 = vadd.f32 %v1822, %v1824
      %1938 = vadd.xlane.f32.xlu0 %v1937
      %v1939 = vpop.xlane.xlu0 %1938
      %v1940 = vadd.f32 %v1826, %v1828
      %1941 = vadd.xlane.f32.xlu0 %v1940
      %v1942 = vpop.xlane.xlu0 %1941
      %v1943 = vadd.f32 %v1830, %v1832
      %1944 = vadd.xlane.f32.xlu0 %v1943
      %v1945 = vpop.xlane.xlu0 %1944
      %v1946 = vadd.f32 %v1834, %v1836
      %1947 = vadd.xlane.f32.xlu0 %v1946
      %v1948 = vpop.xlane.xlu0 %1947
      %v1949 = vadd.f32 %v1838, %v1840
      %1950 = vadd.xlane.f32.xlu0 %v1949
      %v1951 = vpop.xlane.xlu0 %1950
      %v1952 = vadd.f32 %v1842, %v1844
      %1953 = vadd.xlane.f32.xlu0 %v1952
      %v1954 = vpop.xlane.xlu0 %1953
      %v1955 = vadd.f32 %v1846, %v1848
      %1956 = vadd.xlane.f32.xlu0 %v1955
      %v1957 = vpop.xlane.xlu0 %1956
      %v1958 = vadd.f32 %v1850, %v1852
      %1959 = vadd.xlane.f32.xlu0 %v1958
      %v1960 = vpop.xlane.xlu0 %1959
      %v1961 = vadd.f32 %v1854, %v1856
      %1962 = vadd.xlane.f32.xlu0 %v1961
      %v1963 = vpop.xlane.xlu0 %1962
      %v1964 = vadd.f32 %v1858, %v1860
      %1965 = vadd.xlane.f32.xlu0 %v1964
      %v1966 = vpop.xlane.xlu0 %1965
      %v1967 = vadd.f32 %v1862, %v1864
      %1968 = vadd.xlane.f32.xlu0 %v1967
      %v1969 = vpop.xlane.xlu0 %1968
      %v1970 = vadd.f32 %v1866, %v1868
      %1971 = vadd.xlane.f32.xlu0 %v1970
      %v1972 = vpop.xlane.xlu0 %1971
      %v1973 = vadd.f32 %v1870, %v1872
      %1974 = vadd.xlane.f32.xlu0 %v1973
      %v1975 = vpop.xlane.xlu0 %1974
      %v1976 = vadd.f32 %v1874, %v1876
      %1977 = vadd.xlane.f32.xlu0 %v1976
      %v1978 = vpop.xlane.xlu0 %1977
      %v1979 = vadd.f32 %v1878, %v1880
      %1980 = vadd.xlane.f32.xlu0 %v1979
      %v1981 = vpop.xlane.xlu0 %1980
      %v1982 = vadd.f32 %v1882, %v1884
      %1983 = vadd.xlane.f32.xlu0 %v1982
      %v1984 = vpop.xlane.xlu0 %1983
      %v1985 = vadd.f32 %v1886, %v1888
      %1986 = vadd.xlane.f32.xlu0 %v1985
      %v1987 = vpop.xlane.xlu0 %1986
      %v1988 = vadd.f32 %v1890, %v1892
      %1989 = vadd.xlane.f32.xlu0 %v1988
      %v1990 = vpop.xlane.xlu0 %1989
      %v1991 = vadd.f32 %v1894, %v1896
      %1992 = vadd.xlane.f32.xlu0 %v1991
      %v1993 = vpop.xlane.xlu0 %1992
      %v1994 = vadd.f32 %v1898, %v1900
      %1995 = vadd.xlane.f32.xlu0 %v1994
      %v1996 = vpop.xlane.xlu0 %1995
      %v1997 = vrcp.pop %v1903
      %v1998 = vrcp.pop %v1906
      %v1999 = vrcp.pop %v1909
      %v2000 = vrcp.pop %v1912
      %v2001 = vrcp.pop %v1915
      %v2002 = vrcp.pop %v1918
      %v2003 = vrcp.pop %v1921
      %v2004 = vrcp.pop %v1924
      %v2005 = vrcp.pop %v1927
      %v2006 = vrcp.pop %v1930
      %v2007 = vrcp.pop %v1933
      %v2008 = vrcp.pop %v1936
      %v2009 = vrcp.pop %v1939
      %v2010 = vrcp.pop %v1942
      %v2011 = vrcp.pop %v1945
      %v2012 = vrcp.pop %v1948
      %v2013 = vrcp.pop %v1951
      %v2014 = vrcp.pop %v1954
      %v2015 = vrcp.pop %v1957
      %v2016 = vrcp.pop %v1960
      %v2017 = vrcp.pop %v1963
      %v2018 = vrcp.pop %v1966
      %v2019 = vrcp.pop %v1969
      %v2020 = vrcp.pop %v1972
      %v2021 = vrcp.pop %v1975
      %v2022 = vrcp.pop %v1978
      %v2023 = vrcp.pop %v1981
      %v2024 = vrcp.pop %v1984
      %v2025 = vrcp.pop %v1987
      %v2026 = vrcp.pop %v1990
      %v2027 = vrcp.pop %v1993
      %v2028 = vrcp.pop %v1996
      %v2029 = vmul.f32 %v1774, %v1997
      %v2030 = vmul.f32 %v1776, %v1997
      %v2031 = vmul.f32 %v1778, %v1998
      %v2032 = vmul.f32 %v1780, %v1998
      %v2033 = vmul.f32 %v1782, %v1999
      %v2034 = vmul.f32 %v1784, %v1999
      %v2035 = vmul.f32 %v1786, %v2000
      %v2036 = vmul.f32 %v1788, %v2000
      %v2037 = vmul.f32 %v1790, %v2001
      %v2038 = vmul.f32 %v1792, %v2001
      %v2039 = vmul.f32 %v1794, %v2002
      %v2040 = vmul.f32 %v1796, %v2002
      %v2041 = vmul.f32 %v1798, %v2003
      %v2042 = vmul.f32 %v1800, %v2003
      %v2043 = vmul.f32 %v1802, %v2004
      %v2044 = vmul.f32 %v1804, %v2004
      %v2045 = vmul.f32 %v1806, %v2005
      %v2046 = vmul.f32 %v1808, %v2005
      %v2047 = vmul.f32 %v1810, %v2006
      %v2048 = vmul.f32 %v1812, %v2006
      %v2049 = vmul.f32 %v1814, %v2007
      %v2050 = vmul.f32 %v1816, %v2007
      %v2051 = vmul.f32 %v1818, %v2008
      %v2052 = vmul.f32 %v1820, %v2008
      %v2053 = vmul.f32 %v1822, %v2009
      %v2054 = vmul.f32 %v1824, %v2009
      %v2055 = vmul.f32 %v1826, %v2010
      %v2056 = vmul.f32 %v1828, %v2010
      %v2057 = vmul.f32 %v1830, %v2011
      %v2058 = vmul.f32 %v1832, %v2011
      %v2059 = vmul.f32 %v1834, %v2012
      %v2060 = vmul.f32 %v1836, %v2012
      %v2061 = vmul.f32 %v1838, %v2013
      %v2062 = vmul.f32 %v1840, %v2013
      %v2063 = vmul.f32 %v1842, %v2014
      %v2064 = vmul.f32 %v1844, %v2014
      %v2065 = vmul.f32 %v1846, %v2015
      %v2066 = vmul.f32 %v1848, %v2015
      %v2067 = vmul.f32 %v1850, %v2016
      %v2068 = vmul.f32 %v1852, %v2016
      %v2069 = vmul.f32 %v1854, %v2017
      %v2070 = vmul.f32 %v1856, %v2017
      %v2071 = vmul.f32 %v1858, %v2018
      %v2072 = vmul.f32 %v1860, %v2018
      %v2073 = vmul.f32 %v1862, %v2019
      %v2074 = vmul.f32 %v1864, %v2019
      %v2075 = vmul.f32 %v1866, %v2020
      %v2076 = vmul.f32 %v1868, %v2020
      %v2077 = vmul.f32 %v1870, %v2021
      %v2078 = vmul.f32 %v1872, %v2021
      %v2079 = vmul.f32 %v1874, %v2022
      %v2080 = vmul.f32 %v1876, %v2022
      %v2081 = vmul.f32 %v1878, %v2023
      %v2082 = vmul.f32 %v1880, %v2023
      %v2083 = vmul.f32 %v1882, %v2024
      %v2084 = vmul.f32 %v1884, %v2024
      %v2085 = vmul.f32 %v1886, %v2025
      %v2086 = vmul.f32 %v1888, %v2025
      %v2087 = vmul.f32 %v1890, %v2026
      %v2088 = vmul.f32 %v1892, %v2026
      %v2089 = vmul.f32 %v1894, %v2027
      %v2090 = vmul.f32 %v1896, %v2027
      %v2091 = vmul.f32 %v1898, %v2028
      %v2092 = vmul.f32 %v1900, %v2028
      %v2093 = vpack.c.bf16 %v2031, %v2029
      %v2094 = vpack.c.bf16 %v2032, %v2030
      %v2095 = vpack.c.bf16 %v2035, %v2033
      %v2096 = vpack.c.bf16 %v2036, %v2034
      %v2097 = vpack.c.bf16 %v2039, %v2037
      %v2098 = vpack.c.bf16 %v2040, %v2038
      %v2099 = vpack.c.bf16 %v2043, %v2041
      %v2100 = vpack.c.bf16 %v2044, %v2042
      %v2101 = vpack.c.bf16 %v2047, %v2045
      %v2102 = vpack.c.bf16 %v2048, %v2046
      %v2103 = vpack.c.bf16 %v2051, %v2049
      %v2104 = vpack.c.bf16 %v2052, %v2050
      %v2105 = vpack.c.bf16 %v2055, %v2053
      %v2106 = vpack.c.bf16 %v2056, %v2054
      %v2107 = vpack.c.bf16 %v2059, %v2057
      %v2108 = vpack.c.bf16 %v2060, %v2058
      %v2109 = vpack.c.bf16 %v2063, %v2061
      %v2110 = vpack.c.bf16 %v2064, %v2062
      %v2111 = vpack.c.bf16 %v2067, %v2065
      %v2112 = vpack.c.bf16 %v2068, %v2066
      %v2113 = vpack.c.bf16 %v2071, %v2069
      %v2114 = vpack.c.bf16 %v2072, %v2070
      %v2115 = vpack.c.bf16 %v2075, %v2073
      %v2116 = vpack.c.bf16 %v2076, %v2074
      %v2117 = vpack.c.bf16 %v2079, %v2077
      %v2118 = vpack.c.bf16 %v2080, %v2078
      %v2119 = vpack.c.bf16 %v2083, %v2081
      %v2120 = vpack.c.bf16 %v2084, %v2082
      %v2121 = vpack.c.bf16 %v2087, %v2085
      %v2122 = vpack.c.bf16 %v2088, %v2086
      %v2123 = vpack.c.bf16 %v2091, %v2089
      %v2124 = vpack.c.bf16 %v2092, %v2090
      %2125 = vmatpush.bf16.xpose.msra.mxu0 %v2107
      %2126 = vmatpush.bf16.xpose.msra.mxu0 %v2105
      %2127 = vmatpush.bf16.xpose.msra.mxu0 %v2103
      %2128 = vmatpush.bf16.xpose.msra.mxu0 %v2101
      %2129 = vmatpush.bf16.xpose.msra.mxu0 %v2099
      %2130 = vmatpush.bf16.xpose.msra.mxu0 %v2097
      %2131 = vmatpush.bf16.xpose.msra.mxu0 %v2095
      %2132 = vmatpush.bf16.xpose.msra.mxu0 %v2093
      %2133 = vmatmul.bf16.gmra.mxu0 %v1313
      %v2134 = vpop.f32.mrf.mxu0
      %v2135 = vadd.f32 0.0, %v2134
      %v2136 = vpop.f32.mrf.mxu0
      %2137 = vdwg.mxu0
      %2138 = vmatpush.bf16.xpose.msra.mxu0 %v2108
      %2139 = vmatpush.bf16.xpose.msra.mxu0 %v2106
      %2140 = vmatpush.bf16.xpose.msra.mxu0 %v2104
      %2141 = vmatpush.bf16.xpose.msra.mxu0 %v2102
      %2142 = vmatpush.bf16.xpose.msra.mxu0 %v2100
      %2143 = vmatpush.bf16.xpose.msra.mxu0 %v2098
      %2144 = vmatpush.bf16.xpose.msra.mxu0 %v2096
      %2145 = vmatpush.bf16.xpose.msra.mxu0 %v2094
      %2146 = vmatmul.bf16.gmra.mxu0 %v1314
      %v2147 = vpop.f32.mrf.mxu0
      %v2148 = vadd.f32 %v2135, %v2147
      %v2149 = vpop.f32.mrf.mxu0
      %2150 = vdwg.mxu0
      %2151 = vmatpush.bf16.xpose.msra.mxu0 %v2123
      %2152 = vmatpush.bf16.xpose.msra.mxu0 %v2121
      %2153 = vmatpush.bf16.xpose.msra.mxu0 %v2119
      %2154 = vmatpush.bf16.xpose.msra.mxu0 %v2117
      %2155 = vmatpush.bf16.xpose.msra.mxu0 %v2115
      %2156 = vmatpush.bf16.xpose.msra.mxu0 %v2113
      %2157 = vmatpush.bf16.xpose.msra.mxu0 %v2111
      %2158 = vmatpush.bf16.xpose.msra.mxu0 %v2109
      %2159 = vmatmul.bf16.gmra.mxu0 %v1313
      %v2160 = vpop.f32.mrf.mxu0
      %v2161 = vadd.f32 0.0, %v2160
      %v2162 = vpop.f32.mrf.mxu0
      %2163 = vdwg.mxu0
      %2164 = vmatpush.bf16.xpose.msra.mxu0 %v2124
      %2165 = vmatpush.bf16.xpose.msra.mxu0 %v2122
      %2166 = vmatpush.bf16.xpose.msra.mxu0 %v2120
      %2167 = vmatpush.bf16.xpose.msra.mxu0 %v2118
      %2168 = vmatpush.bf16.xpose.msra.mxu0 %v2116
      %2169 = vmatpush.bf16.xpose.msra.mxu0 %v2114
      %2170 = vmatpush.bf16.xpose.msra.mxu0 %v2112
      %2171 = vmatpush.bf16.xpose.msra.mxu0 %v2110
      %2172 = vmatmul.bf16.gmra.mxu0 %v1314
      %v2173 = vpop.f32.mrf.mxu0
      %v2174 = vadd.f32 %v2161, %v2173
      %v2175 = vpop.f32.mrf.mxu0
      %2176 = vdwg.mxu0
      %2177 = vst [vmem:[#allocation4] sm:$0x3] %v2148
      %2178 = vst [vmem:[#allocation4 + $0x8] sm:$0x3] %v2174
      %2195 = vrot.lane.b32.xlu0 %v1295, 126
      %v2196 = vpop.permute.xlu0 %2195
      %2197 = vrot.lane.b32.xlu0 %v1296, 126
      %v2198 = vpop.permute.xlu0 %2197
      %2199 = vrot.lane.b32.xlu0 %v1297, 126
      %v2200 = vpop.permute.xlu0 %2199
      %2201 = vrot.lane.b32.xlu0 %v1298, 126
      %v2202 = vpop.permute.xlu0 %2201
      %2203 = vrot.lane.b32.xlu0 %v1299, 126
      %v2204 = vpop.permute.xlu0 %2203
      %2205 = vrot.lane.b32.xlu0 %v1300, 126
      %v2206 = vpop.permute.xlu0 %2205
      %2207 = vrot.lane.b32.xlu0 %v1301, 126
      %v2208 = vpop.permute.xlu0 %2207
      %2209 = vrot.lane.b32.xlu0 %v1302, 126
      %v2210 = vpop.permute.xlu0 %2209
      %2211 = vrot.lane.b32.xlu0 %v1303, 126
      %v2212 = vpop.permute.xlu0 %2211
      %2213 = vrot.lane.b32.xlu0 %v1304, 126
      %v2214 = vpop.permute.xlu0 %2213
      %2215 = vrot.lane.b32.xlu0 %v1305, 126
      %v2216 = vpop.permute.xlu0 %2215
      %2217 = vrot.lane.b32.xlu0 %v1306, 126
      %v2218 = vpop.permute.xlu0 %2217
      %2219 = vrot.lane.b32.xlu0 %v1307, 126
      %v2220 = vpop.permute.xlu0 %2219
      %2221 = vrot.lane.b32.xlu0 %v1308, 126
      %v2222 = vpop.permute.xlu0 %2221
      %2223 = vrot.lane.b32.xlu0 %v1309, 126
      %v2224 = vpop.permute.xlu0 %2223
      %2225 = vrot.lane.b32.xlu0 %v1310, 126
      %v2226 = vpop.permute.xlu0 %2225
      %v2229 = vrot.slane %v1311, 1
      %v2230 = vrot.slane %v1312, 1
      %v2232 = vsel %vm1315, %v2196, 0
      %v2235 = vsel %vm1315, %v2198, 0
      %v2238 = vsel %vm1315, %v2200, 0
      %v2241 = vsel %vm1315, %v2202, 0
      %v2244 = vsel %vm1315, %v2204, 0
      %v2247 = vsel %vm1315, %v2206, 0
      %v2250 = vsel %vm1315, %v2208, 0
      %v2253 = vsel %vm1315, %v2210, 0
      %v2256 = vsel %vm1315, %v2212, 0
      %v2259 = vsel %vm1315, %v2214, 0
      %v2262 = vsel %vm1315, %v2216, 0
      %v2265 = vsel %vm1315, %v2218, 0
      %v2268 = vsel %vm1315, %v2220, 0
      %v2271 = vsel %vm1315, %v2222, 0
      %v2274 = vsel %vm1315, %v2224, 0
      %v2277 = vsel %vm1315, %v2226, 0
      %v2280 = vsel %vm1364, %v2229, 0
      %v2283 = vsel %vm1364, %v2230, 0
      %2285 = vmatpush.bf16.msra.mxu0 0
      %2286 = vmatpush.bf16.msra.mxu0 0
      %2287 = vmatpush.bf16.msra.mxu0 0
      %2288 = vmatpush.bf16.msra.mxu0 0
      %2289 = vmatpush.bf16.msra.mxu0 0
      %2290 = vmatpush.bf16.msra.mxu0 0
      %2291 = vmatpush.bf16.msra.mxu0 0
      %2292 = vmatpush.bf16.msra.mxu0 %v2280
      %2293 = vmatmul.bf16.gmra.mxu0 %v2232
      %v2294 = vpop.f32.mrf.mxu0
      %v2295 = vadd.f32 0.0, %v2294
      %v2296 = vpop.f32.mrf.mxu0
      %v2297 = vadd.f32 0.0, %v2296
      %2298 = vmatmul.bf16.gmra.mxu0 %v2235
      %v2299 = vpop.f32.mrf.mxu0
      %v2300 = vadd.f32 0.0, %v2299
      %v2301 = vpop.f32.mrf.mxu0
      %v2302 = vadd.f32 0.0, %v2301
      %2303 = vmatmul.bf16.gmra.mxu0 %v2238
      %v2304 = vpop.f32.mrf.mxu0
      %v2305 = vadd.f32 0.0, %v2304
      %v2306 = vpop.f32.mrf.mxu0
      %v2307 = vadd.f32 0.0, %v2306
      %2308 = vmatmul.bf16.gmra.mxu0 %v2241
      %v2309 = vpop.f32.mrf.mxu0
      %v2310 = vadd.f32 0.0, %v2309
      %v2311 = vpop.f32.mrf.mxu0
      %v2312 = vadd.f32 0.0, %v2311
      %2313 = vmatmul.bf16.gmra.mxu0 %v2244
      %v2314 = vpop.f32.mrf.mxu0
      %v2315 = vadd.f32 0.0, %v2314
      %v2316 = vpop.f32.mrf.mxu0
      %v2317 = vadd.f32 0.0, %v2316
      %2318 = vmatmul.bf16.gmra.mxu0 %v2247
      %v2319 = vpop.f32.mrf.mxu0
      %v2320 = vadd.f32 0.0, %v2319
      %v2321 = vpop.f32.mrf.mxu0
      %v2322 = vadd.f32 0.0, %v2321
      %2323 = vmatmul.bf16.gmra.mxu0 %v2250
      %v2324 = vpop.f32.mrf.mxu0
      %v2325 = vadd.f32 0.0, %v2324
      %v2326 = vpop.f32.mrf.mxu0
      %v2327 = vadd.f32 0.0, %v2326
      %2328 = vmatmul.bf16.gmra.mxu0 %v2253
      %v2329 = vpop.f32.mrf.mxu0
      %v2330 = vadd.f32 0.0, %v2329
      %v2331 = vpop.f32.mrf.mxu0
      %v2332 = vadd.f32 0.0, %v2331
      %2333 = vmatmul.bf16.gmra.mxu0 %v2256
      %v2334 = vpop.f32.mrf.mxu0
      %v2335 = vadd.f32 0.0, %v2334
      %v2336 = vpop.f32.mrf.mxu0
      %v2337 = vadd.f32 0.0, %v2336
      %2338 = vmatmul.bf16.gmra.mxu0 %v2259
      %v2339 = vpop.f32.mrf.mxu0
      %v2340 = vadd.f32 0.0, %v2339
      %v2341 = vpop.f32.mrf.mxu0
      %v2342 = vadd.f32 0.0, %v2341
      %2343 = vmatmul.bf16.gmra.mxu0 %v2262
      %v2344 = vpop.f32.mrf.mxu0
      %v2345 = vadd.f32 0.0, %v2344
      %v2346 = vpop.f32.mrf.mxu0
      %v2347 = vadd.f32 0.0, %v2346
      %2348 = vmatmul.bf16.gmra.mxu0 %v2265
      %v2349 = vpop.f32.mrf.mxu0
      %v2350 = vadd.f32 0.0, %v2349
      %v2351 = vpop.f32.mrf.mxu0
      %v2352 = vadd.f32 0.0, %v2351
      %2353 = vmatmul.bf16.gmra.mxu0 %v2268
      %v2354 = vpop.f32.mrf.mxu0
      %v2355 = vadd.f32 0.0, %v2354
      %v2356 = vpop.f32.mrf.mxu0
      %v2357 = vadd.f32 0.0, %v2356
      %2358 = vmatmul.bf16.gmra.mxu0 %v2271
      %v2359 = vpop.f32.mrf.mxu0
      %v2360 = vadd.f32 0.0, %v2359
      %v2361 = vpop.f32.mrf.mxu0
      %v2362 = vadd.f32 0.0, %v2361
      %2363 = vmatmul.bf16.gmra.mxu0 %v2274
      %v2364 = vpop.f32.mrf.mxu0
      %v2365 = vadd.f32 0.0, %v2364
      %v2366 = vpop.f32.mrf.mxu0
      %v2367 = vadd.f32 0.0, %v2366
      %2368 = vmatmul.bf16.gmra.mxu0 %v2277
      %v2369 = vpop.f32.mrf.mxu0
      %v2370 = vadd.f32 0.0, %v2369
      %v2371 = vpop.f32.mrf.mxu0
      %v2372 = vadd.f32 0.0, %v2371
      %2373 = vdwg.mxu0
      %2374 = vmatpush.bf16.msra.mxu0 0
      %2375 = vmatpush.bf16.msra.mxu0 0
      %2376 = vmatpush.bf16.msra.mxu0 0
      %2377 = vmatpush.bf16.msra.mxu0 0
      %2378 = vmatpush.bf16.msra.mxu0 0
      %2379 = vmatpush.bf16.msra.mxu0 0
      %2380 = vmatpush.bf16.msra.mxu0 0
      %2381 = vmatpush.bf16.msra.mxu0 %v2283
      %2382 = vmatmul.bf16.gmra.mxu0 %v2232
      %v2383 = vpop.f32.mrf.mxu0
      %v2384 = vadd.f32 0.0, %v2383
      %v2385 = vpop.f32.mrf.mxu0
      %v2386 = vadd.f32 0.0, %v2385
      %2387 = vmatmul.bf16.gmra.mxu0 %v2235
      %v2388 = vpop.f32.mrf.mxu0
      %v2389 = vadd.f32 0.0, %v2388
      %v2390 = vpop.f32.mrf.mxu0
      %v2391 = vadd.f32 0.0, %v2390
      %2392 = vmatmul.bf16.gmra.mxu0 %v2238
      %v2393 = vpop.f32.mrf.mxu0
      %v2394 = vadd.f32 0.0, %v2393
      %v2395 = vpop.f32.mrf.mxu0
      %v2396 = vadd.f32 0.0, %v2395
      %2397 = vmatmul.bf16.gmra.mxu0 %v2241
      %v2398 = vpop.f32.mrf.mxu0
      %v2399 = vadd.f32 0.0, %v2398
      %v2400 = vpop.f32.mrf.mxu0
      %v2401 = vadd.f32 0.0, %v2400
      %2402 = vmatmul.bf16.gmra.mxu0 %v2244
      %v2403 = vpop.f32.mrf.mxu0
      %v2404 = vadd.f32 0.0, %v2403
      %v2405 = vpop.f32.mrf.mxu0
      %v2406 = vadd.f32 0.0, %v2405
      %2407 = vmatmul.bf16.gmra.mxu0 %v2247
      %v2408 = vpop.f32.mrf.mxu0
      %v2409 = vadd.f32 0.0, %v2408
      %v2410 = vpop.f32.mrf.mxu0
      %v2411 = vadd.f32 0.0, %v2410
      %2412 = vmatmul.bf16.gmra.mxu0 %v2250
      %v2413 = vpop.f32.mrf.mxu0
      %v2414 = vadd.f32 0.0, %v2413
      %v2415 = vpop.f32.mrf.mxu0
      %v2416 = vadd.f32 0.0, %v2415
      %2417 = vmatmul.bf16.gmra.mxu0 %v2253
      %v2418 = vpop.f32.mrf.mxu0
      %v2419 = vadd.f32 0.0, %v2418
      %v2420 = vpop.f32.mrf.mxu0
      %v2421 = vadd.f32 0.0, %v2420
      %2422 = vmatmul.bf16.gmra.mxu0 %v2256
      %v2423 = vpop.f32.mrf.mxu0
      %v2424 = vadd.f32 0.0, %v2423
      %v2425 = vpop.f32.mrf.mxu0
      %v2426 = vadd.f32 0.0, %v2425
      %2427 = vmatmul.bf16.gmra.mxu0 %v2259
      %v2428 = vpop.f32.mrf.mxu0
      %v2429 = vadd.f32 0.0, %v2428
      %v2430 = vpop.f32.mrf.mxu0
      %v2431 = vadd.f32 0.0, %v2430
      %2432 = vmatmul.bf16.gmra.mxu0 %v2262
      %v2433 = vpop.f32.mrf.mxu0
      %v2434 = vadd.f32 0.0, %v2433
      %v2435 = vpop.f32.mrf.mxu0
      %v2436 = vadd.f32 0.0, %v2435
      %2437 = vmatmul.bf16.gmra.mxu0 %v2265
      %v2438 = vpop.f32.mrf.mxu0
      %v2439 = vadd.f32 0.0, %v2438
      %v2440 = vpop.f32.mrf.mxu0
      %v2441 = vadd.f32 0.0, %v2440
      %2442 = vmatmul.bf16.gmra.mxu0 %v2268
      %v2443 = vpop.f32.mrf.mxu0
      %v2444 = vadd.f32 0.0, %v2443
      %v2445 = vpop.f32.mrf.mxu0
      %v2446 = vadd.f32 0.0, %v2445
      %2447 = vmatmul.bf16.gmra.mxu0 %v2271
      %v2448 = vpop.f32.mrf.mxu0
      %v2449 = vadd.f32 0.0, %v2448
      %v2450 = vpop.f32.mrf.mxu0
      %v2451 = vadd.f32 0.0, %v2450
      %2452 = vmatmul.bf16.gmra.mxu0 %v2274
      %v2453 = vpop.f32.mrf.mxu0
      %v2454 = vadd.f32 0.0, %v2453
      %v2455 = vpop.f32.mrf.mxu0
      %v2456 = vadd.f32 0.0, %v2455
      %2457 = vmatmul.bf16.gmra.mxu0 %v2277
      %v2458 = vpop.f32.mrf.mxu0
      %v2459 = vadd.f32 0.0, %v2458
      %v2460 = vpop.f32.mrf.mxu0
      %v2461 = vadd.f32 0.0, %v2460
      %2462 = vdwg.mxu0
      %v2463 = vmul.f32 %v2295, 0.70710677
      %v2464 = vmul.f32 %v2384, 0.70710677
      %v2465 = vmul.f32 %v2297, 0.70710677
      %v2466 = vmul.f32 %v2386, 0.70710677
      %v2467 = vmul.f32 %v2300, 0.70710677
      %v2468 = vmul.f32 %v2389, 0.70710677
      %v2469 = vmul.f32 %v2302, 0.70710677
      %v2470 = vmul.f32 %v2391, 0.70710677
      %v2471 = vmul.f32 %v2305, 0.70710677
      %v2472 = vmul.f32 %v2394, 0.70710677
      %v2473 = vmul.f32 %v2307, 0.70710677
      %v2474 = vmul.f32 %v2396, 0.70710677
      %v2475 = vmul.f32 %v2310, 0.70710677
      %v2476 = vmul.f32 %v2399, 0.70710677
      %v2477 = vmul.f32 %v2312, 0.70710677
      %v2478 = vmul.f32 %v2401, 0.70710677
      %v2479 = vmul.f32 %v2315, 0.70710677
      %v2480 = vmul.f32 %v2404, 0.70710677
      %v2481 = vmul.f32 %v2317, 0.70710677
      %v2482 = vmul.f32 %v2406, 0.70710677
      %v2483 = vmul.f32 %v2320, 0.70710677
      %v2484 = vmul.f32 %v2409, 0.70710677
      %v2485 = vmul.f32 %v2322, 0.70710677
      %v2486 = vmul.f32 %v2411, 0.70710677
      %v2487 = vmul.f32 %v2325, 0.70710677
      %v2488 = vmul.f32 %v2414, 0.70710677
      %v2489 = vmul.f32 %v2327, 0.70710677
      %v2490 = vmul.f32 %v2416, 0.70710677
      %v2491 = vmul.f32 %v2330, 0.70710677
      %v2492 = vmul.f32 %v2419, 0.70710677
      %v2493 = vmul.f32 %v2332, 0.70710677
      %v2494 = vmul.f32 %v2421, 0.70710677
      %v2495 = vmul.f32 %v2335, 0.70710677
      %v2496 = vmul.f32 %v2424, 0.70710677
      %v2497 = vmul.f32 %v2337, 0.70710677
      %v2498 = vmul.f32 %v2426, 0.70710677
      %v2499 = vmul.f32 %v2340, 0.70710677
      %v2500 = vmul.f32 %v2429, 0.70710677
      %v2501 = vmul.f32 %v2342, 0.70710677
      %v2502 = vmul.f32 %v2431, 0.70710677
      %v2503 = vmul.f32 %v2345, 0.70710677
      %v2504 = vmul.f32 %v2434, 0.70710677
      %v2505 = vmul.f32 %v2347, 0.70710677
      %v2506 = vmul.f32 %v2436, 0.70710677
      %v2507 = vmul.f32 %v2350, 0.70710677
      %v2508 = vmul.f32 %v2439, 0.70710677
      %v2509 = vmul.f32 %v2352, 0.70710677
      %v2510 = vmul.f32 %v2441, 0.70710677
      %v2511 = vmul.f32 %v2355, 0.70710677
      %v2512 = vmul.f32 %v2444, 0.70710677
      %v2513 = vmul.f32 %v2357, 0.70710677
      %v2514 = vmul.f32 %v2446, 0.70710677
      %v2515 = vmul.f32 %v2360, 0.70710677
      %v2516 = vmul.f32 %v2449, 0.70710677
      %v2517 = vmul.f32 %v2362, 0.70710677
      %v2518 = vmul.f32 %v2451, 0.70710677
      %v2519 = vmul.f32 %v2365, 0.70710677
      %v2520 = vmul.f32 %v2454, 0.70710677
      %v2521 = vmul.f32 %v2367, 0.70710677
      %v2522 = vmul.f32 %v2456, 0.70710677
      %v2523 = vmul.f32 %v2370, 0.70710677
      %v2524 = vmul.f32 %v2459, 0.70710677
      %v2525 = vmul.f32 %v2372, 0.70710677
      %v2526 = vmul.f32 %v2461, 0.70710677
      %v2527 = vmax.f32 %v2463, %v2464
      %2528 = vmax.xlane.f32.xlu0 %v2527
      %v2529 = vpop.xlane.xlu0 %2528
      %v2530 = vmax.f32 %v2465, %v2466
      %2531 = vmax.xlane.f32.xlu0 %v2530
      %v2532 = vpop.xlane.xlu0 %2531
      %v2533 = vmax.f32 %v2467, %v2468
      %2534 = vmax.xlane.f32.xlu0 %v2533
      %v2535 = vpop.xlane.xlu0 %2534
      %v2536 = vmax.f32 %v2469, %v2470
      %2537 = vmax.xlane.f32.xlu0 %v2536
      %v2538 = vpop.xlane.xlu0 %2537
      %v2539 = vmax.f32 %v2471, %v2472
      %2540 = vmax.xlane.f32.xlu0 %v2539
      %v2541 = vpop.xlane.xlu0 %2540
      %v2542 = vmax.f32 %v2473, %v2474
      %2543 = vmax.xlane.f32.xlu0 %v2542
      %v2544 = vpop.xlane.xlu0 %2543
      %v2545 = vmax.f32 %v2475, %v2476
      %2546 = vmax.xlane.f32.xlu0 %v2545
      %v2547 = vpop.xlane.xlu0 %2546
      %v2548 = vmax.f32 %v2477, %v2478
      %2549 = vmax.xlane.f32.xlu0 %v2548
      %v2550 = vpop.xlane.xlu0 %2549
      %v2551 = vmax.f32 %v2479, %v2480
      %2552 = vmax.xlane.f32.xlu0 %v2551
      %v2553 = vpop.xlane.xlu0 %2552
      %v2554 = vmax.f32 %v2481, %v2482
      %2555 = vmax.xlane.f32.xlu0 %v2554
      %v2556 = vpop.xlane.xlu0 %2555
      %v2557 = vmax.f32 %v2483, %v2484
      %2558 = vmax.xlane.f32.xlu0 %v2557
      %v2559 = vpop.xlane.xlu0 %2558
      %v2560 = vmax.f32 %v2485, %v2486
      %2561 = vmax.xlane.f32.xlu0 %v2560
      %v2562 = vpop.xlane.xlu0 %2561
      %v2563 = vmax.f32 %v2487, %v2488
      %2564 = vmax.xlane.f32.xlu0 %v2563
      %v2565 = vpop.xlane.xlu0 %2564
      %v2566 = vmax.f32 %v2489, %v2490
      %2567 = vmax.xlane.f32.xlu0 %v2566
      %v2568 = vpop.xlane.xlu0 %2567
      %v2569 = vmax.f32 %v2491, %v2492
      %2570 = vmax.xlane.f32.xlu0 %v2569
      %v2571 = vpop.xlane.xlu0 %2570
      %v2572 = vmax.f32 %v2493, %v2494
      %2573 = vmax.xlane.f32.xlu0 %v2572
      %v2574 = vpop.xlane.xlu0 %2573
      %v2575 = vmax.f32 %v2495, %v2496
      %2576 = vmax.xlane.f32.xlu0 %v2575
      %v2577 = vpop.xlane.xlu0 %2576
      %v2578 = vmax.f32 %v2497, %v2498
      %2579 = vmax.xlane.f32.xlu0 %v2578
      %v2580 = vpop.xlane.xlu0 %2579
      %v2581 = vmax.f32 %v2499, %v2500
      %2582 = vmax.xlane.f32.xlu0 %v2581
      %v2583 = vpop.xlane.xlu0 %2582
      %v2584 = vmax.f32 %v2501, %v2502
      %2585 = vmax.xlane.f32.xlu0 %v2584
      %v2586 = vpop.xlane.xlu0 %2585
      %v2587 = vmax.f32 %v2503, %v2504
      %2588 = vmax.xlane.f32.xlu0 %v2587
      %v2589 = vpop.xlane.xlu0 %2588
      %v2590 = vmax.f32 %v2505, %v2506
      %2591 = vmax.xlane.f32.xlu0 %v2590
      %v2592 = vpop.xlane.xlu0 %2591
      %v2593 = vmax.f32 %v2507, %v2508
      %2594 = vmax.xlane.f32.xlu0 %v2593
      %v2595 = vpop.xlane.xlu0 %2594
      %v2596 = vmax.f32 %v2509, %v2510
      %2597 = vmax.xlane.f32.xlu0 %v2596
      %v2598 = vpop.xlane.xlu0 %2597
      %v2599 = vmax.f32 %v2511, %v2512
      %2600 = vmax.xlane.f32.xlu0 %v2599
      %v2601 = vpop.xlane.xlu0 %2600
      %v2602 = vmax.f32 %v2513, %v2514
      %2603 = vmax.xlane.f32.xlu0 %v2602
      %v2604 = vpop.xlane.xlu0 %2603
      %v2605 = vmax.f32 %v2515, %v2516
      %2606 = vmax.xlane.f32.xlu0 %v2605
      %v2607 = vpop.xlane.xlu0 %2606
      %v2608 = vmax.f32 %v2517, %v2518
      %2609 = vmax.xlane.f32.xlu0 %v2608
      %v2610 = vpop.xlane.xlu0 %2609
      %v2611 = vmax.f32 %v2519, %v2520
      %2612 = vmax.xlane.f32.xlu0 %v2611
      %v2613 = vpop.xlane.xlu0 %2612
      %v2614 = vmax.f32 %v2521, %v2522
      %2615 = vmax.xlane.f32.xlu0 %v2614
      %v2616 = vpop.xlane.xlu0 %2615
      %v2617 = vmax.f32 %v2523, %v2524
      %2618 = vmax.xlane.f32.xlu0 %v2617
      %v2619 = vpop.xlane.xlu0 %2618
      %v2620 = vmax.f32 %v2525, %v2526
      %2621 = vmax.xlane.f32.xlu0 %v2620
      %v2622 = vpop.xlane.xlu0 %2621
      %v2623 = vsub.f32 %v2463, %v2529
      %v2624 = vsub.f32 %v2464, %v2529
      %v2625 = vsub.f32 %v2465, %v2532
      %v2626 = vsub.f32 %v2466, %v2532
      %v2627 = vsub.f32 %v2467, %v2535
      %v2628 = vsub.f32 %v2468, %v2535
      %v2629 = vsub.f32 %v2469, %v2538
      %v2630 = vsub.f32 %v2470, %v2538
      %v2631 = vsub.f32 %v2471, %v2541
      %v2632 = vsub.f32 %v2472, %v2541
      %v2633 = vsub.f32 %v2473, %v2544
      %v2634 = vsub.f32 %v2474, %v2544
      %v2635 = vsub.f32 %v2475, %v2547
      %v2636 = vsub.f32 %v2476, %v2547
      %v2637 = vsub.f32 %v2477, %v2550
      %v2638 = vsub.f32 %v2478, %v2550
      %v2639 = vsub.f32 %v2479, %v2553
      %v2640 = vsub.f32 %v2480, %v2553
      %v2641 = vsub.f32 %v2481, %v2556
      %v2642 = vsub.f32 %v2482, %v2556
      %v2643 = vsub.f32 %v2483, %v2559
      %v2644 = vsub.f32 %v2484, %v2559
      %v2645 = vsub.f32 %v2485, %v2562
      %v2646 = vsub.f32 %v2486, %v2562
      %v2647 = vsub.f32 %v2487, %v2565
      %v2648 = vsub.f32 %v2488, %v2565
      %v2649 = vsub.f32 %v2489, %v2568
      %v2650 = vsub.f32 %v2490, %v2568
      %v2651 = vsub.f32 %v2491, %v2571
      %v2652 = vsub.f32 %v2492, %v2571
      %v2653 = vsub.f32 %v2493, %v2574
      %v2654 = vsub.f32 %v2494, %v2574
      %v2655 = vsub.f32 %v2495, %v2577
      %v2656 = vsub.f32 %v2496, %v2577
      %v2657 = vsub.f32 %v2497, %v2580
      %v2658 = vsub.f32 %v2498, %v2580
      %v2659 = vsub.f32 %v2499, %v2583
      %v2660 = vsub.f32 %v2500, %v2583
      %v2661 = vsub.f32 %v2501, %v2586
      %v2662 = vsub.f32 %v2502, %v2586
      %v2663 = vsub.f32 %v2503, %v2589
      %v2664 = vsub.f32 %v2504, %v2589
      %v2665 = vsub.f32 %v2505, %v2592
      %v2666 = vsub.f32 %v2506, %v2592
      %v2667 = vsub.f32 %v2507, %v2595
      %v2668 = vsub.f32 %v2508, %v2595
      %v2669 = vsub.f32 %v2509, %v2598
      %v2670 = vsub.f32 %v2510, %v2598
      %v2671 = vsub.f32 %v2511, %v2601
      %v2672 = vsub.f32 %v2512, %v2601
      %v2673 = vsub.f32 %v2513, %v2604
      %v2674 = vsub.f32 %v2514, %v2604
      %v2675 = vsub.f32 %v2515, %v2607
      %v2676 = vsub.f32 %v2516, %v2607
      %v2677 = vsub.f32 %v2517, %v2610
      %v2678 = vsub.f32 %v2518, %v2610
      %v2679 = vsub.f32 %v2519, %v2613
      %v2680 = vsub.f32 %v2520, %v2613
      %v2681 = vsub.f32 %v2521, %v2616
      %v2682 = vsub.f32 %v2522, %v2616
      %v2683 = vsub.f32 %v2523, %v2619
      %v2684 = vsub.f32 %v2524, %v2619
      %v2685 = vsub.f32 %v2525, %v2622
      %v2686 = vsub.f32 %v2526, %v2622
      %v2687 = vmul.f32 %v2623, 1.442695
      %v2688 = vpow.pop %v2687
      %v2689 = vmul.f32 %v2624, 1.442695
      %v2690 = vpow.pop %v2689
      %v2691 = vmul.f32 %v2625, 1.442695
      %v2692 = vpow.pop %v2691
      %v2693 = vmul.f32 %v2626, 1.442695
      %v2694 = vpow.pop %v2693
      %v2695 = vmul.f32 %v2627, 1.442695
      %v2696 = vpow.pop %v2695
      %v2697 = vmul.f32 %v2628, 1.442695
      %v2698 = vpow.pop %v2697
      %v2699 = vmul.f32 %v2629, 1.442695
      %v2700 = vpow.pop %v2699
      %v2701 = vmul.f32 %v2630, 1.442695
      %v2702 = vpow.pop %v2701
      %v2703 = vmul.f32 %v2631, 1.442695
      %v2704 = vpow.pop %v2703
      %v2705 = vmul.f32 %v2632, 1.442695
      %v2706 = vpow.pop %v2705
      %v2707 = vmul.f32 %v2633, 1.442695
      %v2708 = vpow.pop %v2707
      %v2709 = vmul.f32 %v2634, 1.442695
      %v2710 = vpow.pop %v2709
      %v2711 = vmul.f32 %v2635, 1.442695
      %v2712 = vpow.pop %v2711
      %v2713 = vmul.f32 %v2636, 1.442695
      %v2714 = vpow.pop %v2713
      %v2715 = vmul.f32 %v2637, 1.442695
      %v2716 = vpow.pop %v2715
      %v2717 = vmul.f32 %v2638, 1.442695
      %v2718 = vpow.pop %v2717
      %v2719 = vmul.f32 %v2639, 1.442695
      %v2720 = vpow.pop %v2719
      %v2721 = vmul.f32 %v2640, 1.442695
      %v2722 = vpow.pop %v2721
      %v2723 = vmul.f32 %v2641, 1.442695
      %v2724 = vpow.pop %v2723
      %v2725 = vmul.f32 %v2642, 1.442695
      %v2726 = vpow.pop %v2725
      %v2727 = vmul.f32 %v2643, 1.442695
      %v2728 = vpow.pop %v2727
      %v2729 = vmul.f32 %v2644, 1.442695
      %v2730 = vpow.pop %v2729
      %v2731 = vmul.f32 %v2645, 1.442695
      %v2732 = vpow.pop %v2731
      %v2733 = vmul.f32 %v2646, 1.442695
      %v2734 = vpow.pop %v2733
      %v2735 = vmul.f32 %v2647, 1.442695
      %v2736 = vpow.pop %v2735
      %v2737 = vmul.f32 %v2648, 1.442695
      %v2738 = vpow.pop %v2737
      %v2739 = vmul.f32 %v2649, 1.442695
      %v2740 = vpow.pop %v2739
      %v2741 = vmul.f32 %v2650, 1.442695
      %v2742 = vpow.pop %v2741
      %v2743 = vmul.f32 %v2651, 1.442695
      %v2744 = vpow.pop %v2743
      %v2745 = vmul.f32 %v2652, 1.442695
      %v2746 = vpow.pop %v2745
      %v2747 = vmul.f32 %v2653, 1.442695
      %v2748 = vpow.pop %v2747
      %v2749 = vmul.f32 %v2654, 1.442695
      %v2750 = vpow.pop %v2749
      %v2751 = vmul.f32 %v2655, 1.442695
      %v2752 = vpow.pop %v2751
      %v2753 = vmul.f32 %v2656, 1.442695
      %v2754 = vpow.pop %v2753
      %v2755 = vmul.f32 %v2657, 1.442695
      %v2756 = vpow.pop %v2755
      %v2757 = vmul.f32 %v2658, 1.442695
      %v2758 = vpow.pop %v2757
      %v2759 = vmul.f32 %v2659, 1.442695
      %v2760 = vpow.pop %v2759
      %v2761 = vmul.f32 %v2660, 1.442695
      %v2762 = vpow.pop %v2761
      %v2763 = vmul.f32 %v2661, 1.442695
      %v2764 = vpow.pop %v2763
      %v2765 = vmul.f32 %v2662, 1.442695
      %v2766 = vpow.pop %v2765
      %v2767 = vmul.f32 %v2663, 1.442695
      %v2768 = vpow.pop %v2767
      %v2769 = vmul.f32 %v2664, 1.442695
      %v2770 = vpow.pop %v2769
      %v2771 = vmul.f32 %v2665, 1.442695
      %v2772 = vpow.pop %v2771
      %v2773 = vmul.f32 %v2666, 1.442695
      %v2774 = vpow.pop %v2773
      %v2775 = vmul.f32 %v2667, 1.442695
      %v2776 = vpow.pop %v2775
      %v2777 = vmul.f32 %v2668, 1.442695
      %v2778 = vpow.pop %v2777
      %v2779 = vmul.f32 %v2669, 1.442695
      %v2780 = vpow.pop %v2779
      %v2781 = vmul.f32 %v2670, 1.442695
      %v2782 = vpow.pop %v2781
      %v2783 = vmul.f32 %v2671, 1.442695
      %v2784 = vpow.pop %v2783
      %v2785 = vmul.f32 %v2672, 1.442695
      %v2786 = vpow.pop %v2785
      %v2787 = vmul.f32 %v2673, 1.442695
      %v2788 = vpow.pop %v2787
      %v2789 = vmul.f32 %v2674, 1.442695
      %v2790 = vpow.pop %v2789
      %v2791 = vmul.f32 %v2675, 1.442695
      %v2792 = vpow.pop %v2791
      %v2793 = vmul.f32 %v2676, 1.442695
      %v2794 = vpow.pop %v2793
      %v2795 = vmul.f32 %v2677, 1.442695
      %v2796 = vpow.pop %v2795
      %v2797 = vmul.f32 %v2678, 1.442695
      %v2798 = vpow.pop %v2797
      %v2799 = vmul.f32 %v2679, 1.442695
      %v2800 = vpow.pop %v2799
      %v2801 = vmul.f32 %v2680, 1.442695
      %v2802 = vpow.pop %v2801
      %v2803 = vmul.f32 %v2681, 1.442695
      %v2804 = vpow.pop %v2803
      %v2805 = vmul.f32 %v2682, 1.442695
      %v2806 = vpow.pop %v2805
      %v2807 = vmul.f32 %v2683, 1.442695
      %v2808 = vpow.pop %v2807
      %v2809 = vmul.f32 %v2684, 1.442695
      %v2810 = vpow.pop %v2809
      %v2811 = vmul.f32 %v2685, 1.442695
      %v2812 = vpow.pop %v2811
      %v2813 = vmul.f32 %v2686, 1.442695
      %v2814 = vpow.pop %v2813
      %v2815 = vadd.f32 %v2688, %v2690
      %2816 = vadd.xlane.f32.xlu0 %v2815
      %v2817 = vpop.xlane.xlu0 %2816
      %v2818 = vadd.f32 %v2692, %v2694
      %2819 = vadd.xlane.f32.xlu0 %v2818
      %v2820 = vpop.xlane.xlu0 %2819
      %v2821 = vadd.f32 %v2696, %v2698
      %2822 = vadd.xlane.f32.xlu0 %v2821
      %v2823 = vpop.xlane.xlu0 %2822
      %v2824 = vadd.f32 %v2700, %v2702
      %2825 = vadd.xlane.f32.xlu0 %v2824
      %v2826 = vpop.xlane.xlu0 %2825
      %v2827 = vadd.f32 %v2704, %v2706
      %2828 = vadd.xlane.f32.xlu0 %v2827
      %v2829 = vpop.xlane.xlu0 %2828
      %v2830 = vadd.f32 %v2708, %v2710
      %2831 = vadd.xlane.f32.xlu0 %v2830
      %v2832 = vpop.xlane.xlu0 %2831
      %v2833 = vadd.f32 %v2712, %v2714
      %2834 = vadd.xlane.f32.xlu0 %v2833
      %v2835 = vpop.xlane.xlu0 %2834
      %v2836 = vadd.f32 %v2716, %v2718
      %2837 = vadd.xlane.f32.xlu0 %v2836
      %v2838 = vpop.xlane.xlu0 %2837
      %v2839 = vadd.f32 %v2720, %v2722
      %2840 = vadd.xlane.f32.xlu0 %v2839
      %v2841 = vpop.xlane.xlu0 %2840
      %v2842 = vadd.f32 %v2724, %v2726
      %2843 = vadd.xlane.f32.xlu0 %v2842
      %v2844 = vpop.xlane.xlu0 %2843
      %v2845 = vadd.f32 %v2728, %v2730
      %2846 = vadd.xlane.f32.xlu0 %v2845
      %v2847 = vpop.xlane.xlu0 %2846
      %v2848 = vadd.f32 %v2732, %v2734
      %2849 = vadd.xlane.f32.xlu0 %v2848
      %v2850 = vpop.xlane.xlu0 %2849
      %v2851 = vadd.f32 %v2736, %v2738
      %2852 = vadd.xlane.f32.xlu0 %v2851
      %v2853 = vpop.xlane.xlu0 %2852
      %v2854 = vadd.f32 %v2740, %v2742
      %2855 = vadd.xlane.f32.xlu0 %v2854
      %v2856 = vpop.xlane.xlu0 %2855
      %v2857 = vadd.f32 %v2744, %v2746
      %2858 = vadd.xlane.f32.xlu0 %v2857
      %v2859 = vpop.xlane.xlu0 %2858
      %v2860 = vadd.f32 %v2748, %v2750
      %2861 = vadd.xlane.f32.xlu0 %v2860
      %v2862 = vpop.xlane.xlu0 %2861
      %v2863 = vadd.f32 %v2752, %v2754
      %2864 = vadd.xlane.f32.xlu0 %v2863
      %v2865 = vpop.xlane.xlu0 %2864
      %v2866 = vadd.f32 %v2756, %v2758
      %2867 = vadd.xlane.f32.xlu0 %v2866
      %v2868 = vpop.xlane.xlu0 %2867
      %v2869 = vadd.f32 %v2760, %v2762
      %2870 = vadd.xlane.f32.xlu0 %v2869
      %v2871 = vpop.xlane.xlu0 %2870
      %v2872 = vadd.f32 %v2764, %v2766
      %2873 = vadd.xlane.f32.xlu0 %v2872
      %v2874 = vpop.xlane.xlu0 %2873
      %v2875 = vadd.f32 %v2768, %v2770
      %2876 = vadd.xlane.f32.xlu0 %v2875
      %v2877 = vpop.xlane.xlu0 %2876
      %v2878 = vadd.f32 %v2772, %v2774
      %2879 = vadd.xlane.f32.xlu0 %v2878
      %v2880 = vpop.xlane.xlu0 %2879
      %v2881 = vadd.f32 %v2776, %v2778
      %2882 = vadd.xlane.f32.xlu0 %v2881
      %v2883 = vpop.xlane.xlu0 %2882
      %v2884 = vadd.f32 %v2780, %v2782
      %2885 = vadd.xlane.f32.xlu0 %v2884
      %v2886 = vpop.xlane.xlu0 %2885
      %v2887 = vadd.f32 %v2784, %v2786
      %2888 = vadd.xlane.f32.xlu0 %v2887
      %v2889 = vpop.xlane.xlu0 %2888
      %v2890 = vadd.f32 %v2788, %v2790
      %2891 = vadd.xlane.f32.xlu0 %v2890
      %v2892 = vpop.xlane.xlu0 %2891
      %v2893 = vadd.f32 %v2792, %v2794
      %2894 = vadd.xlane.f32.xlu0 %v2893
      %v2895 = vpop.xlane.xlu0 %2894
      %v2896 = vadd.f32 %v2796, %v2798
      %2897 = vadd.xlane.f32.xlu0 %v2896
      %v2898 = vpop.xlane.xlu0 %2897
      %v2899 = vadd.f32 %v2800, %v2802
      %2900 = vadd.xlane.f32.xlu0 %v2899
      %v2901 = vpop.xlane.xlu0 %2900
      %v2902 = vadd.f32 %v2804, %v2806
      %2903 = vadd.xlane.f32.xlu0 %v2902
      %v2904 = vpop.xlane.xlu0 %2903
      %v2905 = vadd.f32 %v2808, %v2810
      %2906 = vadd.xlane.f32.xlu0 %v2905
      %v2907 = vpop.xlane.xlu0 %2906
      %v2908 = vadd.f32 %v2812, %v2814
      %2909 = vadd.xlane.f32.xlu0 %v2908
      %v2910 = vpop.xlane.xlu0 %2909
      %v2911 = vrcp.pop %v2817
      %v2912 = vrcp.pop %v2820
      %v2913 = vrcp.pop %v2823
      %v2914 = vrcp.pop %v2826
      %v2915 = vrcp.pop %v2829
      %v2916 = vrcp.pop %v2832
      %v2917 = vrcp.pop %v2835
      %v2918 = vrcp.pop %v2838
      %v2919 = vrcp.pop %v2841
      %v2920 = vrcp.pop %v2844
      %v2921 = vrcp.pop %v2847
      %v2922 = vrcp.pop %v2850
      %v2923 = vrcp.pop %v2853
      %v2924 = vrcp.pop %v2856
      %v2925 = vrcp.pop %v2859
      %v2926 = vrcp.pop %v2862
      %v2927 = vrcp.pop %v2865
      %v2928 = vrcp.pop %v2868
      %v2929 = vrcp.pop %v2871
      %v2930 = vrcp.pop %v2874
      %v2931 = vrcp.pop %v2877
      %v2932 = vrcp.pop %v2880
      %v2933 = vrcp.pop %v2883
      %v2934 = vrcp.pop %v2886
      %v2935 = vrcp.pop %v2889
      %v2936 = vrcp.pop %v2892
      %v2937 = vrcp.pop %v2895
      %v2938 = vrcp.pop %v2898
      %v2939 = vrcp.pop %v2901
      %v2940 = vrcp.pop %v2904
      %v2941 = vrcp.pop %v2907
      %v2942 = vrcp.pop %v2910
      %v2943 = vmul.f32 %v2688, %v2911
      %v2944 = vmul.f32 %v2690, %v2911
      %v2945 = vmul.f32 %v2692, %v2912
      %v2946 = vmul.f32 %v2694, %v2912
      %v2947 = vmul.f32 %v2696, %v2913
      %v2948 = vmul.f32 %v2698, %v2913
      %v2949 = vmul.f32 %v2700, %v2914
      %v2950 = vmul.f32 %v2702, %v2914
      %v2951 = vmul.f32 %v2704, %v2915
      %v2952 = vmul.f32 %v2706, %v2915
      %v2953 = vmul.f32 %v2708, %v2916
      %v2954 = vmul.f32 %v2710, %v2916
      %v2955 = vmul.f32 %v2712, %v2917
      %v2956 = vmul.f32 %v2714, %v2917
      %v2957 = vmul.f32 %v2716, %v2918
      %v2958 = vmul.f32 %v2718, %v2918
      %v2959 = vmul.f32 %v2720, %v2919
      %v2960 = vmul.f32 %v2722, %v2919
      %v2961 = vmul.f32 %v2724, %v2920
      %v2962 = vmul.f32 %v2726, %v2920
      %v2963 = vmul.f32 %v2728, %v2921
      %v2964 = vmul.f32 %v2730, %v2921
      %v2965 = vmul.f32 %v2732, %v2922
      %v2966 = vmul.f32 %v2734, %v2922
      %v2967 = vmul.f32 %v2736, %v2923
      %v2968 = vmul.f32 %v2738, %v2923
      %v2969 = vmul.f32 %v2740, %v2924
      %v2970 = vmul.f32 %v2742, %v2924
      %v2971 = vmul.f32 %v2744, %v2925
      %v2972 = vmul.f32 %v2746, %v2925
      %v2973 = vmul.f32 %v2748, %v2926
      %v2974 = vmul.f32 %v2750, %v2926
      %v2975 = vmul.f32 %v2752, %v2927
      %v2976 = vmul.f32 %v2754, %v2927
      %v2977 = vmul.f32 %v2756, %v2928
      %v2978 = vmul.f32 %v2758, %v2928
      %v2979 = vmul.f32 %v2760, %v2929
      %v2980 = vmul.f32 %v2762, %v2929
      %v2981 = vmul.f32 %v2764, %v2930
      %v2982 = vmul.f32 %v2766, %v2930
      %v2983 = vmul.f32 %v2768, %v2931
      %v2984 = vmul.f32 %v2770, %v2931
      %v2985 = vmul.f32 %v2772, %v2932
      %v2986 = vmul.f32 %v2774, %v2932
      %v2987 = vmul.f32 %v2776, %v2933
      %v2988 = vmul.f32 %v2778, %v2933
      %v2989 = vmul.f32 %v2780, %v2934
      %v2990 = vmul.f32 %v2782, %v2934
      %v2991 = vmul.f32 %v2784, %v2935
      %v2992 = vmul.f32 %v2786, %v2935
      %v2993 = vmul.f32 %v2788, %v2936
      %v2994 = vmul.f32 %v2790, %v2936
      %v2995 = vmul.f32 %v2792, %v2937
      %v2996 = vmul.f32 %v2794, %v2937
      %v2997 = vmul.f32 %v2796, %v2938
      %v2998 = vmul.f32 %v2798, %v2938
      %v2999 = vmul.f32 %v2800, %v2939
      %v3000 = vmul.f32 %v2802, %v2939
      %v3001 = vmul.f32 %v2804, %v2940
      %v3002 = vmul.f32 %v2806, %v2940
      %v3003 = vmul.f32 %v2808, %v2941
      %v3004 = vmul.f32 %v2810, %v2941
      %v3005 = vmul.f32 %v2812, %v2942
      %v3006 = vmul.f32 %v2814, %v2942
      %v3007 = vpack.c.bf16 %v2945, %v2943
      %v3008 = vpack.c.bf16 %v2946, %v2944
      %v3009 = vpack.c.bf16 %v2949, %v2947
      %v3010 = vpack.c.bf16 %v2950, %v2948
      %v3011 = vpack.c.bf16 %v2953, %v2951
      %v3012 = vpack.c.bf16 %v2954, %v2952
      %v3013 = vpack.c.bf16 %v2957, %v2955
      %v3014 = vpack.c.bf16 %v2958, %v2956
      %v3015 = vpack.c.bf16 %v2961, %v2959
      %v3016 = vpack.c.bf16 %v2962, %v2960
      %v3017 = vpack.c.bf16 %v2965, %v2963
      %v3018 = vpack.c.bf16 %v2966, %v2964
      %v3019 = vpack.c.bf16 %v2969, %v2967
      %v3020 = vpack.c.bf16 %v2970, %v2968
      %v3021 = vpack.c.bf16 %v2973, %v2971
      %v3022 = vpack.c.bf16 %v2974, %v2972
      %v3023 = vpack.c.bf16 %v2977, %v2975
      %v3024 = vpack.c.bf16 %v2978, %v2976
      %v3025 = vpack.c.bf16 %v2981, %v2979
      %v3026 = vpack.c.bf16 %v2982, %v2980
      %v3027 = vpack.c.bf16 %v2985, %v2983
      %v3028 = vpack.c.bf16 %v2986, %v2984
      %v3029 = vpack.c.bf16 %v2989, %v2987
      %v3030 = vpack.c.bf16 %v2990, %v2988
      %v3031 = vpack.c.bf16 %v2993, %v2991
      %v3032 = vpack.c.bf16 %v2994, %v2992
      %v3033 = vpack.c.bf16 %v2997, %v2995
      %v3034 = vpack.c.bf16 %v2998, %v2996
      %v3035 = vpack.c.bf16 %v3001, %v2999
      %v3036 = vpack.c.bf16 %v3002, %v3000
      %v3037 = vpack.c.bf16 %v3005, %v3003
      %v3038 = vpack.c.bf16 %v3006, %v3004
      %v3041 = vrot.slane %v1313, 1
      %v3042 = vrot.slane %v1314, 1
      %3045 = vmatpush.bf16.xpose.msra.mxu0 %v3021
      %3046 = vmatpush.bf16.xpose.msra.mxu0 %v3019
      %3047 = vmatpush.bf16.xpose.msra.mxu0 %v3017
      %3048 = vmatpush.bf16.xpose.msra.mxu0 %v3015
      %3049 = vmatpush.bf16.xpose.msra.mxu0 %v3013
      %3050 = vmatpush.bf16.xpose.msra.mxu0 %v3011
      %3051 = vmatpush.bf16.xpose.msra.mxu0 %v3009
      %3052 = vmatpush.bf16.xpose.msra.mxu0 %v3007
      %3053 = vmatmul.bf16.gmra.mxu0 %v3041
      %v3054 = vpop.f32.mrf.mxu0
      %v3055 = vadd.f32 0.0, %v3054
      %v3056 = vpop.f32.mrf.mxu0
      %3057 = vdwg.mxu0
      %3058 = vmatpush.bf16.xpose.msra.mxu0 %v3022
      %3059 = vmatpush.bf16.xpose.msra.mxu0 %v3020
      %3060 = vmatpush.bf16.xpose.msra.mxu0 %v3018
      %3061 = vmatpush.bf16.xpose.msra.mxu0 %v3016
      %3062 = vmatpush.bf16.xpose.msra.mxu0 %v3014
      %3063 = vmatpush.bf16.xpose.msra.mxu0 %v3012
      %3064 = vmatpush.bf16.xpose.msra.mxu0 %v3010
      %3065 = vmatpush.bf16.xpose.msra.mxu0 %v3008
      %3066 = vmatmul.bf16.gmra.mxu0 %v3042
      %v3067 = vpop.f32.mrf.mxu0
      %v3068 = vadd.f32 %v3055, %v3067
      %v3069 = vpop.f32.mrf.mxu0
      %3070 = vdwg.mxu0
      %3071 = vmatpush.bf16.xpose.msra.mxu0 %v3037
      %3072 = vmatpush.bf16.xpose.msra.mxu0 %v3035
      %3073 = vmatpush.bf16.xpose.msra.mxu0 %v3033
      %3074 = vmatpush.bf16.xpose.msra.mxu0 %v3031
      %3075 = vmatpush.bf16.xpose.msra.mxu0 %v3029
      %3076 = vmatpush.bf16.xpose.msra.mxu0 %v3027
      %3077 = vmatpush.bf16.xpose.msra.mxu0 %v3025
      %3078 = vmatpush.bf16.xpose.msra.mxu0 %v3023
      %3079 = vmatmul.bf16.gmra.mxu0 %v3041
      %v3080 = vpop.f32.mrf.mxu0
      %v3081 = vadd.f32 0.0, %v3080
      %v3082 = vpop.f32.mrf.mxu0
      %3083 = vdwg.mxu0
      %3084 = vmatpush.bf16.xpose.msra.mxu0 %v3038
      %3085 = vmatpush.bf16.xpose.msra.mxu0 %v3036
      %3086 = vmatpush.bf16.xpose.msra.mxu0 %v3034
      %3087 = vmatpush.bf16.xpose.msra.mxu0 %v3032
      %3088 = vmatpush.bf16.xpose.msra.mxu0 %v3030
      %3089 = vmatpush.bf16.xpose.msra.mxu0 %v3028
      %3090 = vmatpush.bf16.xpose.msra.mxu0 %v3026
      %3091 = vmatpush.bf16.xpose.msra.mxu0 %v3024
      %3092 = vmatmul.bf16.gmra.mxu0 %v3042
      %v3093 = vpop.f32.mrf.mxu0
      %v3094 = vadd.f32 %v3081, %v3093
      %v3095 = vpop.f32.mrf.mxu0
      %3096 = vdwg.mxu0
      %v3099 = vrot.slane %v3068, 6
      %v3100 = vrot.slane %v3094, 6
      %3103 = vst [vmem:[#allocation4] sm:$0xc] %v3099
      %3104 = vst [vmem:[#allocation4 + $0x8] sm:$0xc] %v3100
      %3105 = vrot.lane.b32.xlu0 %v1295, 124
      %v3106 = vpop.permute.xlu0 %3105
      %3107 = vrot.lane.b32.xlu0 %v1296, 124
      %v3108 = vpop.permute.xlu0 %3107
      %3109 = vrot.lane.b32.xlu0 %v1297, 124
      %v3110 = vpop.permute.xlu0 %3109
      %3111 = vrot.lane.b32.xlu0 %v1298, 124
      %v3112 = vpop.permute.xlu0 %3111
      %3113 = vrot.lane.b32.xlu0 %v1299, 124
      %v3114 = vpop.permute.xlu0 %3113
      %3115 = vrot.lane.b32.xlu0 %v1300, 124
      %v3116 = vpop.permute.xlu0 %3115
      %3117 = vrot.lane.b32.xlu0 %v1301, 124
      %v3118 = vpop.permute.xlu0 %3117
      %3119 = vrot.lane.b32.xlu0 %v1302, 124
      %v3120 = vpop.permute.xlu0 %3119
      %3121 = vrot.lane.b32.xlu0 %v1303, 124
      %v3122 = vpop.permute.xlu0 %3121
      %3123 = vrot.lane.b32.xlu0 %v1304, 124
      %v3124 = vpop.permute.xlu0 %3123
      %3125 = vrot.lane.b32.xlu0 %v1305, 124
      %v3126 = vpop.permute.xlu0 %3125
      %3127 = vrot.lane.b32.xlu0 %v1306, 124
      %v3128 = vpop.permute.xlu0 %3127
      %3129 = vrot.lane.b32.xlu0 %v1307, 124
      %v3130 = vpop.permute.xlu0 %3129
      %3131 = vrot.lane.b32.xlu0 %v1308, 124
      %v3132 = vpop.permute.xlu0 %3131
      %3133 = vrot.lane.b32.xlu0 %v1309, 124
      %v3134 = vpop.permute.xlu0 %3133
      %3135 = vrot.lane.b32.xlu0 %v1310, 124
      %v3136 = vpop.permute.xlu0 %3135
      %v3137 = vrot.slane %v1311, 2
      %v3138 = vrot.slane %v1312, 2
      %v3140 = vsel %vm1315, %v3106, 0
      %v3143 = vsel %vm1315, %v3108, 0
      %v3146 = vsel %vm1315, %v3110, 0
      %v3149 = vsel %vm1315, %v3112, 0
      %v3152 = vsel %vm1315, %v3114, 0
      %v3155 = vsel %vm1315, %v3116, 0
      %v3158 = vsel %vm1315, %v3118, 0
      %v3161 = vsel %vm1315, %v3120, 0
      %v3164 = vsel %vm1315, %v3122, 0
      %v3167 = vsel %vm1315, %v3124, 0
      %v3170 = vsel %vm1315, %v3126, 0
      %v3173 = vsel %vm1315, %v3128, 0
      %v3176 = vsel %vm1315, %v3130, 0
      %v3179 = vsel %vm1315, %v3132, 0
      %v3182 = vsel %vm1315, %v3134, 0
      %v3185 = vsel %vm1315, %v3136, 0
      %v3188 = vsel %vm1364, %v3137, 0
      %v3191 = vsel %vm1364, %v3138, 0
      %3193 = vmatpush.bf16.msra.mxu0 0
      %3194 = vmatpush.bf16.msra.mxu0 0
      %3195 = vmatpush.bf16.msra.mxu0 0
      %3196 = vmatpush.bf16.msra.mxu0 0
      %3197 = vmatpush.bf16.msra.mxu0 0
      %3198 = vmatpush.bf16.msra.mxu0 0
      %3199 = vmatpush.bf16.msra.mxu0 0
      %3200 = vmatpush.bf16.msra.mxu0 %v3188
      %3201 = vmatmul.bf16.gmra.mxu0 %v3140
      %v3202 = vpop.f32.mrf.mxu0
      %v3203 = vadd.f32 0.0, %v3202
      %v3204 = vpop.f32.mrf.mxu0
      %v3205 = vadd.f32 0.0, %v3204
      %3206 = vmatmul.bf16.gmra.mxu0 %v3143
      %v3207 = vpop.f32.mrf.mxu0
      %v3208 = vadd.f32 0.0, %v3207
      %v3209 = vpop.f32.mrf.mxu0
      %v3210 = vadd.f32 0.0, %v3209
      %3211 = vmatmul.bf16.gmra.mxu0 %v3146
      %v3212 = vpop.f32.mrf.mxu0
      %v3213 = vadd.f32 0.0, %v3212
      %v3214 = vpop.f32.mrf.mxu0
      %v3215 = vadd.f32 0.0, %v3214
      %3216 = vmatmul.bf16.gmra.mxu0 %v3149
      %v3217 = vpop.f32.mrf.mxu0
      %v3218 = vadd.f32 0.0, %v3217
      %v3219 = vpop.f32.mrf.mxu0
      %v3220 = vadd.f32 0.0, %v3219
      %3221 = vmatmul.bf16.gmra.mxu0 %v3152
      %v3222 = vpop.f32.mrf.mxu0
      %v3223 = vadd.f32 0.0, %v3222
      %v3224 = vpop.f32.mrf.mxu0
      %v3225 = vadd.f32 0.0, %v3224
      %3226 = vmatmul.bf16.gmra.mxu0 %v3155
      %v3227 = vpop.f32.mrf.mxu0
      %v3228 = vadd.f32 0.0, %v3227
      %v3229 = vpop.f32.mrf.mxu0
      %v3230 = vadd.f32 0.0, %v3229
      %3231 = vmatmul.bf16.gmra.mxu0 %v3158
      %v3232 = vpop.f32.mrf.mxu0
      %v3233 = vadd.f32 0.0, %v3232
      %v3234 = vpop.f32.mrf.mxu0
      %v3235 = vadd.f32 0.0, %v3234
      %3236 = vmatmul.bf16.gmra.mxu0 %v3161
      %v3237 = vpop.f32.mrf.mxu0
      %v3238 = vadd.f32 0.0, %v3237
      %v3239 = vpop.f32.mrf.mxu0
      %v3240 = vadd.f32 0.0, %v3239
      %3241 = vmatmul.bf16.gmra.mxu0 %v3164
      %v3242 = vpop.f32.mrf.mxu0
      %v3243 = vadd.f32 0.0, %v3242
      %v3244 = vpop.f32.mrf.mxu0
      %v3245 = vadd.f32 0.0, %v3244
      %3246 = vmatmul.bf16.gmra.mxu0 %v3167
      %v3247 = vpop.f32.mrf.mxu0
      %v3248 = vadd.f32 0.0, %v3247
      %v3249 = vpop.f32.mrf.mxu0
      %v3250 = vadd.f32 0.0, %v3249
      %3251 = vmatmul.bf16.gmra.mxu0 %v3170
      %v3252 = vpop.f32.mrf.mxu0
      %v3253 = vadd.f32 0.0, %v3252
      %v3254 = vpop.f32.mrf.mxu0
      %v3255 = vadd.f32 0.0, %v3254
      %3256 = vmatmul.bf16.gmra.mxu0 %v3173
      %v3257 = vpop.f32.mrf.mxu0
      %v3258 = vadd.f32 0.0, %v3257
      %v3259 = vpop.f32.mrf.mxu0
      %v3260 = vadd.f32 0.0, %v3259
      %3261 = vmatmul.bf16.gmra.mxu0 %v3176
      %v3262 = vpop.f32.mrf.mxu0
      %v3263 = vadd.f32 0.0, %v3262
      %v3264 = vpop.f32.mrf.mxu0
      %v3265 = vadd.f32 0.0, %v3264
      %3266 = vmatmul.bf16.gmra.mxu0 %v3179
      %v3267 = vpop.f32.mrf.mxu0
      %v3268 = vadd.f32 0.0, %v3267
      %v3269 = vpop.f32.mrf.mxu0
      %v3270 = vadd.f32 0.0, %v3269
      %3271 = vmatmul.bf16.gmra.mxu0 %v3182
      %v3272 = vpop.f32.mrf.mxu0
      %v3273 = vadd.f32 0.0, %v3272
      %v3274 = vpop.f32.mrf.mxu0
      %v3275 = vadd.f32 0.0, %v3274
      %3276 = vmatmul.bf16.gmra.mxu0 %v3185
      %v3277 = vpop.f32.mrf.mxu0
      %v3278 = vadd.f32 0.0, %v3277
      %v3279 = vpop.f32.mrf.mxu0
      %v3280 = vadd.f32 0.0, %v3279
      %3281 = vdwg.mxu0
      %3282 = vmatpush.bf16.msra.mxu0 0
      %3283 = vmatpush.bf16.msra.mxu0 0
      %3284 = vmatpush.bf16.msra.mxu0 0
      %3285 = vmatpush.bf16.msra.mxu0 0
      %3286 = vmatpush.bf16.msra.mxu0 0
      %3287 = vmatpush.bf16.msra.mxu0 0
      %3288 = vmatpush.bf16.msra.mxu0 0
      %3289 = vmatpush.bf16.msra.mxu0 %v3191
      %3290 = vmatmul.bf16.gmra.mxu0 %v3140
      %v3291 = vpop.f32.mrf.mxu0
      %v3292 = vadd.f32 0.0, %v3291
      %v3293 = vpop.f32.mrf.mxu0
      %v3294 = vadd.f32 0.0, %v3293
      %3295 = vmatmul.bf16.gmra.mxu0 %v3143
      %v3296 = vpop.f32.mrf.mxu0
      %v3297 = vadd.f32 0.0, %v3296
      %v3298 = vpop.f32.mrf.mxu0
      %v3299 = vadd.f32 0.0, %v3298
      %3300 = vmatmul.bf16.gmra.mxu0 %v3146
      %v3301 = vpop.f32.mrf.mxu0
      %v3302 = vadd.f32 0.0, %v3301
      %v3303 = vpop.f32.mrf.mxu0
      %v3304 = vadd.f32 0.0, %v3303
      %3305 = vmatmul.bf16.gmra.mxu0 %v3149
      %v3306 = vpop.f32.mrf.mxu0
      %v3307 = vadd.f32 0.0, %v3306
      %v3308 = vpop.f32.mrf.mxu0
      %v3309 = vadd.f32 0.0, %v3308
      %3310 = vmatmul.bf16.gmra.mxu0 %v3152
      %v3311 = vpop.f32.mrf.mxu0
      %v3312 = vadd.f32 0.0, %v3311
      %v3313 = vpop.f32.mrf.mxu0
      %v3314 = vadd.f32 0.0, %v3313
      %3315 = vmatmul.bf16.gmra.mxu0 %v3155
      %v3316 = vpop.f32.mrf.mxu0
      %v3317 = vadd.f32 0.0, %v3316
      %v3318 = vpop.f32.mrf.mxu0
      %v3319 = vadd.f32 0.0, %v3318
      %3320 = vmatmul.bf16.gmra.mxu0 %v3158
      %v3321 = vpop.f32.mrf.mxu0
      %v3322 = vadd.f32 0.0, %v3321
      %v3323 = vpop.f32.mrf.mxu0
      %v3324 = vadd.f32 0.0, %v3323
      %3325 = vmatmul.bf16.gmra.mxu0 %v3161
      %v3326 = vpop.f32.mrf.mxu0
      %v3327 = vadd.f32 0.0, %v3326
      %v3328 = vpop.f32.mrf.mxu0
      %v3329 = vadd.f32 0.0, %v3328
      %3330 = vmatmul.bf16.gmra.mxu0 %v3164
      %v3331 = vpop.f32.mrf.mxu0
      %v3332 = vadd.f32 0.0, %v3331
      %v3333 = vpop.f32.mrf.mxu0
      %v3334 = vadd.f32 0.0, %v3333
      %3335 = vmatmul.bf16.gmra.mxu0 %v3167
      %v3336 = vpop.f32.mrf.mxu0
      %v3337 = vadd.f32 0.0, %v3336
      %v3338 = vpop.f32.mrf.mxu0
      %v3339 = vadd.f32 0.0, %v3338
      %3340 = vmatmul.bf16.gmra.mxu0 %v3170
      %v3341 = vpop.f32.mrf.mxu0
      %v3342 = vadd.f32 0.0, %v3341
      %v3343 = vpop.f32.mrf.mxu0
      %v3344 = vadd.f32 0.0, %v3343
      %3345 = vmatmul.bf16.gmra.mxu0 %v3173
      %v3346 = vpop.f32.mrf.mxu0
      %v3347 = vadd.f32 0.0, %v3346
      %v3348 = vpop.f32.mrf.mxu0
      %v3349 = vadd.f32 0.0, %v3348
      %3350 = vmatmul.bf16.gmra.mxu0 %v3176
      %v3351 = vpop.f32.mrf.mxu0
      %v3352 = vadd.f32 0.0, %v3351
      %v3353 = vpop.f32.mrf.mxu0
      %v3354 = vadd.f32 0.0, %v3353
      %3355 = vmatmul.bf16.gmra.mxu0 %v3179
      %v3356 = vpop.f32.mrf.mxu0
      %v3357 = vadd.f32 0.0, %v3356
      %v3358 = vpop.f32.mrf.mxu0
      %v3359 = vadd.f32 0.0, %v3358
      %3360 = vmatmul.bf16.gmra.mxu0 %v3182
      %v3361 = vpop.f32.mrf.mxu0
      %v3362 = vadd.f32 0.0, %v3361
      %v3363 = vpop.f32.mrf.mxu0
      %v3364 = vadd.f32 0.0, %v3363
      %3365 = vmatmul.bf16.gmra.mxu0 %v3185
      %v3366 = vpop.f32.mrf.mxu0
      %v3367 = vadd.f32 0.0, %v3366
      %v3368 = vpop.f32.mrf.mxu0
      %v3369 = vadd.f32 0.0, %v3368
      %3370 = vdwg.mxu0
      %v3371 = vmul.f32 %v3203, 0.70710677
      %v3372 = vmul.f32 %v3292, 0.70710677
      %v3373 = vmul.f32 %v3205, 0.70710677
      %v3374 = vmul.f32 %v3294, 0.70710677
      %v3375 = vmul.f32 %v3208, 0.70710677
      %v3376 = vmul.f32 %v3297, 0.70710677
      %v3377 = vmul.f32 %v3210, 0.70710677
      %v3378 = vmul.f32 %v3299, 0.70710677
      %v3379 = vmul.f32 %v3213, 0.70710677
      %v3380 = vmul.f32 %v3302, 0.70710677
      %v3381 = vmul.f32 %v3215, 0.70710677
      %v3382 = vmul.f32 %v3304, 0.70710677
      %v3383 = vmul.f32 %v3218, 0.70710677
      %v3384 = vmul.f32 %v3307, 0.70710677
      %v3385 = vmul.f32 %v3220, 0.70710677
      %v3386 = vmul.f32 %v3309, 0.70710677
      %v3387 = vmul.f32 %v3223, 0.70710677
      %v3388 = vmul.f32 %v3312, 0.70710677
      %v3389 = vmul.f32 %v3225, 0.70710677
      %v3390 = vmul.f32 %v3314, 0.70710677
      %v3391 = vmul.f32 %v3228, 0.70710677
      %v3392 = vmul.f32 %v3317, 0.70710677
      %v3393 = vmul.f32 %v3230, 0.70710677
      %v3394 = vmul.f32 %v3319, 0.70710677
      %v3395 = vmul.f32 %v3233, 0.70710677
      %v3396 = vmul.f32 %v3322, 0.70710677
      %v3397 = vmul.f32 %v3235, 0.70710677
      %v3398 = vmul.f32 %v3324, 0.70710677
      %v3399 = vmul.f32 %v3238, 0.70710677
      %v3400 = vmul.f32 %v3327, 0.70710677
      %v3401 = vmul.f32 %v3240, 0.70710677
      %v3402 = vmul.f32 %v3329, 0.70710677
      %v3403 = vmul.f32 %v3243, 0.70710677
      %v3404 = vmul.f32 %v3332, 0.70710677
      %v3405 = vmul.f32 %v3245, 0.70710677
      %v3406 = vmul.f32 %v3334, 0.70710677
      %v3407 = vmul.f32 %v3248, 0.70710677
      %v3408 = vmul.f32 %v3337, 0.70710677
      %v3409 = vmul.f32 %v3250, 0.70710677
      %v3410 = vmul.f32 %v3339, 0.70710677
      %v3411 = vmul.f32 %v3253, 0.70710677
      %v3412 = vmul.f32 %v3342, 0.70710677
      %v3413 = vmul.f32 %v3255, 0.70710677
      %v3414 = vmul.f32 %v3344, 0.70710677
      %v3415 = vmul.f32 %v3258, 0.70710677
      %v3416 = vmul.f32 %v3347, 0.70710677
      %v3417 = vmul.f32 %v3260, 0.70710677
      %v3418 = vmul.f32 %v3349, 0.70710677
      %v3419 = vmul.f32 %v3263, 0.70710677
      %v3420 = vmul.f32 %v3352, 0.70710677
      %v3421 = vmul.f32 %v3265, 0.70710677
      %v3422 = vmul.f32 %v3354, 0.70710677
      %v3423 = vmul.f32 %v3268, 0.70710677
      %v3424 = vmul.f32 %v3357, 0.70710677
      %v3425 = vmul.f32 %v3270, 0.70710677
      %v3426 = vmul.f32 %v3359, 0.70710677
      %v3427 = vmul.f32 %v3273, 0.70710677
      %v3428 = vmul.f32 %v3362, 0.70710677
      %v3429 = vmul.f32 %v3275, 0.70710677
      %v3430 = vmul.f32 %v3364, 0.70710677
      %v3431 = vmul.f32 %v3278, 0.70710677
      %v3432 = vmul.f32 %v3367, 0.70710677
      %v3433 = vmul.f32 %v3280, 0.70710677
      %v3434 = vmul.f32 %v3369, 0.70710677
      %v3435 = vmax.f32 %v3371, %v3372
      %3436 = vmax.xlane.f32.xlu0 %v3435
      %v3437 = vpop.xlane.xlu0 %3436
      %v3438 = vmax.f32 %v3373, %v3374
      %3439 = vmax.xlane.f32.xlu0 %v3438
      %v3440 = vpop.xlane.xlu0 %3439
      %v3441 = vmax.f32 %v3375, %v3376
      %3442 = vmax.xlane.f32.xlu0 %v3441
      %v3443 = vpop.xlane.xlu0 %3442
      %v3444 = vmax.f32 %v3377, %v3378
      %3445 = vmax.xlane.f32.xlu0 %v3444
      %v3446 = vpop.xlane.xlu0 %3445
      %v3447 = vmax.f32 %v3379, %v3380
      %3448 = vmax.xlane.f32.xlu0 %v3447
      %v3449 = vpop.xlane.xlu0 %3448
      %v3450 = vmax.f32 %v3381, %v3382
      %3451 = vmax.xlane.f32.xlu0 %v3450
      %v3452 = vpop.xlane.xlu0 %3451
      %v3453 = vmax.f32 %v3383, %v3384
      %3454 = vmax.xlane.f32.xlu0 %v3453
      %v3455 = vpop.xlane.xlu0 %3454
      %v3456 = vmax.f32 %v3385, %v3386
      %3457 = vmax.xlane.f32.xlu0 %v3456
      %v3458 = vpop.xlane.xlu0 %3457
      %v3459 = vmax.f32 %v3387, %v3388
      %3460 = vmax.xlane.f32.xlu0 %v3459
      %v3461 = vpop.xlane.xlu0 %3460
      %v3462 = vmax.f32 %v3389, %v3390
      %3463 = vmax.xlane.f32.xlu0 %v3462
      %v3464 = vpop.xlane.xlu0 %3463
      %v3465 = vmax.f32 %v3391, %v3392
      %3466 = vmax.xlane.f32.xlu0 %v3465
      %v3467 = vpop.xlane.xlu0 %3466
      %v3468 = vmax.f32 %v3393, %v3394
      %3469 = vmax.xlane.f32.xlu0 %v3468
      %v3470 = vpop.xlane.xlu0 %3469
      %v3471 = vmax.f32 %v3395, %v3396
      %3472 = vmax.xlane.f32.xlu0 %v3471
      %v3473 = vpop.xlane.xlu0 %3472
      %v3474 = vmax.f32 %v3397, %v3398
      %3475 = vmax.xlane.f32.xlu0 %v3474
      %v3476 = vpop.xlane.xlu0 %3475
      %v3477 = vmax.f32 %v3399, %v3400
      %3478 = vmax.xlane.f32.xlu0 %v3477
      %v3479 = vpop.xlane.xlu0 %3478
      %v3480 = vmax.f32 %v3401, %v3402
      %3481 = vmax.xlane.f32.xlu0 %v3480
      %v3482 = vpop.xlane.xlu0 %3481
      %v3483 = vmax.f32 %v3403, %v3404
      %3484 = vmax.xlane.f32.xlu0 %v3483
      %v3485 = vpop.xlane.xlu0 %3484
      %v3486 = vmax.f32 %v3405, %v3406
      %3487 = vmax.xlane.f32.xlu0 %v3486
      %v3488 = vpop.xlane.xlu0 %3487
      %v3489 = vmax.f32 %v3407, %v3408
      %3490 = vmax.xlane.f32.xlu0 %v3489
      %v3491 = vpop.xlane.xlu0 %3490
      %v3492 = vmax.f32 %v3409, %v3410
      %3493 = vmax.xlane.f32.xlu0 %v3492
      %v3494 = vpop.xlane.xlu0 %3493
      %v3495 = vmax.f32 %v3411, %v3412
      %3496 = vmax.xlane.f32.xlu0 %v3495
      %v3497 = vpop.xlane.xlu0 %3496
      %v3498 = vmax.f32 %v3413, %v3414
      %3499 = vmax.xlane.f32.xlu0 %v3498
      %v3500 = vpop.xlane.xlu0 %3499
      %v3501 = vmax.f32 %v3415, %v3416
      %3502 = vmax.xlane.f32.xlu0 %v3501
      %v3503 = vpop.xlane.xlu0 %3502
      %v3504 = vmax.f32 %v3417, %v3418
      %3505 = vmax.xlane.f32.xlu0 %v3504
      %v3506 = vpop.xlane.xlu0 %3505
      %v3507 = vmax.f32 %v3419, %v3420
      %3508 = vmax.xlane.f32.xlu0 %v3507
      %v3509 = vpop.xlane.xlu0 %3508
      %v3510 = vmax.f32 %v3421, %v3422
      %3511 = vmax.xlane.f32.xlu0 %v3510
      %v3512 = vpop.xlane.xlu0 %3511
      %v3513 = vmax.f32 %v3423, %v3424
      %3514 = vmax.xlane.f32.xlu0 %v3513
      %v3515 = vpop.xlane.xlu0 %3514
      %v3516 = vmax.f32 %v3425, %v3426
      %3517 = vmax.xlane.f32.xlu0 %v3516
      %v3518 = vpop.xlane.xlu0 %3517
      %v3519 = vmax.f32 %v3427, %v3428
      %3520 = vmax.xlane.f32.xlu0 %v3519
      %v3521 = vpop.xlane.xlu0 %3520
      %v3522 = vmax.f32 %v3429, %v3430
      %3523 = vmax.xlane.f32.xlu0 %v3522
      %v3524 = vpop.xlane.xlu0 %3523
      %v3525 = vmax.f32 %v3431, %v3432
      %3526 = vmax.xlane.f32.xlu0 %v3525
      %v3527 = vpop.xlane.xlu0 %3526
      %v3528 = vmax.f32 %v3433, %v3434
      %3529 = vmax.xlane.f32.xlu0 %v3528
      %v3530 = vpop.xlane.xlu0 %3529
      %v3531 = vsub.f32 %v3371, %v3437
      %v3532 = vsub.f32 %v3372, %v3437
      %v3533 = vsub.f32 %v3373, %v3440
      %v3534 = vsub.f32 %v3374, %v3440
      %v3535 = vsub.f32 %v3375, %v3443
      %v3536 = vsub.f32 %v3376, %v3443
      %v3537 = vsub.f32 %v3377, %v3446
      %v3538 = vsub.f32 %v3378, %v3446
      %v3539 = vsub.f32 %v3379, %v3449
      %v3540 = vsub.f32 %v3380, %v3449
      %v3541 = vsub.f32 %v3381, %v3452
      %v3542 = vsub.f32 %v3382, %v3452
      %v3543 = vsub.f32 %v3383, %v3455
      %v3544 = vsub.f32 %v3384, %v3455
      %v3545 = vsub.f32 %v3385, %v3458
      %v3546 = vsub.f32 %v3386, %v3458
      %v3547 = vsub.f32 %v3387, %v3461
      %v3548 = vsub.f32 %v3388, %v3461
      %v3549 = vsub.f32 %v3389, %v3464
      %v3550 = vsub.f32 %v3390, %v3464
      %v3551 = vsub.f32 %v3391, %v3467
      %v3552 = vsub.f32 %v3392, %v3467
      %v3553 = vsub.f32 %v3393, %v3470
      %v3554 = vsub.f32 %v3394, %v3470
      %v3555 = vsub.f32 %v3395, %v3473
      %v3556 = vsub.f32 %v3396, %v3473
      %v3557 = vsub.f32 %v3397, %v3476
      %v3558 = vsub.f32 %v3398, %v3476
      %v3559 = vsub.f32 %v3399, %v3479
      %v3560 = vsub.f32 %v3400, %v3479
      %v3561 = vsub.f32 %v3401, %v3482
      %v3562 = vsub.f32 %v3402, %v3482
      %v3563 = vsub.f32 %v3403, %v3485
      %v3564 = vsub.f32 %v3404, %v3485
      %v3565 = vsub.f32 %v3405, %v3488
      %v3566 = vsub.f32 %v3406, %v3488
      %v3567 = vsub.f32 %v3407, %v3491
      %v3568 = vsub.f32 %v3408, %v3491
      %v3569 = vsub.f32 %v3409, %v3494
      %v3570 = vsub.f32 %v3410, %v3494
      %v3571 = vsub.f32 %v3411, %v3497
      %v3572 = vsub.f32 %v3412, %v3497
      %v3573 = vsub.f32 %v3413, %v3500
      %v3574 = vsub.f32 %v3414, %v3500
      %v3575 = vsub.f32 %v3415, %v3503
      %v3576 = vsub.f32 %v3416, %v3503
      %v3577 = vsub.f32 %v3417, %v3506
      %v3578 = vsub.f32 %v3418, %v3506
      %v3579 = vsub.f32 %v3419, %v3509
      %v3580 = vsub.f32 %v3420, %v3509
      %v3581 = vsub.f32 %v3421, %v3512
      %v3582 = vsub.f32 %v3422, %v3512
      %v3583 = vsub.f32 %v3423, %v3515
      %v3584 = vsub.f32 %v3424, %v3515
      %v3585 = vsub.f32 %v3425, %v3518
      %v3586 = vsub.f32 %v3426, %v3518
      %v3587 = vsub.f32 %v3427, %v3521
      %v3588 = vsub.f32 %v3428, %v3521
      %v3589 = vsub.f32 %v3429, %v3524
      %v3590 = vsub.f32 %v3430, %v3524
      %v3591 = vsub.f32 %v3431, %v3527
      %v3592 = vsub.f32 %v3432, %v3527
      %v3593 = vsub.f32 %v3433, %v3530
      %v3594 = vsub.f32 %v3434, %v3530
      %v3595 = vmul.f32 %v3531, 1.442695
      %v3596 = vpow.pop %v3595
      %v3597 = vmul.f32 %v3532, 1.442695
      %v3598 = vpow.pop %v3597
      %v3599 = vmul.f32 %v3533, 1.442695
      %v3600 = vpow.pop %v3599
      %v3601 = vmul.f32 %v3534, 1.442695
      %v3602 = vpow.pop %v3601
      %v3603 = vmul.f32 %v3535, 1.442695
      %v3604 = vpow.pop %v3603
      %v3605 = vmul.f32 %v3536, 1.442695
      %v3606 = vpow.pop %v3605
      %v3607 = vmul.f32 %v3537, 1.442695
      %v3608 = vpow.pop %v3607
      %v3609 = vmul.f32 %v3538, 1.442695
      %v3610 = vpow.pop %v3609
      %v3611 = vmul.f32 %v3539, 1.442695
      %v3612 = vpow.pop %v3611
      %v3613 = vmul.f32 %v3540, 1.442695
      %v3614 = vpow.pop %v3613
      %v3615 = vmul.f32 %v3541, 1.442695
      %v3616 = vpow.pop %v3615
      %v3617 = vmul.f32 %v3542, 1.442695
      %v3618 = vpow.pop %v3617
      %v3619 = vmul.f32 %v3543, 1.442695
      %v3620 = vpow.pop %v3619
      %v3621 = vmul.f32 %v3544, 1.442695
      %v3622 = vpow.pop %v3621
      %v3623 = vmul.f32 %v3545, 1.442695
      %v3624 = vpow.pop %v3623
      %v3625 = vmul.f32 %v3546, 1.442695
      %v3626 = vpow.pop %v3625
      %v3627 = vmul.f32 %v3547, 1.442695
      %v3628 = vpow.pop %v3627
      %v3629 = vmul.f32 %v3548, 1.442695
      %v3630 = vpow.pop %v3629
      %v3631 = vmul.f32 %v3549, 1.442695
      %v3632 = vpow.pop %v3631
      %v3633 = vmul.f32 %v3550, 1.442695
      %v3634 = vpow.pop %v3633
      %v3635 = vmul.f32 %v3551, 1.442695
      %v3636 = vpow.pop %v3635
      %v3637 = vmul.f32 %v3552, 1.442695
      %v3638 = vpow.pop %v3637
      %v3639 = vmul.f32 %v3553, 1.442695
      %v3640 = vpow.pop %v3639
      %v3641 = vmul.f32 %v3554, 1.442695
      %v3642 = vpow.pop %v3641
      %v3643 = vmul.f32 %v3555, 1.442695
      %v3644 = vpow.pop %v3643
      %v3645 = vmul.f32 %v3556, 1.442695
      %v3646 = vpow.pop %v3645
      %v3647 = vmul.f32 %v3557, 1.442695
      %v3648 = vpow.pop %v3647
      %v3649 = vmul.f32 %v3558, 1.442695
      %v3650 = vpow.pop %v3649
      %v3651 = vmul.f32 %v3559, 1.442695
      %v3652 = vpow.pop %v3651
      %v3653 = vmul.f32 %v3560, 1.442695
      %v3654 = vpow.pop %v3653
      %v3655 = vmul.f32 %v3561, 1.442695
      %v3656 = vpow.pop %v3655
      %v3657 = vmul.f32 %v3562, 1.442695
      %v3658 = vpow.pop %v3657
      %v3659 = vmul.f32 %v3563, 1.442695
      %v3660 = vpow.pop %v3659
      %v3661 = vmul.f32 %v3564, 1.442695
      %v3662 = vpow.pop %v3661
      %v3663 = vmul.f32 %v3565, 1.442695
      %v3664 = vpow.pop %v3663
      %v3665 = vmul.f32 %v3566, 1.442695
      %v3666 = vpow.pop %v3665
      %v3667 = vmul.f32 %v3567, 1.442695
      %v3668 = vpow.pop %v3667
      %v3669 = vmul.f32 %v3568, 1.442695
      %v3670 = vpow.pop %v3669
      %v3671 = vmul.f32 %v3569, 1.442695
      %v3672 = vpow.pop %v3671
      %v3673 = vmul.f32 %v3570, 1.442695
      %v3674 = vpow.pop %v3673
      %v3675 = vmul.f32 %v3571, 1.442695
      %v3676 = vpow.pop %v3675
      %v3677 = vmul.f32 %v3572, 1.442695
      %v3678 = vpow.pop %v3677
      %v3679 = vmul.f32 %v3573, 1.442695
      %v3680 = vpow.pop %v3679
      %v3681 = vmul.f32 %v3574, 1.442695
      %v3682 = vpow.pop %v3681
      %v3683 = vmul.f32 %v3575, 1.442695
      %v3684 = vpow.pop %v3683
      %v3685 = vmul.f32 %v3576, 1.442695
      %v3686 = vpow.pop %v3685
      %v3687 = vmul.f32 %v3577, 1.442695
      %v3688 = vpow.pop %v3687
      %v3689 = vmul.f32 %v3578, 1.442695
      %v3690 = vpow.pop %v3689
      %v3691 = vmul.f32 %v3579, 1.442695
      %v3692 = vpow.pop %v3691
      %v3693 = vmul.f32 %v3580, 1.442695
      %v3694 = vpow.pop %v3693
      %v3695 = vmul.f32 %v3581, 1.442695
      %v3696 = vpow.pop %v3695
      %v3697 = vmul.f32 %v3582, 1.442695
      %v3698 = vpow.pop %v3697
      %v3699 = vmul.f32 %v3583, 1.442695
      %v3700 = vpow.pop %v3699
      %v3701 = vmul.f32 %v3584, 1.442695
      %v3702 = vpow.pop %v3701
      %v3703 = vmul.f32 %v3585, 1.442695
      %v3704 = vpow.pop %v3703
      %v3705 = vmul.f32 %v3586, 1.442695
      %v3706 = vpow.pop %v3705
      %v3707 = vmul.f32 %v3587, 1.442695
      %v3708 = vpow.pop %v3707
      %v3709 = vmul.f32 %v3588, 1.442695
      %v3710 = vpow.pop %v3709
      %v3711 = vmul.f32 %v3589, 1.442695
      %v3712 = vpow.pop %v3711
      %v3713 = vmul.f32 %v3590, 1.442695
      %v3714 = vpow.pop %v3713
      %v3715 = vmul.f32 %v3591, 1.442695
      %v3716 = vpow.pop %v3715
      %v3717 = vmul.f32 %v3592, 1.442695
      %v3718 = vpow.pop %v3717
      %v3719 = vmul.f32 %v3593, 1.442695
      %v3720 = vpow.pop %v3719
      %v3721 = vmul.f32 %v3594, 1.442695
      %v3722 = vpow.pop %v3721
      %v3723 = vadd.f32 %v3596, %v3598
      %3724 = vadd.xlane.f32.xlu0 %v3723
      %v3725 = vpop.xlane.xlu0 %3724
      %v3726 = vadd.f32 %v3600, %v3602
      %3727 = vadd.xlane.f32.xlu0 %v3726
      %v3728 = vpop.xlane.xlu0 %3727
      %v3729 = vadd.f32 %v3604, %v3606
      %3730 = vadd.xlane.f32.xlu0 %v3729
      %v3731 = vpop.xlane.xlu0 %3730
      %v3732 = vadd.f32 %v3608, %v3610
      %3733 = vadd.xlane.f32.xlu0 %v3732
      %v3734 = vpop.xlane.xlu0 %3733
      %v3735 = vadd.f32 %v3612, %v3614
      %3736 = vadd.xlane.f32.xlu0 %v3735
      %v3737 = vpop.xlane.xlu0 %3736
      %v3738 = vadd.f32 %v3616, %v3618
      %3739 = vadd.xlane.f32.xlu0 %v3738
      %v3740 = vpop.xlane.xlu0 %3739
      %v3741 = vadd.f32 %v3620, %v3622
      %3742 = vadd.xlane.f32.xlu0 %v3741
      %v3743 = vpop.xlane.xlu0 %3742
      %v3744 = vadd.f32 %v3624, %v3626
      %3745 = vadd.xlane.f32.xlu0 %v3744
      %v3746 = vpop.xlane.xlu0 %3745
      %v3747 = vadd.f32 %v3628, %v3630
      %3748 = vadd.xlane.f32.xlu0 %v3747
      %v3749 = vpop.xlane.xlu0 %3748
      %v3750 = vadd.f32 %v3632, %v3634
      %3751 = vadd.xlane.f32.xlu0 %v3750
      %v3752 = vpop.xlane.xlu0 %3751
      %v3753 = vadd.f32 %v3636, %v3638
      %3754 = vadd.xlane.f32.xlu0 %v3753
      %v3755 = vpop.xlane.xlu0 %3754
      %v3756 = vadd.f32 %v3640, %v3642
      %3757 = vadd.xlane.f32.xlu0 %v3756
      %v3758 = vpop.xlane.xlu0 %3757
      %v3759 = vadd.f32 %v3644, %v3646
      %3760 = vadd.xlane.f32.xlu0 %v3759
      %v3761 = vpop.xlane.xlu0 %3760
      %v3762 = vadd.f32 %v3648, %v3650
      %3763 = vadd.xlane.f32.xlu0 %v3762
      %v3764 = vpop.xlane.xlu0 %3763
      %v3765 = vadd.f32 %v3652, %v3654
      %3766 = vadd.xlane.f32.xlu0 %v3765
      %v3767 = vpop.xlane.xlu0 %3766
      %v3768 = vadd.f32 %v3656, %v3658
      %3769 = vadd.xlane.f32.xlu0 %v3768
      %v3770 = vpop.xlane.xlu0 %3769
      %v3771 = vadd.f32 %v3660, %v3662
      %3772 = vadd.xlane.f32.xlu0 %v3771
      %v3773 = vpop.xlane.xlu0 %3772
      %v3774 = vadd.f32 %v3664, %v3666
      %3775 = vadd.xlane.f32.xlu0 %v3774
      %v3776 = vpop.xlane.xlu0 %3775
      %v3777 = vadd.f32 %v3668, %v3670
      %3778 = vadd.xlane.f32.xlu0 %v3777
      %v3779 = vpop.xlane.xlu0 %3778
      %v3780 = vadd.f32 %v3672, %v3674
      %3781 = vadd.xlane.f32.xlu0 %v3780
      %v3782 = vpop.xlane.xlu0 %3781
      %v3783 = vadd.f32 %v3676, %v3678
      %3784 = vadd.xlane.f32.xlu0 %v3783
      %v3785 = vpop.xlane.xlu0 %3784
      %v3786 = vadd.f32 %v3680, %v3682
      %3787 = vadd.xlane.f32.xlu0 %v3786
      %v3788 = vpop.xlane.xlu0 %3787
      %v3789 = vadd.f32 %v3684, %v3686
      %3790 = vadd.xlane.f32.xlu0 %v3789
      %v3791 = vpop.xlane.xlu0 %3790
      %v3792 = vadd.f32 %v3688, %v3690
      %3793 = vadd.xlane.f32.xlu0 %v3792
      %v3794 = vpop.xlane.xlu0 %3793
      %v3795 = vadd.f32 %v3692, %v3694
      %3796 = vadd.xlane.f32.xlu0 %v3795
      %v3797 = vpop.xlane.xlu0 %3796
      %v3798 = vadd.f32 %v3696, %v3698
      %3799 = vadd.xlane.f32.xlu0 %v3798
      %v3800 = vpop.xlane.xlu0 %3799
      %v3801 = vadd.f32 %v3700, %v3702
      %3802 = vadd.xlane.f32.xlu0 %v3801
      %v3803 = vpop.xlane.xlu0 %3802
      %v3804 = vadd.f32 %v3704, %v3706
      %3805 = vadd.xlane.f32.xlu0 %v3804
      %v3806 = vpop.xlane.xlu0 %3805
      %v3807 = vadd.f32 %v3708, %v3710
      %3808 = vadd.xlane.f32.xlu0 %v3807
      %v3809 = vpop.xlane.xlu0 %3808
      %v3810 = vadd.f32 %v3712, %v3714
      %3811 = vadd.xlane.f32.xlu0 %v3810
      %v3812 = vpop.xlane.xlu0 %3811
      %v3813 = vadd.f32 %v3716, %v3718
      %3814 = vadd.xlane.f32.xlu0 %v3813
      %v3815 = vpop.xlane.xlu0 %3814
      %v3816 = vadd.f32 %v3720, %v3722
      %3817 = vadd.xlane.f32.xlu0 %v3816
      %v3818 = vpop.xlane.xlu0 %3817
      %v3819 = vrcp.pop %v3725
      %v3820 = vrcp.pop %v3728
      %v3821 = vrcp.pop %v3731
      %v3822 = vrcp.pop %v3734
      %v3823 = vrcp.pop %v3737
      %v3824 = vrcp.pop %v3740
      %v3825 = vrcp.pop %v3743
      %v3826 = vrcp.pop %v3746
      %v3827 = vrcp.pop %v3749
      %v3828 = vrcp.pop %v3752
      %v3829 = vrcp.pop %v3755
      %v3830 = vrcp.pop %v3758
      %v3831 = vrcp.pop %v3761
      %v3832 = vrcp.pop %v3764
      %v3833 = vrcp.pop %v3767
      %v3834 = vrcp.pop %v3770
      %v3835 = vrcp.pop %v3773
      %v3836 = vrcp.pop %v3776
      %v3837 = vrcp.pop %v3779
      %v3838 = vrcp.pop %v3782
      %v3839 = vrcp.pop %v3785
      %v3840 = vrcp.pop %v3788
      %v3841 = vrcp.pop %v3791
      %v3842 = vrcp.pop %v3794
      %v3843 = vrcp.pop %v3797
      %v3844 = vrcp.pop %v3800
      %v3845 = vrcp.pop %v3803
      %v3846 = vrcp.pop %v3806
      %v3847 = vrcp.pop %v3809
      %v3848 = vrcp.pop %v3812
      %v3849 = vrcp.pop %v3815
      %v3850 = vrcp.pop %v3818
      %v3851 = vmul.f32 %v3596, %v3819
      %v3852 = vmul.f32 %v3598, %v3819
      %v3853 = vmul.f32 %v3600, %v3820
      %v3854 = vmul.f32 %v3602, %v3820
      %v3855 = vmul.f32 %v3604, %v3821
      %v3856 = vmul.f32 %v3606, %v3821
      %v3857 = vmul.f32 %v3608, %v3822
      %v3858 = vmul.f32 %v3610, %v3822
      %v3859 = vmul.f32 %v3612, %v3823
      %v3860 = vmul.f32 %v3614, %v3823
      %v3861 = vmul.f32 %v3616, %v3824
      %v3862 = vmul.f32 %v3618, %v3824
      %v3863 = vmul.f32 %v3620, %v3825
      %v3864 = vmul.f32 %v3622, %v3825
      %v3865 = vmul.f32 %v3624, %v3826
      %v3866 = vmul.f32 %v3626, %v3826
      %v3867 = vmul.f32 %v3628, %v3827
      %v3868 = vmul.f32 %v3630, %v3827
      %v3869 = vmul.f32 %v3632, %v3828
      %v3870 = vmul.f32 %v3634, %v3828
      %v3871 = vmul.f32 %v3636, %v3829
      %v3872 = vmul.f32 %v3638, %v3829
      %v3873 = vmul.f32 %v3640, %v3830
      %v3874 = vmul.f32 %v3642, %v3830
      %v3875 = vmul.f32 %v3644, %v3831
      %v3876 = vmul.f32 %v3646, %v3831
      %v3877 = vmul.f32 %v3648, %v3832
      %v3878 = vmul.f32 %v3650, %v3832
      %v3879 = vmul.f32 %v3652, %v3833
      %v3880 = vmul.f32 %v3654, %v3833
      %v3881 = vmul.f32 %v3656, %v3834
      %v3882 = vmul.f32 %v3658, %v3834
      %v3883 = vmul.f32 %v3660, %v3835
      %v3884 = vmul.f32 %v3662, %v3835
      %v3885 = vmul.f32 %v3664, %v3836
      %v3886 = vmul.f32 %v3666, %v3836
      %v3887 = vmul.f32 %v3668, %v3837
      %v3888 = vmul.f32 %v3670, %v3837
      %v3889 = vmul.f32 %v3672, %v3838
      %v3890 = vmul.f32 %v3674, %v3838
      %v3891 = vmul.f32 %v3676, %v3839
      %v3892 = vmul.f32 %v3678, %v3839
      %v3893 = vmul.f32 %v3680, %v3840
      %v3894 = vmul.f32 %v3682, %v3840
      %v3895 = vmul.f32 %v3684, %v3841
      %v3896 = vmul.f32 %v3686, %v3841
      %v3897 = vmul.f32 %v3688, %v3842
      %v3898 = vmul.f32 %v3690, %v3842
      %v3899 = vmul.f32 %v3692, %v3843
      %v3900 = vmul.f32 %v3694, %v3843
      %v3901 = vmul.f32 %v3696, %v3844
      %v3902 = vmul.f32 %v3698, %v3844
      %v3903 = vmul.f32 %v3700, %v3845
      %v3904 = vmul.f32 %v3702, %v3845
      %v3905 = vmul.f32 %v3704, %v3846
      %v3906 = vmul.f32 %v3706, %v3846
      %v3907 = vmul.f32 %v3708, %v3847
      %v3908 = vmul.f32 %v3710, %v3847
      %v3909 = vmul.f32 %v3712, %v3848
      %v3910 = vmul.f32 %v3714, %v3848
      %v3911 = vmul.f32 %v3716, %v3849
      %v3912 = vmul.f32 %v3718, %v3849
      %v3913 = vmul.f32 %v3720, %v3850
      %v3914 = vmul.f32 %v3722, %v3850
      %v3915 = vpack.c.bf16 %v3853, %v3851
      %v3916 = vpack.c.bf16 %v3854, %v3852
      %v3917 = vpack.c.bf16 %v3857, %v3855
      %v3918 = vpack.c.bf16 %v3858, %v3856
      %v3919 = vpack.c.bf16 %v3861, %v3859
      %v3920 = vpack.c.bf16 %v3862, %v3860
      %v3921 = vpack.c.bf16 %v3865, %v3863
      %v3922 = vpack.c.bf16 %v3866, %v3864
      %v3923 = vpack.c.bf16 %v3869, %v3867
      %v3924 = vpack.c.bf16 %v3870, %v3868
      %v3925 = vpack.c.bf16 %v3873, %v3871
      %v3926 = vpack.c.bf16 %v3874, %v3872
      %v3927 = vpack.c.bf16 %v3877, %v3875
      %v3928 = vpack.c.bf16 %v3878, %v3876
      %v3929 = vpack.c.bf16 %v3881, %v3879
      %v3930 = vpack.c.bf16 %v3882, %v3880
      %v3931 = vpack.c.bf16 %v3885, %v3883
      %v3932 = vpack.c.bf16 %v3886, %v3884
      %v3933 = vpack.c.bf16 %v3889, %v3887
      %v3934 = vpack.c.bf16 %v3890, %v3888
      %v3935 = vpack.c.bf16 %v3893, %v3891
      %v3936 = vpack.c.bf16 %v3894, %v3892
      %v3937 = vpack.c.bf16 %v3897, %v3895
      %v3938 = vpack.c.bf16 %v3898, %v3896
      %v3939 = vpack.c.bf16 %v3901, %v3899
      %v3940 = vpack.c.bf16 %v3902, %v3900
      %v3941 = vpack.c.bf16 %v3905, %v3903
      %v3942 = vpack.c.bf16 %v3906, %v3904
      %v3943 = vpack.c.bf16 %v3909, %v3907
      %v3944 = vpack.c.bf16 %v3910, %v3908
      %v3945 = vpack.c.bf16 %v3913, %v3911
      %v3946 = vpack.c.bf16 %v3914, %v3912
      %v3947 = vrot.slane %v1313, 2
      %v3948 = vrot.slane %v1314, 2
      %3951 = vmatpush.bf16.xpose.msra.mxu0 %v3929
      %3952 = vmatpush.bf16.xpose.msra.mxu0 %v3927
      %3953 = vmatpush.bf16.xpose.msra.mxu0 %v3925
      %3954 = vmatpush.bf16.xpose.msra.mxu0 %v3923
      %3955 = vmatpush.bf16.xpose.msra.mxu0 %v3921
      %3956 = vmatpush.bf16.xpose.msra.mxu0 %v3919
      %3957 = vmatpush.bf16.xpose.msra.mxu0 %v3917
      %3958 = vmatpush.bf16.xpose.msra.mxu0 %v3915
      %3959 = vmatmul.bf16.gmra.mxu0 %v3947
      %v3960 = vpop.f32.mrf.mxu0
      %v3961 = vadd.f32 0.0, %v3960
      %v3962 = vpop.f32.mrf.mxu0
      %3963 = vdwg.mxu0
      %3964 = vmatpush.bf16.xpose.msra.mxu0 %v3930
      %3965 = vmatpush.bf16.xpose.msra.mxu0 %v3928
      %3966 = vmatpush.bf16.xpose.msra.mxu0 %v3926
      %3967 = vmatpush.bf16.xpose.msra.mxu0 %v3924
      %3968 = vmatpush.bf16.xpose.msra.mxu0 %v3922
      %3969 = vmatpush.bf16.xpose.msra.mxu0 %v3920
      %3970 = vmatpush.bf16.xpose.msra.mxu0 %v3918
      %3971 = vmatpush.bf16.xpose.msra.mxu0 %v3916
      %3972 = vmatmul.bf16.gmra.mxu0 %v3948
      %v3973 = vpop.f32.mrf.mxu0
      %v3974 = vadd.f32 %v3961, %v3973
      %v3975 = vpop.f32.mrf.mxu0
      %3976 = vdwg.mxu0
      %3977 = vmatpush.bf16.xpose.msra.mxu0 %v3945
      %3978 = vmatpush.bf16.xpose.msra.mxu0 %v3943
      %3979 = vmatpush.bf16.xpose.msra.mxu0 %v3941
      %3980 = vmatpush.bf16.xpose.msra.mxu0 %v3939
      %3981 = vmatpush.bf16.xpose.msra.mxu0 %v3937
      %3982 = vmatpush.bf16.xpose.msra.mxu0 %v3935
      %3983 = vmatpush.bf16.xpose.msra.mxu0 %v3933
      %3984 = vmatpush.bf16.xpose.msra.mxu0 %v3931
      %3985 = vmatmul.bf16.gmra.mxu0 %v3947
      %v3986 = vpop.f32.mrf.mxu0
      %v3987 = vadd.f32 0.0, %v3986
      %v3988 = vpop.f32.mrf.mxu0
      %3989 = vdwg.mxu0
      %3990 = vmatpush.bf16.xpose.msra.mxu0 %v3946
      %3991 = vmatpush.bf16.xpose.msra.mxu0 %v3944
      %3992 = vmatpush.bf16.xpose.msra.mxu0 %v3942
      %3993 = vmatpush.bf16.xpose.msra.mxu0 %v3940
      %3994 = vmatpush.bf16.xpose.msra.mxu0 %v3938
      %3995 = vmatpush.bf16.xpose.msra.mxu0 %v3936
      %3996 = vmatpush.bf16.xpose.msra.mxu0 %v3934
      %3997 = vmatpush.bf16.xpose.msra.mxu0 %v3932
      %3998 = vmatmul.bf16.gmra.mxu0 %v3948
      %v3999 = vpop.f32.mrf.mxu0
      %v4000 = vadd.f32 %v3987, %v3999
      %v4001 = vpop.f32.mrf.mxu0
      %4002 = vdwg.mxu0
      %v4005 = vrot.slane %v3974, 4
      %v4006 = vrot.slane %v4000, 4
      %4009 = vst [vmem:[#allocation4] sm:$0x30] %v4005
      %4010 = vst [vmem:[#allocation4 + $0x8] sm:$0x30] %v4006
      %4011 = vrot.lane.b32.xlu0 %v1295, 122
      %v4012 = vpop.permute.xlu0 %4011
      %4013 = vrot.lane.b32.xlu0 %v1296, 122
      %v4014 = vpop.permute.xlu0 %4013
      %4015 = vrot.lane.b32.xlu0 %v1297, 122
      %v4016 = vpop.permute.xlu0 %4015
      %4017 = vrot.lane.b32.xlu0 %v1298, 122
      %v4018 = vpop.permute.xlu0 %4017
      %4019 = vrot.lane.b32.xlu0 %v1299, 122
      %v4020 = vpop.permute.xlu0 %4019
      %4021 = vrot.lane.b32.xlu0 %v1300, 122
      %v4022 = vpop.permute.xlu0 %4021
      %4023 = vrot.lane.b32.xlu0 %v1301, 122
      %v4024 = vpop.permute.xlu0 %4023
      %4025 = vrot.lane.b32.xlu0 %v1302, 122
      %v4026 = vpop.permute.xlu0 %4025
      %4027 = vrot.lane.b32.xlu0 %v1303, 122
      %v4028 = vpop.permute.xlu0 %4027
      %4029 = vrot.lane.b32.xlu0 %v1304, 122
      %v4030 = vpop.permute.xlu0 %4029
      %4031 = vrot.lane.b32.xlu0 %v1305, 122
      %v4032 = vpop.permute.xlu0 %4031
      %4033 = vrot.lane.b32.xlu0 %v1306, 122
      %v4034 = vpop.permute.xlu0 %4033
      %4035 = vrot.lane.b32.xlu0 %v1307, 122
      %v4036 = vpop.permute.xlu0 %4035
      %4037 = vrot.lane.b32.xlu0 %v1308, 122
      %v4038 = vpop.permute.xlu0 %4037
      %4039 = vrot.lane.b32.xlu0 %v1309, 122
      %v4040 = vpop.permute.xlu0 %4039
      %4041 = vrot.lane.b32.xlu0 %v1310, 122
      %v4042 = vpop.permute.xlu0 %4041
      %v4043 = vrot.slane %v1311, 3
      %v4044 = vrot.slane %v1312, 3
      %v4046 = vsel %vm1315, %v4012, 0
      %v4049 = vsel %vm1315, %v4014, 0
      %v4052 = vsel %vm1315, %v4016, 0
      %v4055 = vsel %vm1315, %v4018, 0
      %v4058 = vsel %vm1315, %v4020, 0
      %v4061 = vsel %vm1315, %v4022, 0
      %v4064 = vsel %vm1315, %v4024, 0
      %v4067 = vsel %vm1315, %v4026, 0
      %v4070 = vsel %vm1315, %v4028, 0
      %v4073 = vsel %vm1315, %v4030, 0
      %v4076 = vsel %vm1315, %v4032, 0
      %v4079 = vsel %vm1315, %v4034, 0
      %v4082 = vsel %vm1315, %v4036, 0
      %v4085 = vsel %vm1315, %v4038, 0
      %v4088 = vsel %vm1315, %v4040, 0
      %v4091 = vsel %vm1315, %v4042, 0
      %v4094 = vsel %vm1364, %v4043, 0
      %v4097 = vsel %vm1364, %v4044, 0
      %4099 = vmatpush.bf16.msra.mxu0 0
      %4100 = vmatpush.bf16.msra.mxu0 0
      %4101 = vmatpush.bf16.msra.mxu0 0
      %4102 = vmatpush.bf16.msra.mxu0 0
      %4103 = vmatpush.bf16.msra.mxu0 0
      %4104 = vmatpush.bf16.msra.mxu0 0
      %4105 = vmatpush.bf16.msra.mxu0 0
      %4106 = vmatpush.bf16.msra.mxu0 %v4094
      %4107 = vmatmul.bf16.gmra.mxu0 %v4046
      %v4108 = vpop.f32.mrf.mxu0
      %v4109 = vadd.f32 0.0, %v4108
      %v4110 = vpop.f32.mrf.mxu0
      %v4111 = vadd.f32 0.0, %v4110
      %4112 = vmatmul.bf16.gmra.mxu0 %v4049
      %v4113 = vpop.f32.mrf.mxu0
      %v4114 = vadd.f32 0.0, %v4113
      %v4115 = vpop.f32.mrf.mxu0
      %v4116 = vadd.f32 0.0, %v4115
      %4117 = vmatmul.bf16.gmra.mxu0 %v4052
      %v4118 = vpop.f32.mrf.mxu0
      %v4119 = vadd.f32 0.0, %v4118
      %v4120 = vpop.f32.mrf.mxu0
      %v4121 = vadd.f32 0.0, %v4120
      %4122 = vmatmul.bf16.gmra.mxu0 %v4055
      %v4123 = vpop.f32.mrf.mxu0
      %v4124 = vadd.f32 0.0, %v4123
      %v4125 = vpop.f32.mrf.mxu0
      %v4126 = vadd.f32 0.0, %v4125
      %4127 = vmatmul.bf16.gmra.mxu0 %v4058
      %v4128 = vpop.f32.mrf.mxu0
      %v4129 = vadd.f32 0.0, %v4128
      %v4130 = vpop.f32.mrf.mxu0
      %v4131 = vadd.f32 0.0, %v4130
      %4132 = vmatmul.bf16.gmra.mxu0 %v4061
      %v4133 = vpop.f32.mrf.mxu0
      %v4134 = vadd.f32 0.0, %v4133
      %v4135 = vpop.f32.mrf.mxu0
      %v4136 = vadd.f32 0.0, %v4135
      %4137 = vmatmul.bf16.gmra.mxu0 %v4064
      %v4138 = vpop.f32.mrf.mxu0
      %v4139 = vadd.f32 0.0, %v4138
      %v4140 = vpop.f32.mrf.mxu0
      %v4141 = vadd.f32 0.0, %v4140
      %4142 = vmatmul.bf16.gmra.mxu0 %v4067
      %v4143 = vpop.f32.mrf.mxu0
      %v4144 = vadd.f32 0.0, %v4143
      %v4145 = vpop.f32.mrf.mxu0
      %v4146 = vadd.f32 0.0, %v4145
      %4147 = vmatmul.bf16.gmra.mxu0 %v4070
      %v4148 = vpop.f32.mrf.mxu0
      %v4149 = vadd.f32 0.0, %v4148
      %v4150 = vpop.f32.mrf.mxu0
      %v4151 = vadd.f32 0.0, %v4150
      %4152 = vmatmul.bf16.gmra.mxu0 %v4073
      %v4153 = vpop.f32.mrf.mxu0
      %v4154 = vadd.f32 0.0, %v4153
      %v4155 = vpop.f32.mrf.mxu0
      %v4156 = vadd.f32 0.0, %v4155
      %4157 = vmatmul.bf16.gmra.mxu0 %v4076
      %v4158 = vpop.f32.mrf.mxu0
      %v4159 = vadd.f32 0.0, %v4158
      %v4160 = vpop.f32.mrf.mxu0
      %v4161 = vadd.f32 0.0, %v4160
      %4162 = vmatmul.bf16.gmra.mxu0 %v4079
      %v4163 = vpop.f32.mrf.mxu0
      %v4164 = vadd.f32 0.0, %v4163
      %v4165 = vpop.f32.mrf.mxu0
      %v4166 = vadd.f32 0.0, %v4165
      %4167 = vmatmul.bf16.gmra.mxu0 %v4082
      %v4168 = vpop.f32.mrf.mxu0
      %v4169 = vadd.f32 0.0, %v4168
      %v4170 = vpop.f32.mrf.mxu0
      %v4171 = vadd.f32 0.0, %v4170
      %4172 = vmatmul.bf16.gmra.mxu0 %v4085
      %v4173 = vpop.f32.mrf.mxu0
      %v4174 = vadd.f32 0.0, %v4173
      %v4175 = vpop.f32.mrf.mxu0
      %v4176 = vadd.f32 0.0, %v4175
      %4177 = vmatmul.bf16.gmra.mxu0 %v4088
      %v4178 = vpop.f32.mrf.mxu0
      %v4179 = vadd.f32 0.0, %v4178
      %v4180 = vpop.f32.mrf.mxu0
      %v4181 = vadd.f32 0.0, %v4180
      %4182 = vmatmul.bf16.gmra.mxu0 %v4091
      %v4183 = vpop.f32.mrf.mxu0
      %v4184 = vadd.f32 0.0, %v4183
      %v4185 = vpop.f32.mrf.mxu0
      %v4186 = vadd.f32 0.0, %v4185
      %4187 = vdwg.mxu0
      %4188 = vmatpush.bf16.msra.mxu0 0
      %4189 = vmatpush.bf16.msra.mxu0 0
      %4190 = vmatpush.bf16.msra.mxu0 0
      %4191 = vmatpush.bf16.msra.mxu0 0
      %4192 = vmatpush.bf16.msra.mxu0 0
      %4193 = vmatpush.bf16.msra.mxu0 0
      %4194 = vmatpush.bf16.msra.mxu0 0
      %4195 = vmatpush.bf16.msra.mxu0 %v4097
      %4196 = vmatmul.bf16.gmra.mxu0 %v4046
      %v4197 = vpop.f32.mrf.mxu0
      %v4198 = vadd.f32 0.0, %v4197
      %v4199 = vpop.f32.mrf.mxu0
      %v4200 = vadd.f32 0.0, %v4199
      %4201 = vmatmul.bf16.gmra.mxu0 %v4049
      %v4202 = vpop.f32.mrf.mxu0
      %v4203 = vadd.f32 0.0, %v4202
      %v4204 = vpop.f32.mrf.mxu0
      %v4205 = vadd.f32 0.0, %v4204
      %4206 = vmatmul.bf16.gmra.mxu0 %v4052
      %v4207 = vpop.f32.mrf.mxu0
      %v4208 = vadd.f32 0.0, %v4207
      %v4209 = vpop.f32.mrf.mxu0
      %v4210 = vadd.f32 0.0, %v4209
      %4211 = vmatmul.bf16.gmra.mxu0 %v4055
      %v4212 = vpop.f32.mrf.mxu0
      %v4213 = vadd.f32 0.0, %v4212
      %v4214 = vpop.f32.mrf.mxu0
      %v4215 = vadd.f32 0.0, %v4214
      %4216 = vmatmul.bf16.gmra.mxu0 %v4058
      %v4217 = vpop.f32.mrf.mxu0
      %v4218 = vadd.f32 0.0, %v4217
      %v4219 = vpop.f32.mrf.mxu0
      %v4220 = vadd.f32 0.0, %v4219
      %4221 = vmatmul.bf16.gmra.mxu0 %v4061
      %v4222 = vpop.f32.mrf.mxu0
      %v4223 = vadd.f32 0.0, %v4222
      %v4224 = vpop.f32.mrf.mxu0
      %v4225 = vadd.f32 0.0, %v4224
      %4226 = vmatmul.bf16.gmra.mxu0 %v4064
      %v4227 = vpop.f32.mrf.mxu0
      %v4228 = vadd.f32 0.0, %v4227
      %v4229 = vpop.f32.mrf.mxu0
      %v4230 = vadd.f32 0.0, %v4229
      %4231 = vmatmul.bf16.gmra.mxu0 %v4067
      %v4232 = vpop.f32.mrf.mxu0
      %v4233 = vadd.f32 0.0, %v4232
      %v4234 = vpop.f32.mrf.mxu0
      %v4235 = vadd.f32 0.0, %v4234
      %4236 = vmatmul.bf16.gmra.mxu0 %v4070
      %v4237 = vpop.f32.mrf.mxu0
      %v4238 = vadd.f32 0.0, %v4237
      %v4239 = vpop.f32.mrf.mxu0
      %v4240 = vadd.f32 0.0, %v4239
      %4241 = vmatmul.bf16.gmra.mxu0 %v4073
      %v4242 = vpop.f32.mrf.mxu0
      %v4243 = vadd.f32 0.0, %v4242
      %v4244 = vpop.f32.mrf.mxu0
      %v4245 = vadd.f32 0.0, %v4244
      %4246 = vmatmul.bf16.gmra.mxu0 %v4076
      %v4247 = vpop.f32.mrf.mxu0
      %v4248 = vadd.f32 0.0, %v4247
      %v4249 = vpop.f32.mrf.mxu0
      %v4250 = vadd.f32 0.0, %v4249
      %4251 = vmatmul.bf16.gmra.mxu0 %v4079
      %v4252 = vpop.f32.mrf.mxu0
      %v4253 = vadd.f32 0.0, %v4252
      %v4254 = vpop.f32.mrf.mxu0
      %v4255 = vadd.f32 0.0, %v4254
      %4256 = vmatmul.bf16.gmra.mxu0 %v4082
      %v4257 = vpop.f32.mrf.mxu0
      %v4258 = vadd.f32 0.0, %v4257
      %v4259 = vpop.f32.mrf.mxu0
      %v4260 = vadd.f32 0.0, %v4259
      %4261 = vmatmul.bf16.gmra.mxu0 %v4085
      %v4262 = vpop.f32.mrf.mxu0
      %v4263 = vadd.f32 0.0, %v4262
      %v4264 = vpop.f32.mrf.mxu0
      %v4265 = vadd.f32 0.0, %v4264
      %4266 = vmatmul.bf16.gmra.mxu0 %v4088
      %v4267 = vpop.f32.mrf.mxu0
      %v4268 = vadd.f32 0.0, %v4267
      %v4269 = vpop.f32.mrf.mxu0
      %v4270 = vadd.f32 0.0, %v4269
      %4271 = vmatmul.bf16.gmra.mxu0 %v4091
      %v4272 = vpop.f32.mrf.mxu0
      %v4273 = vadd.f32 0.0, %v4272
      %v4274 = vpop.f32.mrf.mxu0
      %v4275 = vadd.f32 0.0, %v4274
      %4276 = vdwg.mxu0
      %v4277 = vmul.f32 %v4109, 0.70710677
      %v4278 = vmul.f32 %v4198, 0.70710677
      %v4279 = vmul.f32 %v4111, 0.70710677
      %v4280 = vmul.f32 %v4200, 0.70710677
      %v4281 = vmul.f32 %v4114, 0.70710677
      %v4282 = vmul.f32 %v4203, 0.70710677
      %v4283 = vmul.f32 %v4116, 0.70710677
      %v4284 = vmul.f32 %v4205, 0.70710677
      %v4285 = vmul.f32 %v4119, 0.70710677
      %v4286 = vmul.f32 %v4208, 0.70710677
      %v4287 = vmul.f32 %v4121, 0.70710677
      %v4288 = vmul.f32 %v4210, 0.70710677
      %v4289 = vmul.f32 %v4124, 0.70710677
      %v4290 = vmul.f32 %v4213, 0.70710677
      %v4291 = vmul.f32 %v4126, 0.70710677
      %v4292 = vmul.f32 %v4215, 0.70710677
      %v4293 = vmul.f32 %v4129, 0.70710677
      %v4294 = vmul.f32 %v4218, 0.70710677
      %v4295 = vmul.f32 %v4131, 0.70710677
      %v4296 = vmul.f32 %v4220, 0.70710677
      %v4297 = vmul.f32 %v4134, 0.70710677
      %v4298 = vmul.f32 %v4223, 0.70710677
      %v4299 = vmul.f32 %v4136, 0.70710677
      %v4300 = vmul.f32 %v4225, 0.70710677
      %v4301 = vmul.f32 %v4139, 0.70710677
      %v4302 = vmul.f32 %v4228, 0.70710677
      %v4303 = vmul.f32 %v4141, 0.70710677
      %v4304 = vmul.f32 %v4230, 0.70710677
      %v4305 = vmul.f32 %v4144, 0.70710677
      %v4306 = vmul.f32 %v4233, 0.70710677
      %v4307 = vmul.f32 %v4146, 0.70710677
      %v4308 = vmul.f32 %v4235, 0.70710677
      %v4309 = vmul.f32 %v4149, 0.70710677
      %v4310 = vmul.f32 %v4238, 0.70710677
      %v4311 = vmul.f32 %v4151, 0.70710677
      %v4312 = vmul.f32 %v4240, 0.70710677
      %v4313 = vmul.f32 %v4154, 0.70710677
      %v4314 = vmul.f32 %v4243, 0.70710677
      %v4315 = vmul.f32 %v4156, 0.70710677
      %v4316 = vmul.f32 %v4245, 0.70710677
      %v4317 = vmul.f32 %v4159, 0.70710677
      %v4318 = vmul.f32 %v4248, 0.70710677
      %v4319 = vmul.f32 %v4161, 0.70710677
      %v4320 = vmul.f32 %v4250, 0.70710677
      %v4321 = vmul.f32 %v4164, 0.70710677
      %v4322 = vmul.f32 %v4253, 0.70710677
      %v4323 = vmul.f32 %v4166, 0.70710677
      %v4324 = vmul.f32 %v4255, 0.70710677
      %v4325 = vmul.f32 %v4169, 0.70710677
      %v4326 = vmul.f32 %v4258, 0.70710677
      %v4327 = vmul.f32 %v4171, 0.70710677
      %v4328 = vmul.f32 %v4260, 0.70710677
      %v4329 = vmul.f32 %v4174, 0.70710677
      %v4330 = vmul.f32 %v4263, 0.70710677
      %v4331 = vmul.f32 %v4176, 0.70710677
      %v4332 = vmul.f32 %v4265, 0.70710677
      %v4333 = vmul.f32 %v4179, 0.70710677
      %v4334 = vmul.f32 %v4268, 0.70710677
      %v4335 = vmul.f32 %v4181, 0.70710677
      %v4336 = vmul.f32 %v4270, 0.70710677
      %v4337 = vmul.f32 %v4184, 0.70710677
      %v4338 = vmul.f32 %v4273, 0.70710677
      %v4339 = vmul.f32 %v4186, 0.70710677
      %v4340 = vmul.f32 %v4275, 0.70710677
      %v4341 = vmax.f32 %v4277, %v4278
      %4342 = vmax.xlane.f32.xlu0 %v4341
      %v4343 = vpop.xlane.xlu0 %4342
      %v4344 = vmax.f32 %v4279, %v4280
      %4345 = vmax.xlane.f32.xlu0 %v4344
      %v4346 = vpop.xlane.xlu0 %4345
      %v4347 = vmax.f32 %v4281, %v4282
      %4348 = vmax.xlane.f32.xlu0 %v4347
      %v4349 = vpop.xlane.xlu0 %4348
      %v4350 = vmax.f32 %v4283, %v4284
      %4351 = vmax.xlane.f32.xlu0 %v4350
      %v4352 = vpop.xlane.xlu0 %4351
      %v4353 = vmax.f32 %v4285, %v4286
      %4354 = vmax.xlane.f32.xlu0 %v4353
      %v4355 = vpop.xlane.xlu0 %4354
      %v4356 = vmax.f32 %v4287, %v4288
      %4357 = vmax.xlane.f32.xlu0 %v4356
      %v4358 = vpop.xlane.xlu0 %4357
      %v4359 = vmax.f32 %v4289, %v4290
      %4360 = vmax.xlane.f32.xlu0 %v4359
      %v4361 = vpop.xlane.xlu0 %4360
      %v4362 = vmax.f32 %v4291, %v4292
      %4363 = vmax.xlane.f32.xlu0 %v4362
      %v4364 = vpop.xlane.xlu0 %4363
      %v4365 = vmax.f32 %v4293, %v4294
      %4366 = vmax.xlane.f32.xlu0 %v4365
      %v4367 = vpop.xlane.xlu0 %4366
      %v4368 = vmax.f32 %v4295, %v4296
      %4369 = vmax.xlane.f32.xlu0 %v4368
      %v4370 = vpop.xlane.xlu0 %4369
      %v4371 = vmax.f32 %v4297, %v4298
      %4372 = vmax.xlane.f32.xlu0 %v4371
      %v4373 = vpop.xlane.xlu0 %4372
      %v4374 = vmax.f32 %v4299, %v4300
      %4375 = vmax.xlane.f32.xlu0 %v4374
      %v4376 = vpop.xlane.xlu0 %4375
      %v4377 = vmax.f32 %v4301, %v4302
      %4378 = vmax.xlane.f32.xlu0 %v4377
      %v4379 = vpop.xlane.xlu0 %4378
      %v4380 = vmax.f32 %v4303, %v4304
      %4381 = vmax.xlane.f32.xlu0 %v4380
      %v4382 = vpop.xlane.xlu0 %4381
      %v4383 = vmax.f32 %v4305, %v4306
      %4384 = vmax.xlane.f32.xlu0 %v4383
      %v4385 = vpop.xlane.xlu0 %4384
      %v4386 = vmax.f32 %v4307, %v4308
      %4387 = vmax.xlane.f32.xlu0 %v4386
      %v4388 = vpop.xlane.xlu0 %4387
      %v4389 = vmax.f32 %v4309, %v4310
      %4390 = vmax.xlane.f32.xlu0 %v4389
      %v4391 = vpop.xlane.xlu0 %4390
      %v4392 = vmax.f32 %v4311, %v4312
      %4393 = vmax.xlane.f32.xlu0 %v4392
      %v4394 = vpop.xlane.xlu0 %4393
      %v4395 = vmax.f32 %v4313, %v4314
      %4396 = vmax.xlane.f32.xlu0 %v4395
      %v4397 = vpop.xlane.xlu0 %4396
      %v4398 = vmax.f32 %v4315, %v4316
      %4399 = vmax.xlane.f32.xlu0 %v4398
      %v4400 = vpop.xlane.xlu0 %4399
      %v4401 = vmax.f32 %v4317, %v4318
      %4402 = vmax.xlane.f32.xlu0 %v4401
      %v4403 = vpop.xlane.xlu0 %4402
      %v4404 = vmax.f32 %v4319, %v4320
      %4405 = vmax.xlane.f32.xlu0 %v4404
      %v4406 = vpop.xlane.xlu0 %4405
      %v4407 = vmax.f32 %v4321, %v4322
      %4408 = vmax.xlane.f32.xlu0 %v4407
      %v4409 = vpop.xlane.xlu0 %4408
      %v4410 = vmax.f32 %v4323, %v4324
      %4411 = vmax.xlane.f32.xlu0 %v4410
      %v4412 = vpop.xlane.xlu0 %4411
      %v4413 = vmax.f32 %v4325, %v4326
      %4414 = vmax.xlane.f32.xlu0 %v4413
      %v4415 = vpop.xlane.xlu0 %4414
      %v4416 = vmax.f32 %v4327, %v4328
      %4417 = vmax.xlane.f32.xlu0 %v4416
      %v4418 = vpop.xlane.xlu0 %4417
      %v4419 = vmax.f32 %v4329, %v4330
      %4420 = vmax.xlane.f32.xlu0 %v4419
      %v4421 = vpop.xlane.xlu0 %4420
      %v4422 = vmax.f32 %v4331, %v4332
      %4423 = vmax.xlane.f32.xlu0 %v4422
      %v4424 = vpop.xlane.xlu0 %4423
      %v4425 = vmax.f32 %v4333, %v4334
      %4426 = vmax.xlane.f32.xlu0 %v4425
      %v4427 = vpop.xlane.xlu0 %4426
      %v4428 = vmax.f32 %v4335, %v4336
      %4429 = vmax.xlane.f32.xlu0 %v4428
      %v4430 = vpop.xlane.xlu0 %4429
      %v4431 = vmax.f32 %v4337, %v4338
      %4432 = vmax.xlane.f32.xlu0 %v4431
      %v4433 = vpop.xlane.xlu0 %4432
      %v4434 = vmax.f32 %v4339, %v4340
      %4435 = vmax.xlane.f32.xlu0 %v4434
      %v4436 = vpop.xlane.xlu0 %4435
      %v4437 = vsub.f32 %v4277, %v4343
      %v4438 = vsub.f32 %v4278, %v4343
      %v4439 = vsub.f32 %v4279, %v4346
      %v4440 = vsub.f32 %v4280, %v4346
      %v4441 = vsub.f32 %v4281, %v4349
      %v4442 = vsub.f32 %v4282, %v4349
      %v4443 = vsub.f32 %v4283, %v4352
      %v4444 = vsub.f32 %v4284, %v4352
      %v4445 = vsub.f32 %v4285, %v4355
      %v4446 = vsub.f32 %v4286, %v4355
      %v4447 = vsub.f32 %v4287, %v4358
      %v4448 = vsub.f32 %v4288, %v4358
      %v4449 = vsub.f32 %v4289, %v4361
      %v4450 = vsub.f32 %v4290, %v4361
      %v4451 = vsub.f32 %v4291, %v4364
      %v4452 = vsub.f32 %v4292, %v4364
      %v4453 = vsub.f32 %v4293, %v4367
      %v4454 = vsub.f32 %v4294, %v4367
      %v4455 = vsub.f32 %v4295, %v4370
      %v4456 = vsub.f32 %v4296, %v4370
      %v4457 = vsub.f32 %v4297, %v4373
      %v4458 = vsub.f32 %v4298, %v4373
      %v4459 = vsub.f32 %v4299, %v4376
      %v4460 = vsub.f32 %v4300, %v4376
      %v4461 = vsub.f32 %v4301, %v4379
      %v4462 = vsub.f32 %v4302, %v4379
      %v4463 = vsub.f32 %v4303, %v4382
      %v4464 = vsub.f32 %v4304, %v4382
      %v4465 = vsub.f32 %v4305, %v4385
      %v4466 = vsub.f32 %v4306, %v4385
      %v4467 = vsub.f32 %v4307, %v4388
      %v4468 = vsub.f32 %v4308, %v4388
      %v4469 = vsub.f32 %v4309, %v4391
      %v4470 = vsub.f32 %v4310, %v4391
      %v4471 = vsub.f32 %v4311, %v4394
      %v4472 = vsub.f32 %v4312, %v4394
      %v4473 = vsub.f32 %v4313, %v4397
      %v4474 = vsub.f32 %v4314, %v4397
      %v4475 = vsub.f32 %v4315, %v4400
      %v4476 = vsub.f32 %v4316, %v4400
      %v4477 = vsub.f32 %v4317, %v4403
      %v4478 = vsub.f32 %v4318, %v4403
      %v4479 = vsub.f32 %v4319, %v4406
      %v4480 = vsub.f32 %v4320, %v4406
      %v4481 = vsub.f32 %v4321, %v4409
      %v4482 = vsub.f32 %v4322, %v4409
      %v4483 = vsub.f32 %v4323, %v4412
      %v4484 = vsub.f32 %v4324, %v4412
      %v4485 = vsub.f32 %v4325, %v4415
      %v4486 = vsub.f32 %v4326, %v4415
      %v4487 = vsub.f32 %v4327, %v4418
      %v4488 = vsub.f32 %v4328, %v4418
      %v4489 = vsub.f32 %v4329, %v4421
      %v4490 = vsub.f32 %v4330, %v4421
      %v4491 = vsub.f32 %v4331, %v4424
      %v4492 = vsub.f32 %v4332, %v4424
      %v4493 = vsub.f32 %v4333, %v4427
      %v4494 = vsub.f32 %v4334, %v4427
      %v4495 = vsub.f32 %v4335, %v4430
      %v4496 = vsub.f32 %v4336, %v4430
      %v4497 = vsub.f32 %v4337, %v4433
      %v4498 = vsub.f32 %v4338, %v4433
      %v4499 = vsub.f32 %v4339, %v4436
      %v4500 = vsub.f32 %v4340, %v4436
      %v4501 = vmul.f32 %v4437, 1.442695
      %v4502 = vpow.pop %v4501
      %v4503 = vmul.f32 %v4438, 1.442695
      %v4504 = vpow.pop %v4503
      %v4505 = vmul.f32 %v4439, 1.442695
      %v4506 = vpow.pop %v4505
      %v4507 = vmul.f32 %v4440, 1.442695
      %v4508 = vpow.pop %v4507
      %v4509 = vmul.f32 %v4441, 1.442695
      %v4510 = vpow.pop %v4509
      %v4511 = vmul.f32 %v4442, 1.442695
      %v4512 = vpow.pop %v4511
      %v4513 = vmul.f32 %v4443, 1.442695
      %v4514 = vpow.pop %v4513
      %v4515 = vmul.f32 %v4444, 1.442695
      %v4516 = vpow.pop %v4515
      %v4517 = vmul.f32 %v4445, 1.442695
      %v4518 = vpow.pop %v4517
      %v4519 = vmul.f32 %v4446, 1.442695
      %v4520 = vpow.pop %v4519
      %v4521 = vmul.f32 %v4447, 1.442695
      %v4522 = vpow.pop %v4521
      %v4523 = vmul.f32 %v4448, 1.442695
      %v4524 = vpow.pop %v4523
      %v4525 = vmul.f32 %v4449, 1.442695
      %v4526 = vpow.pop %v4525
      %v4527 = vmul.f32 %v4450, 1.442695
      %v4528 = vpow.pop %v4527
      %v4529 = vmul.f32 %v4451, 1.442695
      %v4530 = vpow.pop %v4529
      %v4531 = vmul.f32 %v4452, 1.442695
      %v4532 = vpow.pop %v4531
      %v4533 = vmul.f32 %v4453, 1.442695
      %v4534 = vpow.pop %v4533
      %v4535 = vmul.f32 %v4454, 1.442695
      %v4536 = vpow.pop %v4535
      %v4537 = vmul.f32 %v4455, 1.442695
      %v4538 = vpow.pop %v4537
      %v4539 = vmul.f32 %v4456, 1.442695
      %v4540 = vpow.pop %v4539
      %v4541 = vmul.f32 %v4457, 1.442695
      %v4542 = vpow.pop %v4541
      %v4543 = vmul.f32 %v4458, 1.442695
      %v4544 = vpow.pop %v4543
      %v4545 = vmul.f32 %v4459, 1.442695
      %v4546 = vpow.pop %v4545
      %v4547 = vmul.f32 %v4460, 1.442695
      %v4548 = vpow.pop %v4547
      %v4549 = vmul.f32 %v4461, 1.442695
      %v4550 = vpow.pop %v4549
      %v4551 = vmul.f32 %v4462, 1.442695
      %v4552 = vpow.pop %v4551
      %v4553 = vmul.f32 %v4463, 1.442695
      %v4554 = vpow.pop %v4553
      %v4555 = vmul.f32 %v4464, 1.442695
      %v4556 = vpow.pop %v4555
      %v4557 = vmul.f32 %v4465, 1.442695
      %v4558 = vpow.pop %v4557
      %v4559 = vmul.f32 %v4466, 1.442695
      %v4560 = vpow.pop %v4559
      %v4561 = vmul.f32 %v4467, 1.442695
      %v4562 = vpow.pop %v4561
      %v4563 = vmul.f32 %v4468, 1.442695
      %v4564 = vpow.pop %v4563
      %v4565 = vmul.f32 %v4469, 1.442695
      %v4566 = vpow.pop %v4565
      %v4567 = vmul.f32 %v4470, 1.442695
      %v4568 = vpow.pop %v4567
      %v4569 = vmul.f32 %v4471, 1.442695
      %v4570 = vpow.pop %v4569
      %v4571 = vmul.f32 %v4472, 1.442695
      %v4572 = vpow.pop %v4571
      %v4573 = vmul.f32 %v4473, 1.442695
      %v4574 = vpow.pop %v4573
      %v4575 = vmul.f32 %v4474, 1.442695
      %v4576 = vpow.pop %v4575
      %v4577 = vmul.f32 %v4475, 1.442695
      %v4578 = vpow.pop %v4577
      %v4579 = vmul.f32 %v4476, 1.442695
      %v4580 = vpow.pop %v4579
      %v4581 = vmul.f32 %v4477, 1.442695
      %v4582 = vpow.pop %v4581
      %v4583 = vmul.f32 %v4478, 1.442695
      %v4584 = vpow.pop %v4583
      %v4585 = vmul.f32 %v4479, 1.442695
      %v4586 = vpow.pop %v4585
      %v4587 = vmul.f32 %v4480, 1.442695
      %v4588 = vpow.pop %v4587
      %v4589 = vmul.f32 %v4481, 1.442695
      %v4590 = vpow.pop %v4589
      %v4591 = vmul.f32 %v4482, 1.442695
      %v4592 = vpow.pop %v4591
      %v4593 = vmul.f32 %v4483, 1.442695
      %v4594 = vpow.pop %v4593
      %v4595 = vmul.f32 %v4484, 1.442695
      %v4596 = vpow.pop %v4595
      %v4597 = vmul.f32 %v4485, 1.442695
      %v4598 = vpow.pop %v4597
      %v4599 = vmul.f32 %v4486, 1.442695
      %v4600 = vpow.pop %v4599
      %v4601 = vmul.f32 %v4487, 1.442695
      %v4602 = vpow.pop %v4601
      %v4603 = vmul.f32 %v4488, 1.442695
      %v4604 = vpow.pop %v4603
      %v4605 = vmul.f32 %v4489, 1.442695
      %v4606 = vpow.pop %v4605
      %v4607 = vmul.f32 %v4490, 1.442695
      %v4608 = vpow.pop %v4607
      %v4609 = vmul.f32 %v4491, 1.442695
      %v4610 = vpow.pop %v4609
      %v4611 = vmul.f32 %v4492, 1.442695
      %v4612 = vpow.pop %v4611
      %v4613 = vmul.f32 %v4493, 1.442695
      %v4614 = vpow.pop %v4613
      %v4615 = vmul.f32 %v4494, 1.442695
      %v4616 = vpow.pop %v4615
      %v4617 = vmul.f32 %v4495, 1.442695
      %v4618 = vpow.pop %v4617
      %v4619 = vmul.f32 %v4496, 1.442695
      %v4620 = vpow.pop %v4619
      %v4621 = vmul.f32 %v4497, 1.442695
      %v4622 = vpow.pop %v4621
      %v4623 = vmul.f32 %v4498, 1.442695
      %v4624 = vpow.pop %v4623
      %v4625 = vmul.f32 %v4499, 1.442695
      %v4626 = vpow.pop %v4625
      %v4627 = vmul.f32 %v4500, 1.442695
      %v4628 = vpow.pop %v4627
      %v4629 = vadd.f32 %v4502, %v4504
      %4630 = vadd.xlane.f32.xlu0 %v4629
      %v4631 = vpop.xlane.xlu0 %4630
      %v4632 = vadd.f32 %v4506, %v4508
      %4633 = vadd.xlane.f32.xlu0 %v4632
      %v4634 = vpop.xlane.xlu0 %4633
      %v4635 = vadd.f32 %v4510, %v4512
      %4636 = vadd.xlane.f32.xlu0 %v4635
      %v4637 = vpop.xlane.xlu0 %4636
      %v4638 = vadd.f32 %v4514, %v4516
      %4639 = vadd.xlane.f32.xlu0 %v4638
      %v4640 = vpop.xlane.xlu0 %4639
      %v4641 = vadd.f32 %v4518, %v4520
      %4642 = vadd.xlane.f32.xlu0 %v4641
      %v4643 = vpop.xlane.xlu0 %4642
      %v4644 = vadd.f32 %v4522, %v4524
      %4645 = vadd.xlane.f32.xlu0 %v4644
      %v4646 = vpop.xlane.xlu0 %4645
      %v4647 = vadd.f32 %v4526, %v4528
      %4648 = vadd.xlane.f32.xlu0 %v4647
      %v4649 = vpop.xlane.xlu0 %4648
      %v4650 = vadd.f32 %v4530, %v4532
      %4651 = vadd.xlane.f32.xlu0 %v4650
      %v4652 = vpop.xlane.xlu0 %4651
      %v4653 = vadd.f32 %v4534, %v4536
      %4654 = vadd.xlane.f32.xlu0 %v4653
      %v4655 = vpop.xlane.xlu0 %4654
      %v4656 = vadd.f32 %v4538, %v4540
      %4657 = vadd.xlane.f32.xlu0 %v4656
      %v4658 = vpop.xlane.xlu0 %4657
      %v4659 = vadd.f32 %v4542, %v4544
      %4660 = vadd.xlane.f32.xlu0 %v4659
      %v4661 = vpop.xlane.xlu0 %4660
      %v4662 = vadd.f32 %v4546, %v4548
      %4663 = vadd.xlane.f32.xlu0 %v4662
      %v4664 = vpop.xlane.xlu0 %4663
      %v4665 = vadd.f32 %v4550, %v4552
      %4666 = vadd.xlane.f32.xlu0 %v4665
      %v4667 = vpop.xlane.xlu0 %4666
      %v4668 = vadd.f32 %v4554, %v4556
      %4669 = vadd.xlane.f32.xlu0 %v4668
      %v4670 = vpop.xlane.xlu0 %4669
      %v4671 = vadd.f32 %v4558, %v4560
      %4672 = vadd.xlane.f32.xlu0 %v4671
      %v4673 = vpop.xlane.xlu0 %4672
      %v4674 = vadd.f32 %v4562, %v4564
      %4675 = vadd.xlane.f32.xlu0 %v4674
      %v4676 = vpop.xlane.xlu0 %4675
      %v4677 = vadd.f32 %v4566, %v4568
      %4678 = vadd.xlane.f32.xlu0 %v4677
      %v4679 = vpop.xlane.xlu0 %4678
      %v4680 = vadd.f32 %v4570, %v4572
      %4681 = vadd.xlane.f32.xlu0 %v4680
      %v4682 = vpop.xlane.xlu0 %4681
      %v4683 = vadd.f32 %v4574, %v4576
      %4684 = vadd.xlane.f32.xlu0 %v4683
      %v4685 = vpop.xlane.xlu0 %4684
      %v4686 = vadd.f32 %v4578, %v4580
      %4687 = vadd.xlane.f32.xlu0 %v4686
      %v4688 = vpop.xlane.xlu0 %4687
      %v4689 = vadd.f32 %v4582, %v4584
      %4690 = vadd.xlane.f32.xlu0 %v4689
      %v4691 = vpop.xlane.xlu0 %4690
      %v4692 = vadd.f32 %v4586, %v4588
      %4693 = vadd.xlane.f32.xlu0 %v4692
      %v4694 = vpop.xlane.xlu0 %4693
      %v4695 = vadd.f32 %v4590, %v4592
      %4696 = vadd.xlane.f32.xlu0 %v4695
      %v4697 = vpop.xlane.xlu0 %4696
      %v4698 = vadd.f32 %v4594, %v4596
      %4699 = vadd.xlane.f32.xlu0 %v4698
      %v4700 = vpop.xlane.xlu0 %4699
      %v4701 = vadd.f32 %v4598, %v4600
      %4702 = vadd.xlane.f32.xlu0 %v4701
      %v4703 = vpop.xlane.xlu0 %4702
      %v4704 = vadd.f32 %v4602, %v4604
      %4705 = vadd.xlane.f32.xlu0 %v4704
      %v4706 = vpop.xlane.xlu0 %4705
      %v4707 = vadd.f32 %v4606, %v4608
      %4708 = vadd.xlane.f32.xlu0 %v4707
      %v4709 = vpop.xlane.xlu0 %4708
      %v4710 = vadd.f32 %v4610, %v4612
      %4711 = vadd.xlane.f32.xlu0 %v4710
      %v4712 = vpop.xlane.xlu0 %4711
      %v4713 = vadd.f32 %v4614, %v4616
      %4714 = vadd.xlane.f32.xlu0 %v4713
      %v4715 = vpop.xlane.xlu0 %4714
      %v4716 = vadd.f32 %v4618, %v4620
      %4717 = vadd.xlane.f32.xlu0 %v4716
      %v4718 = vpop.xlane.xlu0 %4717
      %v4719 = vadd.f32 %v4622, %v4624
      %4720 = vadd.xlane.f32.xlu0 %v4719
      %v4721 = vpop.xlane.xlu0 %4720
      %v4722 = vadd.f32 %v4626, %v4628
      %4723 = vadd.xlane.f32.xlu0 %v4722
      %v4724 = vpop.xlane.xlu0 %4723
      %v4725 = vrcp.pop %v4631
      %v4726 = vrcp.pop %v4634
      %v4727 = vrcp.pop %v4637
      %v4728 = vrcp.pop %v4640
      %v4729 = vrcp.pop %v4643
      %v4730 = vrcp.pop %v4646
      %v4731 = vrcp.pop %v4649
      %v4732 = vrcp.pop %v4652
      %v4733 = vrcp.pop %v4655
      %v4734 = vrcp.pop %v4658
      %v4735 = vrcp.pop %v4661
      %v4736 = vrcp.pop %v4664
      %v4737 = vrcp.pop %v4667
      %v4738 = vrcp.pop %v4670
      %v4739 = vrcp.pop %v4673
      %v4740 = vrcp.pop %v4676
      %v4741 = vrcp.pop %v4679
      %v4742 = vrcp.pop %v4682
      %v4743 = vrcp.pop %v4685
      %v4744 = vrcp.pop %v4688
      %v4745 = vrcp.pop %v4691
      %v4746 = vrcp.pop %v4694
      %v4747 = vrcp.pop %v4697
      %v4748 = vrcp.pop %v4700
      %v4749 = vrcp.pop %v4703
      %v4750 = vrcp.pop %v4706
      %v4751 = vrcp.pop %v4709
      %v4752 = vrcp.pop %v4712
      %v4753 = vrcp.pop %v4715
      %v4754 = vrcp.pop %v4718
      %v4755 = vrcp.pop %v4721
      %v4756 = vrcp.pop %v4724
      %v4757 = vmul.f32 %v4502, %v4725
      %v4758 = vmul.f32 %v4504, %v4725
      %v4759 = vmul.f32 %v4506, %v4726
      %v4760 = vmul.f32 %v4508, %v4726
      %v4761 = vmul.f32 %v4510, %v4727
      %v4762 = vmul.f32 %v4512, %v4727
      %v4763 = vmul.f32 %v4514, %v4728
      %v4764 = vmul.f32 %v4516, %v4728
      %v4765 = vmul.f32 %v4518, %v4729
      %v4766 = vmul.f32 %v4520, %v4729
      %v4767 = vmul.f32 %v4522, %v4730
      %v4768 = vmul.f32 %v4524, %v4730
      %v4769 = vmul.f32 %v4526, %v4731
      %v4770 = vmul.f32 %v4528, %v4731
      %v4771 = vmul.f32 %v4530, %v4732
      %v4772 = vmul.f32 %v4532, %v4732
      %v4773 = vmul.f32 %v4534, %v4733
      %v4774 = vmul.f32 %v4536, %v4733
      %v4775 = vmul.f32 %v4538, %v4734
      %v4776 = vmul.f32 %v4540, %v4734
      %v4777 = vmul.f32 %v4542, %v4735
      %v4778 = vmul.f32 %v4544, %v4735
      %v4779 = vmul.f32 %v4546, %v4736
      %v4780 = vmul.f32 %v4548, %v4736
      %v4781 = vmul.f32 %v4550, %v4737
      %v4782 = vmul.f32 %v4552, %v4737
      %v4783 = vmul.f32 %v4554, %v4738
      %v4784 = vmul.f32 %v4556, %v4738
      %v4785 = vmul.f32 %v4558, %v4739
      %v4786 = vmul.f32 %v4560, %v4739
      %v4787 = vmul.f32 %v4562, %v4740
      %v4788 = vmul.f32 %v4564, %v4740
      %v4789 = vmul.f32 %v4566, %v4741
      %v4790 = vmul.f32 %v4568, %v4741
      %v4791 = vmul.f32 %v4570, %v4742
      %v4792 = vmul.f32 %v4572, %v4742
      %v4793 = vmul.f32 %v4574, %v4743
      %v4794 = vmul.f32 %v4576, %v4743
      %v4795 = vmul.f32 %v4578, %v4744
      %v4796 = vmul.f32 %v4580, %v4744
      %v4797 = vmul.f32 %v4582, %v4745
      %v4798 = vmul.f32 %v4584, %v4745
      %v4799 = vmul.f32 %v4586, %v4746
      %v4800 = vmul.f32 %v4588, %v4746
      %v4801 = vmul.f32 %v4590, %v4747
      %v4802 = vmul.f32 %v4592, %v4747
      %v4803 = vmul.f32 %v4594, %v4748
      %v4804 = vmul.f32 %v4596, %v4748
      %v4805 = vmul.f32 %v4598, %v4749
      %v4806 = vmul.f32 %v4600, %v4749
      %v4807 = vmul.f32 %v4602, %v4750
      %v4808 = vmul.f32 %v4604, %v4750
      %v4809 = vmul.f32 %v4606, %v4751
      %v4810 = vmul.f32 %v4608, %v4751
      %v4811 = vmul.f32 %v4610, %v4752
      %v4812 = vmul.f32 %v4612, %v4752
      %v4813 = vmul.f32 %v4614, %v4753
      %v4814 = vmul.f32 %v4616, %v4753
      %v4815 = vmul.f32 %v4618, %v4754
      %v4816 = vmul.f32 %v4620, %v4754
      %v4817 = vmul.f32 %v4622, %v4755
      %v4818 = vmul.f32 %v4624, %v4755
      %v4819 = vmul.f32 %v4626, %v4756
      %v4820 = vmul.f32 %v4628, %v4756
      %v4821 = vpack.c.bf16 %v4759, %v4757
      %v4822 = vpack.c.bf16 %v4760, %v4758
      %v4823 = vpack.c.bf16 %v4763, %v4761
      %v4824 = vpack.c.bf16 %v4764, %v4762
      %v4825 = vpack.c.bf16 %v4767, %v4765
      %v4826 = vpack.c.bf16 %v4768, %v4766
      %v4827 = vpack.c.bf16 %v4771, %v4769
      %v4828 = vpack.c.bf16 %v4772, %v4770
      %v4829 = vpack.c.bf16 %v4775, %v4773
      %v4830 = vpack.c.bf16 %v4776, %v4774
      %v4831 = vpack.c.bf16 %v4779, %v4777
      %v4832 = vpack.c.bf16 %v4780, %v4778
      %v4833 = vpack.c.bf16 %v4783, %v4781
      %v4834 = vpack.c.bf16 %v4784, %v4782
      %v4835 = vpack.c.bf16 %v4787, %v4785
      %v4836 = vpack.c.bf16 %v4788, %v4786
      %v4837 = vpack.c.bf16 %v4791, %v4789
      %v4838 = vpack.c.bf16 %v4792, %v4790
      %v4839 = vpack.c.bf16 %v4795, %v4793
      %v4840 = vpack.c.bf16 %v4796, %v4794
      %v4841 = vpack.c.bf16 %v4799, %v4797
      %v4842 = vpack.c.bf16 %v4800, %v4798
      %v4843 = vpack.c.bf16 %v4803, %v4801
      %v4844 = vpack.c.bf16 %v4804, %v4802
      %v4845 = vpack.c.bf16 %v4807, %v4805
      %v4846 = vpack.c.bf16 %v4808, %v4806
      %v4847 = vpack.c.bf16 %v4811, %v4809
      %v4848 = vpack.c.bf16 %v4812, %v4810
      %v4849 = vpack.c.bf16 %v4815, %v4813
      %v4850 = vpack.c.bf16 %v4816, %v4814
      %v4851 = vpack.c.bf16 %v4819, %v4817
      %v4852 = vpack.c.bf16 %v4820, %v4818
      %v4853 = vrot.slane %v1313, 3
      %v4854 = vrot.slane %v1314, 3
      %4857 = vmatpush.bf16.xpose.msra.mxu0 %v4835
      %4858 = vmatpush.bf16.xpose.msra.mxu0 %v4833
      %4859 = vmatpush.bf16.xpose.msra.mxu0 %v4831
      %4860 = vmatpush.bf16.xpose.msra.mxu0 %v4829
      %4861 = vmatpush.bf16.xpose.msra.mxu0 %v4827
      %4862 = vmatpush.bf16.xpose.msra.mxu0 %v4825
      %4863 = vmatpush.bf16.xpose.msra.mxu0 %v4823
      %4864 = vmatpush.bf16.xpose.msra.mxu0 %v4821
      %4865 = vmatmul.bf16.gmra.mxu0 %v4853
      %v4866 = vpop.f32.mrf.mxu0
      %v4867 = vadd.f32 0.0, %v4866
      %v4868 = vpop.f32.mrf.mxu0
      %4869 = vdwg.mxu0
      %4870 = vmatpush.bf16.xpose.msra.mxu0 %v4836
      %4871 = vmatpush.bf16.xpose.msra.mxu0 %v4834
      %4872 = vmatpush.bf16.xpose.msra.mxu0 %v4832
      %4873 = vmatpush.bf16.xpose.msra.mxu0 %v4830
      %4874 = vmatpush.bf16.xpose.msra.mxu0 %v4828
      %4875 = vmatpush.bf16.xpose.msra.mxu0 %v4826
      %4876 = vmatpush.bf16.xpose.msra.mxu0 %v4824
      %4877 = vmatpush.bf16.xpose.msra.mxu0 %v4822
      %4878 = vmatmul.bf16.gmra.mxu0 %v4854
      %v4879 = vpop.f32.mrf.mxu0
      %v4880 = vadd.f32 %v4867, %v4879
      %v4881 = vpop.f32.mrf.mxu0
      %4882 = vdwg.mxu0
      %4883 = vmatpush.bf16.xpose.msra.mxu0 %v4851
      %4884 = vmatpush.bf16.xpose.msra.mxu0 %v4849
      %4885 = vmatpush.bf16.xpose.msra.mxu0 %v4847
      %4886 = vmatpush.bf16.xpose.msra.mxu0 %v4845
      %4887 = vmatpush.bf16.xpose.msra.mxu0 %v4843
      %4888 = vmatpush.bf16.xpose.msra.mxu0 %v4841
      %4889 = vmatpush.bf16.xpose.msra.mxu0 %v4839
      %4890 = vmatpush.bf16.xpose.msra.mxu0 %v4837
      %4891 = vmatmul.bf16.gmra.mxu0 %v4853
      %v4892 = vpop.f32.mrf.mxu0
      %v4893 = vadd.f32 0.0, %v4892
      %v4894 = vpop.f32.mrf.mxu0
      %4895 = vdwg.mxu0
      %4896 = vmatpush.bf16.xpose.msra.mxu0 %v4852
      %4897 = vmatpush.bf16.xpose.msra.mxu0 %v4850
      %4898 = vmatpush.bf16.xpose.msra.mxu0 %v4848
      %4899 = vmatpush.bf16.xpose.msra.mxu0 %v4846
      %4900 = vmatpush.bf16.xpose.msra.mxu0 %v4844
      %4901 = vmatpush.bf16.xpose.msra.mxu0 %v4842
      %4902 = vmatpush.bf16.xpose.msra.mxu0 %v4840
      %4903 = vmatpush.bf16.xpose.msra.mxu0 %v4838
      %4904 = vmatmul.bf16.gmra.mxu0 %v4854
      %v4905 = vpop.f32.mrf.mxu0
      %v4906 = vadd.f32 %v4893, %v4905
      %v4907 = vpop.f32.mrf.mxu0
      %4908 = vdwg.mxu0
      %v4911 = vrot.slane %v4880, 2
      %v4912 = vrot.slane %v4906, 2
      %4915 = vst [vmem:[#allocation4] sm:$0xc0] %v4911
      %4916 = vst [vmem:[#allocation4 + $0x8] sm:$0xc0] %v4912
      %v4917 = vld [vmem:[#allocation4] sm:$0xff]
      %v4918 = vld [vmem:[#allocation4 + $0x8] sm:$0xff]
      %v4919 = vpack.c.bf16 %v4917, %v4917
      %v4920 = vpack.c.bf16 %v4918, %v4918
      %4922 = vset.pattern.permute.xlu0 0
      %4923 = vperm.xlu0 %4922, %v1156
      %v4924 = vpop.permute.xlu0 %4923
      %v4927 = vsel %vm1182, %v1155, 0
      %v4930 = vsel %vm591, %v4919, 0
      %v4933 = vsel %vm591, %v4920, 0
      %4935 = vmatpush.bf16.msra.mxu0 0
      %4936 = vmatpush.bf16.msra.mxu0 0
      %4937 = vmatpush.bf16.msra.mxu0 0
      %4938 = vmatpush.bf16.msra.mxu0 0
      %4939 = vmatpush.bf16.msra.mxu0 0
      %4940 = vmatpush.bf16.msra.mxu0 0
      %4941 = vmatpush.bf16.msra.mxu0 0
      %4942 = vmatpush.bf16.msra.mxu0 %v4930
      %4943 = vmatmul.bf16.gmra.mxu0 %v4927
      %v4944 = vpop.f32.mrf.mxu0
      %v4945 = vadd.f32 %v4924, %v4944
      %v4946 = vpop.f32.mrf.mxu0
      %4947 = vdwg.mxu0
      %4948 = vmatpush.bf16.msra.mxu0 0
      %4949 = vmatpush.bf16.msra.mxu0 0
      %4950 = vmatpush.bf16.msra.mxu0 0
      %4951 = vmatpush.bf16.msra.mxu0 0
      %4952 = vmatpush.bf16.msra.mxu0 0
      %4953 = vmatpush.bf16.msra.mxu0 0
      %4954 = vmatpush.bf16.msra.mxu0 0
      %4955 = vmatpush.bf16.msra.mxu0 %v4933
      %4956 = vmatmul.bf16.gmra.mxu0 %v4927
      %v4957 = vpop.f32.mrf.mxu0
      %v4958 = vadd.f32 %v4924, %v4957
      %v4959 = vpop.f32.mrf.mxu0
      %4960 = vdwg.mxu0
      %4961 = vst [vmem:[%s576] sm:$0xff] %v4945
      %4962 = vst [vmem:[%s576 + $0x8] sm:$0xff] %v4958
      %v4963 = vld [vmem:[%s10] sm:$0xff]
      %v4964 = vld [vmem:[%s10 + $0x8] sm:$0xff]
      %v4965 = vld [vmem:[%s10 + $0x10] sm:$0xff]
      %v4966 = vld [vmem:[%s10 + $0x18] sm:$0xff]
      %v4967 = vld [vmem:[%s10 + $0x20] sm:$0xff]
      %v4968 = vld [vmem:[%s10 + $0x28] sm:$0xff]
      %v4969 = vld [vmem:[%s10 + $0x30] sm:$0xff]
      %v4970 = vld [vmem:[%s10 + $0x38] sm:$0xff]
      %v4971 = vld [vmem:[%s10 + $0x40] sm:$0xff]
      %v4972 = vld [vmem:[%s10 + $0x48] sm:$0xff]
      %v4973 = vld [vmem:[%s10 + $0x50] sm:$0xff]
      %v4974 = vld [vmem:[%s10 + $0x58] sm:$0xff]
      %v4975 = vld [vmem:[%s10 + $0x60] sm:$0xff]
      %v4976 = vld [vmem:[%s10 + $0x68] sm:$0xff]
      %v4977 = vld [vmem:[%s10 + $0x70] sm:$0xff]
      %v4978 = vld [vmem:[%s10 + $0x78] sm:$0xff]
      %v4979 = vld [vmem:[%s10 + $0x80] sm:$0xff]
      %v4980 = vld [vmem:[%s10 + $0x88] sm:$0xff]
      %v4981 = vld [vmem:[%s10 + $0x90] sm:$0xff]
      %v4982 = vld [vmem:[%s10 + $0x98] sm:$0xff]
      %v4983 = vld [vmem:[%s10 + $0xa0] sm:$0xff]
      %v4984 = vld [vmem:[%s10 + $0xa8] sm:$0xff]
      %v4985 = vld [vmem:[%s10 + $0xb0] sm:$0xff]
      %v4986 = vld [vmem:[%s10 + $0xb8] sm:$0xff]
      %v4987 = vld [vmem:[%s10 + $0xc0] sm:$0xff]
      %v4988 = vld [vmem:[%s10 + $0xc8] sm:$0xff]
      %v4989 = vld [vmem:[%s10 + $0xd0] sm:$0xff]
      %v4990 = vld [vmem:[%s10 + $0xd8] sm:$0xff]
      %v4991 = vld [vmem:[%s10 + $0xe0] sm:$0xff]
      %v4992 = vld [vmem:[%s10 + $0xe8] sm:$0xff]
      %v4993 = vld [vmem:[%s10 + $0xf0] sm:$0xff]
      %v4994 = vld [vmem:[%s10 + $0xf8] sm:$0xff]
      %4995 = vrot.lane.b32.xlu0 %v4945, 127
      %v4996 = vpop.permute.xlu0 %4995
      %4997 = vrot.lane.b32.xlu0 %v4958, 127
      %v4998 = vpop.permute.xlu0 %4997
      %v4999 = vsel %vm749, %v4996, %v4998
      %v5000 = vsel %vm749, %v4998, %v4996
      %v5001 = vmax.f32 %v4945, %v4999
      %v5002 = vmax.f32 %v4958, %v5000
      %5003 = vrot.lane.b32.xlu0 %v5001, 112
      %v5004 = vpop.permute.xlu0 %5003
      %5005 = vrot.lane.b32.xlu0 %v5002, 112
      %v5006 = vpop.permute.xlu0 %5005
      %v5007 = vsel %vm775, %v5004, %v5006
      %v5008 = vsel %vm775, %v5006, %v5004
      %v5009 = vmax.f32 %v5001, %v5007
      %v5010 = vmax.f32 %v5002, %v5008
      %5011 = vmatpush.msra.mxu0 %v4978
      %5012 = vmatpush.msra.mxu0 %v4977
      %5013 = vmatpush.msra.mxu0 %v4976
      %5014 = vmatpush.msra.mxu0 %v4975
      %5015 = vmatpush.msra.mxu0 %v4974
      %5016 = vmatpush.msra.mxu0 %v4973
      %5017 = vmatpush.msra.mxu0 %v4972
      %5018 = vmatpush.msra.mxu0 %v4971
      %5019 = vmatpush.msra.mxu0 %v4970
      %5020 = vmatpush.msra.mxu0 %v4969
      %5021 = vmatpush.msra.mxu0 %v4968
      %5022 = vmatpush.msra.mxu0 %v4967
      %5023 = vmatpush.msra.mxu0 %v4966
      %5024 = vmatpush.msra.mxu0 %v4965
      %5025 = vmatpush.msra.mxu0 %v4964
      %5026 = vmatpush.msra.mxu0 %v4963
      %5027 = vmatmul.f32.gmra.mxu0 %v5009
      %v5028 = vpop.f32.mrf.mxu0
      %v5029 = vadd.f32 0.0, %v5028
      %5030 = vdwg.mxu0
      %5031 = vmatpush.msra.mxu0 %v4994
      %5032 = vmatpush.msra.mxu0 %v4993
      %5033 = vmatpush.msra.mxu0 %v4992
      %5034 = vmatpush.msra.mxu0 %v4991
      %5035 = vmatpush.msra.mxu0 %v4990
      %5036 = vmatpush.msra.mxu0 %v4989
      %5037 = vmatpush.msra.mxu0 %v4988
      %5038 = vmatpush.msra.mxu0 %v4987
      %5039 = vmatpush.msra.mxu0 %v4986
      %5040 = vmatpush.msra.mxu0 %v4985
      %5041 = vmatpush.msra.mxu0 %v4984
      %5042 = vmatpush.msra.mxu0 %v4983
      %5043 = vmatpush.msra.mxu0 %v4982
      %5044 = vmatpush.msra.mxu0 %v4981
      %5045 = vmatpush.msra.mxu0 %v4980
      %5046 = vmatpush.msra.mxu0 %v4979
      %5047 = vmatmul.f32.gmra.mxu0 %v5010
      %v5048 = vpop.f32.mrf.mxu0
      %v5049 = vadd.f32 %v5029, %v5048
      %5050 = vdwg.mxu0
      %5051 = vst [vmem:[%s571] sm:$0xff] %v5049
      %p5052 = scmp.lt.s32.totalorder %s29, 1
      %s5053 = scalar_select %p5052, %s29, 1
      %s5054 = smul.addr %s5053, 8
      %s5055 = scalar_lea.vmem %s16, %s5054
      %p5056 = scmp.lt.s32.totalorder %s29, 1
      %s5057 = scalar_select %p5056, %s29, 1
      %s5058 = smul.addr %s5057, 2
      %s5059 = smul.addr %s5058, 8
      %s5060 = scalar_lea.vmem %s17, %s5059
      // Predicated region
      $region85: #{down_block_forward.1} parent=83 // pred_check
        %p5061 = pneg %p393
      $region86: #{down_block_forward.1} parent=83 // pred_check_branch
        %5063 = sbr.rel (%p5061) target = $region88
      $region87: #{down_block_forward.1} parent=83 // pred_region
        _
      $region88: #{down_block_forward.1} parent=83 // pred_fallthru
        _
      // Predicated region
      $region89: #{down_block_forward.1} parent=83 // pred_check
        %p5064 = pneg %p419
      $region90: #{down_block_forward.1} parent=83 // pred_check_branch
        %5066 = sbr.rel (%p5064) target = $region92
      $region91: #{down_block_forward.1} parent=83 // pred_region
        _
      $region92: #{down_block_forward.1} parent=83 // pred_fallthru
        _
    $region84: #{down_block_forward.1} parent=5 // pred_fallthru
      _
    %p5067 = scmp.le.s32.totalorder 2, %s24
    // Predicated region
    $region93: #{down_block_forward.1} parent=5 // pred_check
      %p5068 = pneg %p5067
    $region94: #{down_block_forward.1} parent=5 // pred_check_branch
      %5070 = sbr.rel (%p5068) target = $region96
    $region95: #{down_block_forward.1} parent=5 // pred_region
      %s5071 = ssub.s32 %s24, 2
      // Predicated region
      $region97: #{down_block_forward.1} parent=95 // pred_check
        %p5072 = pneg %p399
      $region98: #{down_block_forward.1} parent=95 // pred_check_branch
        %5074 = sbr.rel (%p5072) target = $region100
      $region99: #{down_block_forward.1} parent=95 // pred_region
        %p5075 = scmp.lt.s32.totalorder %s30, 1
        %s5076 = scalar_select %p5075, %s30, 1
        %s5077 = smul.addr %s5076, 8
        %s5078 = scalar_lea.vmem %s16, %s5077
      $region100: #{down_block_forward.1} parent=95 // pred_fallthru
        _
      // Predicated region
      $region101: #{down_block_forward.1} parent=95 // pred_check
        %p5079 = pneg %p425
      $region102: #{down_block_forward.1} parent=95 // pred_check_branch
        %5081 = sbr.rel (%p5079) target = $region104
      $region103: #{down_block_forward.1} parent=95 // pred_region
        %p5082 = scmp.lt.s32.totalorder %s30, 1
        %s5083 = scalar_select %p5082, %s30, 1
        %s5084 = smul.addr %s5083, 2
        %s5085 = smul.addr %s5084, 8
        %s5086 = scalar_lea.vmem %s17, %s5085
      $region104: #{down_block_forward.1} parent=95 // pred_fallthru
        _
    $region96: #{down_block_forward.1} parent=5 // pred_fallthru
      _
  $region6: #{down_block_forward.1} parent=0 // loop_footer
    %s28 = sadd.s32 1, %s24
  $region7: #{down_block_forward.1} parent=0 // loop_footer_branch
    %23 = sbr.rel target = $region3
  $region8: #{down_block_forward.1} parent=0 // loop_exit
    _

</llo_original>
